<compile_context>
chip_gen: v5e
topology: v5e:2x2
jax: 0.10.0
libtpu: 0.0.40
codegen_flags: <defaults>
</compile_context>

<pallas_src>
import math

import jax
import jax.numpy as jnp
from jax.experimental import pallas as pl
from jax.experimental.pallas import tpu as pltpu


def _round_up(x, m):
    return (x + m - 1) // m * m


def _cdiv(a, b):
    return -(-a // b)


# ---------------------------------------------------------------------------
# Pallas kernels
# ---------------------------------------------------------------------------
def _conv_pool_kernel(w_ref, b_ref, cols_ref, o_ref):
    """Fused conv-as-matmul + bias + ReLU + 2x2/2 max-pool (single MXU matmul).

    w_ref    : (Coutp, Kp)     bf16  torch weight.reshape(Cout, Cin*kh*kw), zero-padded
    b_ref    : (Coutp, 1)      f32   bias
    cols_ref : (Kp, 4*tm)      bf16  im2col columns; lanes = [win0|win1|win2|win3] blocks
    o_ref    : (Coutp, tm)     bf16  pooled + activated output tile (lane-dense)
    """
    acc = jnp.dot(w_ref[...], cols_ref[...], preferred_element_type=jnp.float32)
    tm = acc.shape[1] // 4
    pooled = jnp.maximum(jnp.maximum(acc[:, :tm], acc[:, tm:2 * tm]),
                         jnp.maximum(acc[:, 2 * tm:3 * tm], acc[:, 3 * tm:]))
    o_ref[...] = jnp.maximum(pooled + b_ref[...], 0.0).astype(o_ref.dtype)


def _mlp_kernel(f_ref, w1_ref, b1_ref, w2_ref, b2_ref, w3_ref, b3_ref, o_ref):
    """fc1+ReLU -> fc2+ReLU -> output_fc, fused; intermediates stay in VMEM/vregs.

    f_ref : (F, tn) bf16 features tile (lane dim = batch); w*: bf16 torch (out, in);
    b*: (out, 1) f32.  o_ref : (10, tn) f32.
    """
    h = jnp.dot(w1_ref[...], f_ref[...], preferred_element_type=jnp.float32)
    h = jnp.maximum(h + b1_ref[...], 0.0).astype(jnp.bfloat16)
    h = jnp.dot(w2_ref[...], h, preferred_element_type=jnp.float32)
    h = jnp.maximum(h + b2_ref[...], 0.0).astype(jnp.bfloat16)
    o_ref[...] = jnp.dot(w3_ref[...], h, preferred_element_type=jnp.float32) + b3_ref[...]


# ---------------------------------------------------------------------------
# Glue + wrappers
# ---------------------------------------------------------------------------
def _im2col_pooled(x_cnhw, kh, kw, pad):
    """x: (Cin, N, H, W) -> cols (4, Cin*kh*kw, N*OH2*OW2), window-position major.

    K ordering (cin, ki, kj) matches torch weight.reshape(Cout, Cin*kh*kw).
    M ordering (n, oh2, ow2).  Leading axis enumerates (py, px) within each 2x2
    pooling window, so a max over it implements MaxPool2d(2, 2) (floor mode).
    """
    xp = jnp.pad(x_cnhw, ((0, 0), (0, 0), (pad, pad), (pad, pad)))
    C, N, Hp, Wp = xp.shape
    OH, OW = Hp - kh + 1, Wp - kw + 1
    OH2, OW2 = OH // 2, OW // 2
    patches = [xp[:, :, i:i + OH, j:j + OW] for i in range(kh) for j in range(kw)]
    p = jnp.stack(patches, axis=1)                      # (C, kh*kw, N, OH, OW)
    p = p[:, :, :, : 2 * OH2, : 2 * OW2]                # crop (floor-mode pooling)
    p = p.reshape(C, kh * kw, N, OH2, 2, OW2, 2)        # (..., oh2, py, ow2, px)
    p = p.transpose(4, 6, 0, 1, 2, 3, 5)                # (py, px, C, khkw, N, oh2, ow2)
    cols = p.reshape(4, C * kh * kw, N * OH2 * OW2)
    return cols, OH2, OW2


def conv_relu_pool(x_cnhw, w, b, *, pad, tile_m=512):
    """Conv2d(stride=1, padding=pad) + ReLU + MaxPool2d(2,2), fused in one kernel.

    x: (Cin, N, H, W); w: (Cout, Cin, kh, kw) torch layout; b: (Cout,).
    Returns the pooled activation in (Cout, N, OH//2, OW//2) layout, bf16.
    """
    Cout, Cin, kh, kw = w.shape
    x_cnhw = x_cnhw.astype(jnp.bfloat16)               # halves im2col bytes
    N = x_cnhw.shape[1]
    cols, OH2, OW2 = _im2col_pooled(x_cnhw, kh, kw, pad)   # (4, K, M) bf16
    K = Cin * kh * kw
    M = N * OH2 * OW2

    Kp = _round_up(K, 16)                               # bf16 sublane multiple only
    # Guarantee >=2 grid steps whenever M allows it (v7x dual-TC + pipelining).
    tm = min(tile_m, max(128, _round_up(_cdiv(M, 2), 128)))
    Mp = _round_up(M, tm)
    G = Mp // tm
    Coutp = _round_up(Cout, 16)                         # unmasked bf16 sublane tiles

    cols = jnp.pad(cols, ((0, 0), (0, Kp - K), (0, Mp - M)))
    # (4, Kp, Mp) -> (Kp, G, 4, tm) -> (Kp, G*4*tm): each grid tile's 4*tm lanes hold
    # the four 2x2-window positions in 4 contiguous tm-wide blocks.
    cols = cols.reshape(4, Kp, G, tm).transpose(1, 2, 0, 3).reshape(Kp, G * 4 * tm)
    w_mat = jnp.pad(w.reshape(Cout, K),
                    ((0, Coutp - Cout), (0, Kp - K))).astype(jnp.bfloat16)
    bias = jnp.pad(b, (0, Coutp - Cout)).reshape(Coutp, 1).astype(jnp.float32)

    out = pl.pallas_call(
        _conv_pool_kernel,
        out_shape=jax.ShapeDtypeStruct((Coutp, Mp), jnp.bfloat16),
        grid=(G,),
        in_specs=[
            pl.BlockSpec((Coutp, Kp), lambda m: (0, 0)),       # weights (resident)
            pl.BlockSpec((Coutp, 1), lambda m: (0, 0)),        # bias (resident)
            pl.BlockSpec((Kp, 4 * tm), lambda m: (0, m)),      # cols tile
        ],
        out_specs=pl.BlockSpec((Coutp, tm), lambda m: (0, m)),
        compiler_params=pltpu.CompilerParams(
            dimension_semantics=("parallel",)),                # v7x: split over 2 TCs
    )(w_mat, bias, cols)
    return out[:Cout, :M].reshape(Cout, N, OH2, OW2)


def mlp_head(feats, w1, b1, w2, b2, w3, b3, *, tile_n=512):
    """Fused fc1+ReLU / fc2+ReLU / output_fc, gridded over the batch (lane) axis.

    feats: (F, N), F in torch flatten order.  Returns (N, 10) float32.
    """
    F, N = feats.shape
    Kout = w3.shape[0]
    tn = min(tile_n, max(128, _round_up(_cdiv(N, 2), 128)))
    Np = _round_up(N, tn)
    feats_p = jnp.pad(feats.astype(jnp.bfloat16), ((0, 0), (0, Np - N)))

    out = pl.pallas_call(
        _mlp_kernel,
        out_shape=jax.ShapeDtypeStruct((Kout, Np), jnp.float32),
        grid=(Np // tn,),
        in_specs=[
            pl.BlockSpec((F, tn), lambda n: (0, n)),               # feats tile
            pl.BlockSpec(w1.shape, lambda n: (0, 0)),              # weights resident
            pl.BlockSpec((w1.shape[0], 1), lambda n: (0, 0)),
            pl.BlockSpec(w2.shape, lambda n: (0, 0)),
            pl.BlockSpec((w2.shape[0], 1), lambda n: (0, 0)),
            pl.BlockSpec(w3.shape, lambda n: (0, 0)),
            pl.BlockSpec((w3.shape[0], 1), lambda n: (0, 0)),
        ],
        out_specs=pl.BlockSpec((Kout, tn), lambda n: (0, n)),
        compiler_params=pltpu.CompilerParams(
            dimension_semantics=("parallel",)),
    )(feats_p,
      w1.astype(jnp.bfloat16), b1.reshape(-1, 1).astype(jnp.float32),
      w2.astype(jnp.bfloat16), b2.reshape(-1, 1).astype(jnp.float32),
      w3.astype(jnp.bfloat16), b3.reshape(-1, 1).astype(jnp.float32))
    return out[:, :N].T                                            # (N, 10)


# ---------------------------------------------------------------------------
# Model
# ---------------------------------------------------------------------------
def init_params(key):
    """Deterministic init, PyTorch-default-style uniform(-1/sqrt(fan_in), ...)."""
    def u(k, shape, fan_in):
        bound = 1.0 / math.sqrt(fan_in)
        return jax.random.uniform(k, shape, jnp.float32, -bound, bound)

    ks = jax.random.split(key, 10)
    p = {}
    p["conv1_w"] = u(ks[0], (20, 3, 5, 5), 3 * 5 * 5)
    p["conv1_b"] = u(ks[1], (20,), 3 * 5 * 5)
    p["conv2_w"] = u(ks[2], (40, 20, 5, 5), 20 * 5 * 5)
    p["conv2_b"] = u(ks[3], (40,), 20 * 5 * 5)
    p["fc1_w"] = u(ks[4], (100, 40 * 6 * 6), 40 * 6 * 6)
    p["fc1_b"] = u(ks[5], (100,), 40 * 6 * 6)
    p["fc2_w"] = u(ks[6], (100, 100), 100)
    p["fc2_b"] = u(ks[7], (100,), 100)
    p["out_w"] = u(ks[8], (10, 100), 100)
    p["out_b"] = u(ks[9], (10,), 100)
    return p


@jax.jit
def model_pa3_forward(params, x):
    # x: (N, 3, 32, 32) NCHW.  Work internally in (C, N, H, W) so the lane-dense
    # (Cout, M) conv outputs chain between stages without activation transposes.
    x = jnp.transpose(x, (1, 0, 2, 3))                                   # (3, N, 32, 32)
    x = conv_relu_pool(x, params["conv1_w"], params["conv1_b"], pad=1)   # (20, N, 15, 15)
    x = conv_relu_pool(x, params["conv2_w"], params["conv2_b"], pad=1)   # (40, N, 6, 6)
    # torch .view(-1, 1440) flattens NCHW as (c, h, w) per sample -> (1440, N) here.
    feats = jnp.transpose(x, (0, 2, 3, 1)).reshape(40 * 6 * 6, -1)
    return mlp_head(feats,
                    params["fc1_w"], params["fc1_b"],
                    params["fc2_w"], params["fc2_b"],
                    params["out_w"], params["out_b"])                    # (N, 10)


if __name__ == "__main__":
    key = jax.random.PRNGKey(0)
    kx, kp = jax.random.split(key)
    x = jax.random.normal(kx, (2, 3, 32, 32), dtype=jnp.float32)
    params = init_params(kp)
    out = jax.block_until_ready(model_pa3_forward(params, x))
    assert out.shape == (2, 10), out.shape
    assert out.dtype == jnp.float32
    print("KERNEL_OK")
</pallas_src>

<mosaic_0001>
module attributes {stable_mosaic.version = 11 : i64} {
  func.func @_conv_pool_kernel(%arg0: i32, %arg1: memref<32x80xbf16, #tpu.memory_space<vmem>>, %arg2: memref<32x1xf32, #tpu.memory_space<vmem>>, %arg3: memref<80x1024xbf16, #tpu.memory_space<vmem>>, %arg4: memref<32x256xbf16, #tpu.memory_space<vmem>>) attributes {dimension_semantics = [#tpu.dimension_semantics<parallel>], iteration_bounds = array<i64: 2>, scalar_prefetch = 0 : i64, scratch_operands = 0 : i64, tpu.core_type = #tpu.core_type<tc>, window_params = [{pipeline_mode = #tpu.pipeline_mode<synchronous>, transform_indices = @transform_0, window_bounds = array<i64: 32, 80>}, {pipeline_mode = #tpu.pipeline_mode<synchronous>, transform_indices = @transform_1, window_bounds = array<i64: 32, 1>}, {transform_indices = @transform_2, window_bounds = array<i64: 80, 1024>}, {transform_indices = @transform_3, window_bounds = array<i64: 32, 256>}]} {
    %c0 = arith.constant 0 : index
    %c0_0 = arith.constant 0 : index
    %0 = vector.load %arg1[%c0, %c0_0] : memref<32x80xbf16, #tpu.memory_space<vmem>>, vector<32x80xbf16>
    %c0_1 = arith.constant 0 : index
    %c0_2 = arith.constant 0 : index
    %1 = vector.load %arg3[%c0_1, %c0_2] : memref<80x1024xbf16, #tpu.memory_space<vmem>>, vector<80x1024xbf16>
    %cst = arith.constant dense<0.000000e+00> : vector<32x1024xf32>
    %2 = tpu.matmul %0, %1, %cst {dimension_numbers = #tpu.dot_dimension_numbers<[1], [0], [0], [1], [0, 0, 1, 1], [], []>} : vector<32x80xbf16>, vector<80x1024xbf16>, vector<32x1024xf32> -> vector<32x1024xf32>
    %3 = vector.extract_strided_slice %2 {offsets = [0, 0], sizes = [32, 256], strides = [1, 1]} : vector<32x1024xf32> to vector<32x256xf32>
    %4 = vector.extract_strided_slice %2 {offsets = [0, 256], sizes = [32, 256], strides = [1, 1]} : vector<32x1024xf32> to vector<32x256xf32>
    %5 = arith.maximumf %3, %4 : vector<32x256xf32>
    %6 = vector.extract_strided_slice %2 {offsets = [0, 512], sizes = [32, 256], strides = [1, 1]} : vector<32x1024xf32> to vector<32x256xf32>
    %7 = vector.extract_strided_slice %2 {offsets = [0, 768], sizes = [32, 256], strides = [1, 1]} : vector<32x1024xf32> to vector<32x256xf32>
    %8 = arith.maximumf %6, %7 : vector<32x256xf32>
    %9 = arith.maximumf %5, %8 : vector<32x256xf32>
    %c0_3 = arith.constant 0 : index
    %c0_4 = arith.constant 0 : index
    %10 = vector.load %arg2[%c0_3, %c0_4] : memref<32x1xf32, #tpu.memory_space<vmem>>, vector<32x1xf32>
    %11 = vector.broadcast %10 : vector<32x1xf32> to vector<32x256xf32>
    %12 = arith.addf %9, %11 : vector<32x256xf32>
    %cst_5 = arith.constant 0.000000e+00 : f32
    %13 = vector.broadcast %cst_5 : f32 to vector<32x256xf32>
    %14 = arith.maximumf %12, %13 : vector<32x256xf32>
    %15 = arith.truncf %14 : vector<32x256xf32> to vector<32x256xbf16>
    %c0_6 = arith.constant 0 : index
    %c0_7 = arith.constant 0 : index
    %16 = vector.load %arg4[%c0_6, %c0_7] : memref<32x256xbf16, #tpu.memory_space<vmem>>, vector<32x256xbf16>
    tpu.vector_store %arg4[%c0_6, %c0_7], %15 {strides = array<i32>} : memref<32x256xbf16, #tpu.memory_space<vmem>>, vector<32x256xbf16>,
    return
  }
  func.func @transform_0(%arg0: i32) -> (i32, i32) {
    %c0_i32 = arith.constant 0 : i32
    %c0_i32_0 = arith.constant 0 : i32
    %c0_i32_1 = arith.constant 0 : i32
    return %c0_i32, %c0_i32_0 : i32, i32
  }
  func.func @transform_1(%arg0: i32) -> (i32, i32) {
    %c0_i32 = arith.constant 0 : i32
    %c0_i32_0 = arith.constant 0 : i32
    %c0_i32_1 = arith.constant 0 : i32
    return %c0_i32, %c0_i32_0 : i32, i32
  }
  func.func @transform_2(%arg0: i32) -> (i32, i32) {
    %c0_i32 = arith.constant 0 : i32
    %c0_i32_0 = arith.constant 0 : i32
    return %c0_i32, %arg0 : i32, i32
  }
  func.func @transform_3(%arg0: i32) -> (i32, i32) {
    %c0_i32 = arith.constant 0 : i32
    %c0_i32_0 = arith.constant 0 : i32
    return %c0_i32, %arg0 : i32, i32
  }
}

module attributes {stable_mosaic.version = 11 : i64} {
  func.func @_conv_pool_kernel(%arg0: i32, %arg1: memref<48x512xbf16, #tpu.memory_space<vmem>>, %arg2: memref<48x1xf32, #tpu.memory_space<vmem>>, %arg3: memref<512x512xbf16, #tpu.memory_space<vmem>>, %arg4: memref<48x128xbf16, #tpu.memory_space<vmem>>) attributes {dimension_semantics = [#tpu.dimension_semantics<parallel>], iteration_bounds = array<i64: 1>, scalar_prefetch = 0 : i64, scratch_operands = 0 : i64, tpu.core_type = #tpu.core_type<tc>, window_params = [{pipeline_mode = #tpu.pipeline_mode<synchronous>, transform_indices = @transform_0, window_bounds = array<i64: 48, 512>}, {pipeline_mode = #tpu.pipeline_mode<synchronous>, transform_indices = @transform_1, window_bounds = array<i64: 48, 1>}, {transform_indices = @transform_2, window_bounds = array<i64: 512, 512>}, {transform_indices = @transform_3, window_bounds = array<i64: 48, 128>}]} {
    %c0 = arith.constant 0 : index
    %c0_0 = arith.constant 0 : index
    %0 = vector.load %arg1[%c0, %c0_0] : memref<48x512xbf16, #tpu.memory_space<vmem>>, vector<48x512xbf16>
    %c0_1 = arith.constant 0 : index
    %c0_2 = arith.constant 0 : index
    %1 = vector.load %arg3[%c0_1, %c0_2] : memref<512x512xbf16, #tpu.memory_space<vmem>>, vector<512x512xbf16>
    %cst = arith.constant dense<0.000000e+00> : vector<48x512xf32>
    %2 = tpu.matmul %0, %1, %cst {dimension_numbers = #tpu.dot_dimension_numbers<[1], [0], [0], [1], [0, 0, 1, 1], [], []>} : vector<48x512xbf16>, vector<512x512xbf16>, vector<48x512xf32> -> vector<48x512xf32>
    %3 = vector.extract_strided_slice %2 {offsets = [0, 0], sizes = [48, 128], strides = [1, 1]} : vector<48x512xf32> to vector<48x128xf32>
    %4 = vector.extract_strided_slice %2 {offsets = [0, 128], sizes = [48, 128], strides = [1, 1]} : vector<48x512xf32> to vector<48x128xf32>
    %5 = arith.maximumf %3, %4 : vector<48x128xf32>
    %6 = vector.extract_strided_slice %2 {offsets = [0, 256], sizes = [48, 128], strides = [1, 1]} : vector<48x512xf32> to vector<48x128xf32>
    %7 = vector.extract_strided_slice %2 {offsets = [0, 384], sizes = [48, 128], strides = [1, 1]} : vector<48x512xf32> to vector<48x128xf32>
    %8 = arith.maximumf %6, %7 : vector<48x128xf32>
    %9 = arith.maximumf %5, %8 : vector<48x128xf32>
    %c0_3 = arith.constant 0 : index
    %c0_4 = arith.constant 0 : index
    %10 = vector.load %arg2[%c0_3, %c0_4] : memref<48x1xf32, #tpu.memory_space<vmem>>, vector<48x1xf32>
    %11 = vector.broadcast %10 : vector<48x1xf32> to vector<48x128xf32>
    %12 = arith.addf %9, %11 : vector<48x128xf32>
    %cst_5 = arith.constant 0.000000e+00 : f32
    %13 = vector.broadcast %cst_5 : f32 to vector<48x128xf32>
    %14 = arith.maximumf %12, %13 : vector<48x128xf32>
    %15 = arith.truncf %14 : vector<48x128xf32> to vector<48x128xbf16>
    %c0_6 = arith.constant 0 : index
    %c0_7 = arith.constant 0 : index
    %16 = vector.load %arg4[%c0_6, %c0_7] : memref<48x128xbf16, #tpu.memory_space<vmem>>, vector<48x128xbf16>
    tpu.vector_store %arg4[%c0_6, %c0_7], %15 {strides = array<i32>} : memref<48x128xbf16, #tpu.memory_space<vmem>>, vector<48x128xbf16>,
    return
  }
  func.func @transform_0(%arg0: i32) -> (i32, i32) {
    %c0_i32 = arith.constant 0 : i32
    %c0_i32_0 = arith.constant 0 : i32
    %c0_i32_1 = arith.constant 0 : i32
    return %c0_i32, %c0_i32_0 : i32, i32
  }
  func.func @transform_1(%arg0: i32) -> (i32, i32) {
    %c0_i32 = arith.constant 0 : i32
    %c0_i32_0 = arith.constant 0 : i32
    %c0_i32_1 = arith.constant 0 : i32
    return %c0_i32, %c0_i32_0 : i32, i32
  }
  func.func @transform_2(%arg0: i32) -> (i32, i32) {
    %c0_i32 = arith.constant 0 : i32
    %c0_i32_0 = arith.constant 0 : i32
    return %c0_i32, %arg0 : i32, i32
  }
  func.func @transform_3(%arg0: i32) -> (i32, i32) {
    %c0_i32 = arith.constant 0 : i32
    %c0_i32_0 = arith.constant 0 : i32
    return %c0_i32, %arg0 : i32, i32
  }
}

module attributes {stable_mosaic.version = 11 : i64} {
  func.func @_mlp_kernel(%arg0: i32, %arg1: memref<1440x128xbf16, #tpu.memory_space<vmem>>, %arg2: memref<100x1440xbf16, #tpu.memory_space<vmem>>, %arg3: memref<100x1xf32, #tpu.memory_space<vmem>>, %arg4: memref<100x100xbf16, #tpu.memory_space<vmem>>, %arg5: memref<100x1xf32, #tpu.memory_space<vmem>>, %arg6: memref<10x100xbf16, #tpu.memory_space<vmem>>, %arg7: memref<10x1xf32, #tpu.memory_space<vmem>>, %arg8: memref<10x128xf32, #tpu.memory_space<vmem>>) attributes {dimension_semantics = [#tpu.dimension_semantics<parallel>], iteration_bounds = array<i64: 1>, scalar_prefetch = 0 : i64, scratch_operands = 0 : i64, tpu.core_type = #tpu.core_type<tc>, window_params = [{transform_indices = @transform_0, window_bounds = array<i64: 1440, 128>}, {pipeline_mode = #tpu.pipeline_mode<synchronous>, transform_indices = @transform_1, window_bounds = array<i64: 100, 1440>}, {pipeline_mode = #tpu.pipeline_mode<synchronous>, transform_indices = @transform_2, window_bounds = array<i64: 100, 1>}, {pipeline_mode = #tpu.pipeline_mode<synchronous>, transform_indices = @transform_3, window_bounds = array<i64: 100, 100>}, {pipeline_mode = #tpu.pipeline_mode<synchronous>, transform_indices = @transform_4, window_bounds = array<i64: 100, 1>}, {pipeline_mode = #tpu.pipeline_mode<synchronous>, transform_indices = @transform_5, window_bounds = array<i64: 10, 100>}, {pipeline_mode = #tpu.pipeline_mode<synchronous>, transform_indices = @transform_6, window_bounds = array<i64: 10, 1>}, {transform_indices = @transform_7, window_bounds = array<i64: 10, 128>}]} {
    %c0 = arith.constant 0 : index
    %c0_0 = arith.constant 0 : index
    %0 = vector.load %arg2[%c0, %c0_0] : memref<100x1440xbf16, #tpu.memory_space<vmem>>, vector<100x1440xbf16>
    %c0_1 = arith.constant 0 : index
    %c0_2 = arith.constant 0 : index
    %1 = vector.load %arg1[%c0_1, %c0_2] : memref<1440x128xbf16, #tpu.memory_space<vmem>>, vector<1440x128xbf16>
    %cst = arith.constant dense<0.000000e+00> : vector<100x128xf32>
    %2 = tpu.matmul %0, %1, %cst {dimension_numbers = #tpu.dot_dimension_numbers<[1], [0], [0], [1], [0, 0, 1, 1], [], []>} : vector<100x1440xbf16>, vector<1440x128xbf16>, vector<100x128xf32> -> vector<100x128xf32>
    %c0_3 = arith.constant 0 : index
    %c0_4 = arith.constant 0 : index
    %3 = vector.load %arg3[%c0_3, %c0_4] : memref<100x1xf32, #tpu.memory_space<vmem>>, vector<100x1xf32>
    %4 = vector.broadcast %3 : vector<100x1xf32> to vector<100x128xf32>
    %5 = arith.addf %2, %4 : vector<100x128xf32>
    %cst_5 = arith.constant 0.000000e+00 : f32
    %6 = vector.broadcast %cst_5 : f32 to vector<100x128xf32>
    %7 = arith.maximumf %5, %6 : vector<100x128xf32>
    %8 = arith.truncf %7 : vector<100x128xf32> to vector<100x128xbf16>
    %c0_6 = arith.constant 0 : index
    %c0_7 = arith.constant 0 : index
    %9 = vector.load %arg4[%c0_6, %c0_7] : memref<100x100xbf16, #tpu.memory_space<vmem>>, vector<100x100xbf16>
    %cst_8 = arith.constant dense<0.000000e+00> : vector<100x128xf32>
    %10 = tpu.matmul %9, %8, %cst_8 {dimension_numbers = #tpu.dot_dimension_numbers<[1], [0], [0], [1], [0, 0, 1, 1], [], []>} : vector<100x100xbf16>, vector<100x128xbf16>, vector<100x128xf32> -> vector<100x128xf32>
    %c0_9 = arith.constant 0 : index
    %c0_10 = arith.constant 0 : index
    %11 = vector.load %arg5[%c0_9, %c0_10] : memref<100x1xf32, #tpu.memory_space<vmem>>, vector<100x1xf32>
    %12 = vector.broadcast %11 : vector<100x1xf32> to vector<100x128xf32>
    %13 = arith.addf %10, %12 : vector<100x128xf32>
    %cst_11 = arith.constant 0.000000e+00 : f32
    %14 = vector.broadcast %cst_11 : f32 to vector<100x128xf32>
    %15 = arith.maximumf %13, %14 : vector<100x128xf32>
    %16 = arith.truncf %15 : vector<100x128xf32> to vector<100x128xbf16>
    %c0_12 = arith.constant 0 : index
    %c0_13 = arith.constant 0 : index
    %17 = vector.load %arg6[%c0_12, %c0_13] : memref<10x100xbf16, #tpu.memory_space<vmem>>, vector<10x100xbf16>
    %cst_14 = arith.constant dense<0.000000e+00> : vector<10x128xf32>
    %18 = tpu.matmul %17, %16, %cst_14 {dimension_numbers = #tpu.dot_dimension_numbers<[1], [0], [0], [1], [0, 0, 1, 1], [], []>} : vector<10x100xbf16>, vector<100x128xbf16>, vector<10x128xf32> -> vector<10x128xf32>
    %c0_15 = arith.constant 0 : index
    %c0_16 = arith.constant 0 : index
    %19 = vector.load %arg7[%c0_15, %c0_16] : memref<10x1xf32, #tpu.memory_space<vmem>>, vector<10x1xf32>
    %20 = vector.broadcast %19 : vector<10x1xf32> to vector<10x128xf32>
    %21 = arith.addf %18, %20 : vector<10x128xf32>
    %c0_17 = arith.constant 0 : index
    %c0_18 = arith.constant 0 : index
    %22 = vector.load %arg8[%c0_17, %c0_18] : memref<10x128xf32, #tpu.memory_space<vmem>>, vector<10x128xf32>
    tpu.vector_store %arg8[%c0_17, %c0_18], %21 {strides = array<i32>} : memref<10x128xf32, #tpu.memory_space<vmem>>, vector<10x128xf32>,
    return
  }
  func.func @transform_0(%arg0: i32) -> (i32, i32) {
    %c0_i32 = arith.constant 0 : i32
    %c0_i32_0 = arith.constant 0 : i32
    return %c0_i32, %arg0 : i32, i32
  }
  func.func @transform_1(%arg0: i32) -> (i32, i32) {
    %c0_i32 = arith.constant 0 : i32
    %c0_i32_0 = arith.constant 0 : i32
    %c0_i32_1 = arith.constant 0 : i32
    return %c0_i32, %c0_i32_0 : i32, i32
  }
  func.func @transform_2(%arg0: i32) -> (i32, i32) {
    %c0_i32 = arith.constant 0 : i32
    %c0_i32_0 = arith.constant 0 : i32
    %c0_i32_1 = arith.constant 0 : i32
    return %c0_i32, %c0_i32_0 : i32, i32
  }
  func.func @transform_3(%arg0: i32) -> (i32, i32) {
    %c0_i32 = arith.constant 0 : i32
    %c0_i32_0 = arith.constant 0 : i32
    %c0_i32_1 = arith.constant 0 : i32
    return %c0_i32, %c0_i32_0 : i32, i32
  }
  func.func @transform_4(%arg0: i32) -> (i32, i32) {
    %c0_i32 = arith.constant 0 : i32
    %c0_i32_0 = arith.constant 0 : i32
    %c0_i32_1 = arith.constant 0 : i32
    return %c0_i32, %c0_i32_0 : i32, i32
  }
  func.func @transform_5(%arg0: i32) -> (i32, i32) {
    %c0_i32 = arith.constant 0 : i32
    %c0_i32_0 = arith.constant 0 : i32
    %c0_i32_1 = arith.constant 0 : i32
    return %c0_i32, %c0_i32_0 : i32, i32
  }
  func.func @transform_6(%arg0: i32) -> (i32, i32) {
    %c0_i32 = arith.constant 0 : i32
    %c0_i32_0 = arith.constant 0 : i32
    %c0_i32_1 = arith.constant 0 : i32
    return %c0_i32, %c0_i32_0 : i32, i32
  }
  func.func @transform_7(%arg0: i32) -> (i32, i32) {
    %c0_i32 = arith.constant 0 : i32
    %c0_i32_0 = arith.constant 0 : i32
    return %c0_i32, %arg0 : i32, i32
  }
}

</mosaic_0001>

<llo_original>
// kernel: model_pa3_forward.3
$region0: #{model_pa3_forward.3}
  #allocation0 [shape = 'u32[]', space=smem, size = 0x4, offset = 0x4, fixed_abs, tag = 'smem constant byte address 0x4 - core index']
  #allocation1 [shape = 'u32[72,128]{1,0:T(1,128)}', space=vmem, size = 0x9000, scoped, tag = 'internal scratch']
  %s0 = inlined_call_operand.vmem [shape: bf16[32,80], index: 0, kind: input, shape index: {}]
  %s1 = inlined_call_operand.vmem [shape: f32[32,1], index: 1, kind: input, shape index: {}]
  %s2 = inlined_call_operand.vmem [shape: bf16[80,2048], index: 2, kind: input, shape index: {}]
  %s3 = inlined_call_operand.vmem [shape: bf16[32,512], index: 3, kind: output, shape index: {}]
  %s4 = sld [smem:[#allocation0]]
  $region102: #{model_pa3_forward.3} parent=0
    _
  %s6 = ssub.s32 1, %s4
  %s7 = scalar_select 0, %s6, %s4
  $region1: #{model_pa3_forward.3} parent=0
    #allocation2 [shape = 'u8[327680]{0}', space=vmem, size = 0x50000, scoped, tag = 'input window, operand 2']
    #allocation3 [shape = 'u8[32768]{0}', space=vmem, size = 0x8000, scoped, tag = 'output window, operand 0']
    loop: start=0, step=1, limit=4
    $region2: #{model_pa3_forward.3} parent=1 // loop_pre_header
      _
    $region3: #{model_pa3_forward.3} parent=1 // loop_header
      %s9 = sphi 0, %s13
      %p10 = scmp.ge.s32.totalorder %s9, 4
      %s17 = sphi 0, %s17
      %s19 = sphi 0, %s17
      %s20 = sphi 0, %s19
      %s34 = sphi 0, %s20
      %s38 = sphi 0, %s38
      %s40 = sphi 0, %s38
      %s41 = sphi 0, %s40
      %s55 = sphi 0, %s41
      %s61 = sphi 0, %s63
      %s64 = sphi 0, %s61
      %s65 = sphi 0, %s64
      %s81 = sphi 0, %s65
      %s87 = sphi 0, %s89
      %s90 = sphi 0, %s87
      %s91 = sphi 0, %s90
      %s107 = sphi 0, %s91
    $region4: #{model_pa3_forward.3} parent=1 // loop_header_branch
      %12 = sbr.rel (%p10) target = $region8
    $region5: #{model_pa3_forward.3} parent=1 // loop_body
      %s14 = ssub.s32 %s9, 1
      %s15 = ssub.s32 %s9, 2
      %s16 = sadd.s32 %s9, 1
      %s18 = sadd.s32 %s17, 1
      %p21 = scmp.eq.s32.totalorder %s9, 1
      %p22 = scmp.ne.s32.totalorder %s17, %s19
      %p23 = scmp.eq.s32.totalorder %s9, 0
      %p24 = por %p22, %p23
      %p25 = scmp.ne.s32.totalorder %s17, %s19
      %p26 = scmp.eq.s32.totalorder %s14, 1
      %p27 = por %p25, %p26
      %p28 = scmp.ne.s32.totalorder %s19, %s20
      %p29 = scmp.eq.s32.totalorder %s14, 0
      %p30 = por %p28, %p29
      %p31 = scmp.ne.s32.totalorder %s19, %s20
      %p32 = scmp.eq.s32.totalorder %s15, 1
      %p33 = por %p31, %p32
      %p35 = scmp.ne.s32.totalorder %s20, %s34
      %p36 = scmp.eq.s32.totalorder %s15, 0
      %p37 = por %p35, %p36
      %s39 = sadd.s32 %s38, 1
      %p42 = scmp.eq.s32.totalorder %s9, 1
      %p43 = scmp.ne.s32.totalorder %s38, %s40
      %p44 = scmp.eq.s32.totalorder %s9, 0
      %p45 = por %p43, %p44
      %p46 = scmp.ne.s32.totalorder %s38, %s40
      %p47 = scmp.eq.s32.totalorder %s14, 1
      %p48 = por %p46, %p47
      %p49 = scmp.ne.s32.totalorder %s40, %s41
      %p50 = scmp.eq.s32.totalorder %s14, 0
      %p51 = por %p49, %p50
      %p52 = scmp.ne.s32.totalorder %s40, %s41
      %p53 = scmp.eq.s32.totalorder %s15, 1
      %p54 = por %p52, %p53
      %p56 = scmp.ne.s32.totalorder %s41, %s55
      %p57 = scmp.eq.s32.totalorder %s15, 0
      %p58 = por %p56, %p57
      %s59 = ssub.s32 %s9, %s16
      %p60 = scmp.eq.s32.totalorder %s59, 0
      %s62 = sadd.s32 %s61, 1
      %s63 = scalar_select %p60, %s61, %s62
      %p66 = pneg %p60
      %p67 = scmp.eq.s32.totalorder %s9, 1
      %p68 = por %p66, %p67
      %p69 = scmp.ne.s32.totalorder %s61, %s64
      %p70 = scmp.eq.s32.totalorder %s9, 0
      %p71 = por %p69, %p70
      %p72 = scmp.ne.s32.totalorder %s61, %s64
      %p73 = scmp.eq.s32.totalorder %s14, 1
      %p74 = por %p72, %p73
      %p75 = scmp.ne.s32.totalorder %s64, %s65
      %p76 = scmp.eq.s32.totalorder %s14, 0
      %p77 = por %p75, %p76
      %p78 = scmp.ne.s32.totalorder %s64, %s65
      %p79 = scmp.eq.s32.totalorder %s15, 1
      %p80 = por %p78, %p79
      %p82 = scmp.ne.s32.totalorder %s65, %s81
      %p83 = scmp.eq.s32.totalorder %s15, 0
      %p84 = por %p82, %p83
      %s85 = ssub.s32 %s9, %s16
      %p86 = scmp.eq.s32.totalorder %s85, 0
      %s88 = sadd.s32 %s87, 1
      %s89 = scalar_select %p86, %s87, %s88
      %p92 = pneg %p86
      %p93 = scmp.eq.s32.totalorder %s9, 1
      %p94 = por %p92, %p93
      %p95 = scmp.ne.s32.totalorder %s87, %s90
      %p96 = scmp.eq.s32.totalorder %s9, 0
      %p97 = por %p95, %p96
      %p98 = scmp.ne.s32.totalorder %s87, %s90
      %p99 = scmp.eq.s32.totalorder %s14, 1
      %p100 = por %p98, %p99
      %p101 = scmp.ne.s32.totalorder %s90, %s91
      %p102 = scmp.eq.s32.totalorder %s14, 0
      %p103 = por %p101, %p102
      %p104 = scmp.ne.s32.totalorder %s90, %s91
      %p105 = scmp.eq.s32.totalorder %s15, 1
      %p106 = por %p104, %p105
      %p108 = scmp.ne.s32.totalorder %s91, %s107
      %p109 = scmp.eq.s32.totalorder %s15, 0
      %p110 = por %p108, %p109
      %p111 = scmp.le.s32.totalorder 1, %s9
      %p112 = scmp.lt.s32.totalorder %s9, 3
      %p113 = pnand %p111, %p112
      %p114 = pneg %p113
      // Predicated region
      $region9: #{model_pa3_forward.3} parent=5 // pred_check
        _
      $region10: #{model_pa3_forward.3} parent=5 // pred_check_branch
        %116 = sbr.rel (%p113) target = $region12
      $region11: #{model_pa3_forward.3} parent=5 // pred_region
        %s117 = ssub.s32 %s9, 1
        // Predicated region
        $region13: #{model_pa3_forward.3} parent=11 // pred_check
          %p118 = pneg %p30
        $region14: #{model_pa3_forward.3} parent=11 // pred_check_branch
          %120 = sbr.rel (%p118) target = $region16
        $region15: #{model_pa3_forward.3} parent=11 // pred_region
          _
        $region16: #{model_pa3_forward.3} parent=11 // pred_fallthru
          _
        // Predicated region
        $region17: #{model_pa3_forward.3} parent=11 // pred_check
          %p121 = pneg %p51
        $region18: #{model_pa3_forward.3} parent=11 // pred_check_branch
          %123 = sbr.rel (%p121) target = $region20
        $region19: #{model_pa3_forward.3} parent=11 // pred_region
          _
        $region20: #{model_pa3_forward.3} parent=11 // pred_fallthru
          _
      $region12: #{model_pa3_forward.3} parent=5 // pred_fallthru
        _
      %p124 = scmp.lt.s32.totalorder %s9, 2
      // Predicated region
      $region21: #{model_pa3_forward.3} parent=5 // pred_check
        %p125 = pneg %p124
      $region22: #{model_pa3_forward.3} parent=5 // pred_check_branch
        %127 = sbr.rel (%p125) target = $region24
      $region23: #{model_pa3_forward.3} parent=5 // pred_region
        // Predicated region
        $region25: #{model_pa3_forward.3} parent=23 // pred_check
          %p128 = pneg %p71
        $region26: #{model_pa3_forward.3} parent=23 // pred_check_branch
          %130 = sbr.rel (%p128) target = $region28
        $region27: #{model_pa3_forward.3} parent=23 // pred_region
          %s131 = sand.u32 %s61, 1
          %s132 = sand.u32 %s61, 1
          %s133 = smul.addr %s132, 320
          %s134 = scalar_lea.vmem [#allocation2], %s133
          %s135 = smul.u32 8, %s9
          %s136 = smul.addr %s135, 4
          %s137 = scalar_lea.vmem %s2, %s136
          // Predicated region
          $region29: #{model_pa3_forward.3} parent=27 // pred_check
            _
          $region30: #{model_pa3_forward.3} parent=27 // pred_check_branch
            %139 = sbr.rel (0) target = $region32
          $region31: #{model_pa3_forward.3} parent=27 // pred_region
            // Predicated region
            $region33: #{model_pa3_forward.3} parent=31 // pred_check
              _
            $region34: #{model_pa3_forward.3} parent=31 // pred_check_branch
              %141 = sbr.rel (0) target = $region36
            $region35: #{model_pa3_forward.3} parent=31 // pred_region
              loop: start=0, step=1, limit=1
              $region37: #{model_pa3_forward.3} parent=35 // loop_pre_header
                _
              $region38: #{model_pa3_forward.3} parent=35 // loop_header
                %s143 = sphi 0, %s147
                %p144 = scmp.ge.s32.totalorder %s143, 1
                %s148 = sphi %s137, %s137
                %s149 = sphi %s134, %s134
              $region39: #{model_pa3_forward.3} parent=35 // loop_header_branch
                %146 = sbr.rel (%p144) target = $region43
              $region40: #{model_pa3_forward.3} parent=35 // loop_body
                %v150 = vld [vmem:[%s148] sm:$0xff]
                %151 = vst [vmem:[%s149] sm:$0xff] %v150
                %v152 = vld [vmem:[%s148 + $0x8] sm:$0xff]
                %153 = vst [vmem:[%s149 + $0x8] sm:$0xff] %v152
                %v154 = vld [vmem:[%s148 + $0x10] sm:$0xff]
                %155 = vst [vmem:[%s149 + $0x10] sm:$0xff] %v154
                %v156 = vld [vmem:[%s148 + $0x18] sm:$0xff]
                %157 = vst [vmem:[%s149 + $0x18] sm:$0xff] %v156
                %v158 = vld [vmem:[%s148 + $0x40] sm:$0xff]
                %159 = vst [vmem:[%s149 + $0x20] sm:$0xff] %v158
                %v160 = vld [vmem:[%s148 + $0x48] sm:$0xff]
                %161 = vst [vmem:[%s149 + $0x28] sm:$0xff] %v160
                %v162 = vld [vmem:[%s148 + $0x50] sm:$0xff]
                %163 = vst [vmem:[%s149 + $0x30] sm:$0xff] %v162
                %v164 = vld [vmem:[%s148 + $0x58] sm:$0xff]
                %165 = vst [vmem:[%s149 + $0x38] sm:$0xff] %v164
                %v166 = vld [vmem:[%s148 + $0x80] sm:$0xff]
                %167 = vst [vmem:[%s149 + $0x40] sm:$0xff] %v166
                %v168 = vld [vmem:[%s148 + $0x88] sm:$0xff]
                %169 = vst [vmem:[%s149 + $0x48] sm:$0xff] %v168
                %v170 = vld [vmem:[%s148 + $0x90] sm:$0xff]
                %171 = vst [vmem:[%s149 + $0x50] sm:$0xff] %v170
                %v172 = vld [vmem:[%s148 + $0x98] sm:$0xff]
                %173 = vst [vmem:[%s149 + $0x58] sm:$0xff] %v172
                %v174 = vld [vmem:[%s148 + $0xc0] sm:$0xff]
                %175 = vst [vmem:[%s149 + $0x60] sm:$0xff] %v174
                %v176 = vld [vmem:[%s148 + $0xc8] sm:$0xff]
                %177 = vst [vmem:[%s149 + $0x68] sm:$0xff] %v176
                %v178 = vld [vmem:[%s148 + $0xd0] sm:$0xff]
                %179 = vst [vmem:[%s149 + $0x70] sm:$0xff] %v178
                %v180 = vld [vmem:[%s148 + $0xd8] sm:$0xff]
                %181 = vst [vmem:[%s149 + $0x78] sm:$0xff] %v180
                %v182 = vld [vmem:[%s148 + $0x100] sm:$0xff]
                %183 = vst [vmem:[%s149 + $0x80] sm:$0xff] %v182
                %v184 = vld [vmem:[%s148 + $0x108] sm:$0xff]
                %185 = vst [vmem:[%s149 + $0x88] sm:$0xff] %v184
                %v186 = vld [vmem:[%s148 + $0x110] sm:$0xff]
                %187 = vst [vmem:[%s149 + $0x90] sm:$0xff] %v186
                %v188 = vld [vmem:[%s148 + $0x118] sm:$0xff]
                %189 = vst [vmem:[%s149 + $0x98] sm:$0xff] %v188
                %v190 = vld [vmem:[%s148 + $0x140] sm:$0xff]
                %191 = vst [vmem:[%s149 + $0xa0] sm:$0xff] %v190
                %v192 = vld [vmem:[%s148 + $0x148] sm:$0xff]
                %193 = vst [vmem:[%s149 + $0xa8] sm:$0xff] %v192
                %v194 = vld [vmem:[%s148 + $0x150] sm:$0xff]
                %195 = vst [vmem:[%s149 + $0xb0] sm:$0xff] %v194
                %v196 = vld [vmem:[%s148 + $0x158] sm:$0xff]
                %197 = vst [vmem:[%s149 + $0xb8] sm:$0xff] %v196
                %v198 = vld [vmem:[%s148 + $0x180] sm:$0xff]
                %199 = vst [vmem:[%s149 + $0xc0] sm:$0xff] %v198
                %v200 = vld [vmem:[%s148 + $0x188] sm:$0xff]
                %201 = vst [vmem:[%s149 + $0xc8] sm:$0xff] %v200
                %v202 = vld [vmem:[%s148 + $0x190] sm:$0xff]
                %203 = vst [vmem:[%s149 + $0xd0] sm:$0xff] %v202
                %v204 = vld [vmem:[%s148 + $0x198] sm:$0xff]
                %205 = vst [vmem:[%s149 + $0xd8] sm:$0xff] %v204
                %v206 = vld [vmem:[%s148 + $0x1c0] sm:$0xff]
                %207 = vst [vmem:[%s149 + $0xe0] sm:$0xff] %v206
                %v208 = vld [vmem:[%s148 + $0x1c8] sm:$0xff]
                %209 = vst [vmem:[%s149 + $0xe8] sm:$0xff] %v208
                %v210 = vld [vmem:[%s148 + $0x1d0] sm:$0xff]
                %211 = vst [vmem:[%s149 + $0xf0] sm:$0xff] %v210
                %v212 = vld [vmem:[%s148 + $0x1d8] sm:$0xff]
                %213 = vst [vmem:[%s149 + $0xf8] sm:$0xff] %v212
                %v214 = vld [vmem:[%s148 + $0x200] sm:$0xff]
                %215 = vst [vmem:[%s149 + $0x100] sm:$0xff] %v214
                %v216 = vld [vmem:[%s148 + $0x208] sm:$0xff]
                %217 = vst [vmem:[%s149 + $0x108] sm:$0xff] %v216
                %v218 = vld [vmem:[%s148 + $0x210] sm:$0xff]
                %219 = vst [vmem:[%s149 + $0x110] sm:$0xff] %v218
                %v220 = vld [vmem:[%s148 + $0x218] sm:$0xff]
                %221 = vst [vmem:[%s149 + $0x118] sm:$0xff] %v220
                %v222 = vld [vmem:[%s148 + $0x240] sm:$0xff]
                %223 = vst [vmem:[%s149 + $0x120] sm:$0xff] %v222
                %v224 = vld [vmem:[%s148 + $0x248] sm:$0xff]
                %225 = vst [vmem:[%s149 + $0x128] sm:$0xff] %v224
                %v226 = vld [vmem:[%s148 + $0x250] sm:$0xff]
                %227 = vst [vmem:[%s149 + $0x130] sm:$0xff] %v226
                %v228 = vld [vmem:[%s148 + $0x258] sm:$0xff]
                %229 = vst [vmem:[%s149 + $0x138] sm:$0xff] %v228
              $region41: #{model_pa3_forward.3} parent=35 // loop_footer
                %s147 = sadd.s32 1, %s143
              $region42: #{model_pa3_forward.3} parent=35 // loop_footer_branch
                %142 = sbr.rel target = $region38
              $region43: #{model_pa3_forward.3} parent=35 // loop_exit
                _
            $region36: #{model_pa3_forward.3} parent=31 // pred_fallthru
              _
            // Predicated region
            $region44: #{model_pa3_forward.3} parent=31 // pred_check
              _
            $region45: #{model_pa3_forward.3} parent=31 // pred_check_branch
              %231 = sbr.rel target = $region47
            $region46: #{model_pa3_forward.3} parent=31 // pred_region
              _
            $region47: #{model_pa3_forward.3} parent=31 // pred_fallthru
              _
          $region32: #{model_pa3_forward.3} parent=27 // pred_fallthru
            _
          %232 = vnop
        $region28: #{model_pa3_forward.3} parent=23 // pred_fallthru
          _
      $region24: #{model_pa3_forward.3} parent=5 // pred_fallthru
        _
      %p233 = scmp.le.s32.totalorder 1, %s9
      %p234 = scmp.lt.s32.totalorder %s9, 3
      %p235 = pnand %p233, %p234
      %p236 = pneg %p235
      // Predicated region
      $region48: #{model_pa3_forward.3} parent=5 // pred_check
        _
      $region49: #{model_pa3_forward.3} parent=5 // pred_check_branch
        %238 = sbr.rel (%p235) target = $region51
      $region50: #{model_pa3_forward.3} parent=5 // pred_region
        %s239 = ssub.s32 %s9, 1
        %s240 = sand.u32 %s64, 1
        %s241 = sand.u32 %s64, 1
        %s242 = smul.addr %s241, 320
        %s243 = scalar_lea.vmem [#allocation2], %s242
        // Predicated region
        $region52: #{model_pa3_forward.3} parent=50 // pred_check
          %p244 = pneg %p77
        $region53: #{model_pa3_forward.3} parent=50 // pred_check_branch
          %246 = sbr.rel (%p244) target = $region55
        $region54: #{model_pa3_forward.3} parent=50 // pred_region
          _
        $region55: #{model_pa3_forward.3} parent=50 // pred_fallthru
          _
        %p247 = pneg %p30
        %p248 = pneg %p27
        %p249 = pneg %p51
        %p250 = pneg %p48
        %s251 = sand.u32 %s64, 1
        %s252 = sand.u32 %s64, 1
        %s253 = smul.addr %s252, 320
        %s254 = scalar_lea.vmem [#allocation2], %s253
        %p255 = pneg %p77
        %p256 = pneg %p74
        %p257 = pneg %p103
        %p258 = pneg %p100
        %s259 = sand.u32 %s90, 1
        %s260 = sand.u32 %s90, 1
        %s261 = smul.addr %s260, 32
        %s262 = scalar_lea.vmem [#allocation3], %s261
        %s263 = smul.u32 8, %s14
        %s264 = smul.u32 2, %s14
        %v266 = vld [vmem:[%s0] sm:$0xf]
        %v267 = vld [vmem:[%s0 + $0x4] sm:$0xf]
        %v268 = vld [vmem:[%s0 + $0x8] sm:$0xf]
        %v269 = vld [vmem:[%s0 + $0xc] sm:$0xf]
        %v270 = vld [vmem:[%s243] sm:$0xff]
        %v271 = vld [vmem:[%s243 + $0x8] sm:$0xff]
        %v272 = vld [vmem:[%s243 + $0x10] sm:$0xff]
        %v273 = vld [vmem:[%s243 + $0x18] sm:$0xff]
        %v274 = vld [vmem:[%s243 + $0x20] sm:$0xff]
        %v275 = vld [vmem:[%s243 + $0x28] sm:$0xff]
        %v276 = vld [vmem:[%s243 + $0x30] sm:$0xff]
        %v277 = vld [vmem:[%s243 + $0x38] sm:$0xff]
        %v278 = vld [vmem:[%s243 + $0x40] sm:$0xff]
        %v279 = vld [vmem:[%s243 + $0x48] sm:$0xff]
        %v280 = vld [vmem:[%s243 + $0x50] sm:$0xff]
        %v281 = vld [vmem:[%s243 + $0x58] sm:$0xff]
        %v282 = vld [vmem:[%s243 + $0x60] sm:$0xff]
        %v283 = vld [vmem:[%s243 + $0x68] sm:$0xff]
        %v284 = vld [vmem:[%s243 + $0x70] sm:$0xff]
        %v285 = vld [vmem:[%s243 + $0x78] sm:$0xff]
        %v286 = vld [vmem:[%s243 + $0x80] sm:$0xff]
        %v287 = vld [vmem:[%s243 + $0x88] sm:$0xff]
        %v288 = vld [vmem:[%s243 + $0x90] sm:$0xff]
        %v289 = vld [vmem:[%s243 + $0x98] sm:$0xff]
        %v290 = vld [vmem:[%s243 + $0xa0] sm:$0xff]
        %v291 = vld [vmem:[%s243 + $0xa8] sm:$0xff]
        %v292 = vld [vmem:[%s243 + $0xb0] sm:$0xff]
        %v293 = vld [vmem:[%s243 + $0xb8] sm:$0xff]
        %v294 = vld [vmem:[%s243 + $0xc0] sm:$0xff]
        %v295 = vld [vmem:[%s243 + $0xc8] sm:$0xff]
        %v296 = vld [vmem:[%s243 + $0xd0] sm:$0xff]
        %v297 = vld [vmem:[%s243 + $0xd8] sm:$0xff]
        %v298 = vld [vmem:[%s243 + $0xe0] sm:$0xff]
        %v299 = vld [vmem:[%s243 + $0xe8] sm:$0xff]
        %v300 = vld [vmem:[%s243 + $0xf0] sm:$0xff]
        %v301 = vld [vmem:[%s243 + $0xf8] sm:$0xff]
        %v302 = vld [vmem:[%s243 + $0x100] sm:$0xff]
        %v303 = vld [vmem:[%s243 + $0x108] sm:$0xff]
        %v304 = vld [vmem:[%s243 + $0x110] sm:$0xff]
        %v305 = vld [vmem:[%s243 + $0x118] sm:$0xff]
        %v306 = vld [vmem:[%s243 + $0x120] sm:$0xff]
        %v307 = vld [vmem:[%s243 + $0x128] sm:$0xff]
        %v308 = vld [vmem:[%s243 + $0x130] sm:$0xff]
        %v309 = vld [vmem:[%s243 + $0x138] sm:$0xff]
        %v314 = vunpack.c.l.b16 %v266
        %v315 = vunpack.c.l.b16 %v267
        %v316 = vunpack.c.l.b16 %v268
        %v317 = vunpack.c.l.b16 %v269
        %v318 = vpack.c.b16 %v315, %v314
        %v319 = vpack.c.b16 %v317, %v316
        %v360 = vunpack.c.l.b16 %v270
        %v361 = vunpack.c.h.b16 %v270
        %v362 = vunpack.c.l.b16 %v271
        %v363 = vunpack.c.h.b16 %v271
        %v364 = vunpack.c.l.b16 %v272
        %v365 = vunpack.c.h.b16 %v272
        %v366 = vunpack.c.l.b16 %v273
        %v367 = vunpack.c.h.b16 %v273
        %v368 = vunpack.c.l.b16 %v274
        %v369 = vunpack.c.h.b16 %v274
        %v370 = vunpack.c.l.b16 %v275
        %v371 = vunpack.c.h.b16 %v275
        %v372 = vunpack.c.l.b16 %v276
        %v373 = vunpack.c.h.b16 %v276
        %v374 = vunpack.c.l.b16 %v277
        %v375 = vunpack.c.h.b16 %v277
        %v376 = vunpack.c.l.b16 %v278
        %v377 = vunpack.c.h.b16 %v278
        %v378 = vunpack.c.l.b16 %v279
        %v379 = vunpack.c.h.b16 %v279
        %v380 = vunpack.c.l.b16 %v280
        %v381 = vunpack.c.h.b16 %v280
        %v382 = vunpack.c.l.b16 %v281
        %v383 = vunpack.c.h.b16 %v281
        %v384 = vunpack.c.l.b16 %v282
        %v385 = vunpack.c.h.b16 %v282
        %v386 = vunpack.c.l.b16 %v283
        %v387 = vunpack.c.h.b16 %v283
        %v388 = vunpack.c.l.b16 %v284
        %v389 = vunpack.c.h.b16 %v284
        %v390 = vunpack.c.l.b16 %v285
        %v391 = vunpack.c.h.b16 %v285
        %v392 = vunpack.c.l.b16 %v286
        %v393 = vunpack.c.h.b16 %v286
        %v394 = vunpack.c.l.b16 %v287
        %v395 = vunpack.c.h.b16 %v287
        %v396 = vunpack.c.l.b16 %v288
        %v397 = vunpack.c.h.b16 %v288
        %v398 = vunpack.c.l.b16 %v289
        %v399 = vunpack.c.h.b16 %v289
        %v400 = vunpack.c.l.b16 %v290
        %v401 = vunpack.c.h.b16 %v290
        %v402 = vunpack.c.l.b16 %v291
        %v403 = vunpack.c.h.b16 %v291
        %v404 = vunpack.c.l.b16 %v292
        %v405 = vunpack.c.h.b16 %v292
        %v406 = vunpack.c.l.b16 %v293
        %v407 = vunpack.c.h.b16 %v293
        %v408 = vunpack.c.l.b16 %v294
        %v409 = vunpack.c.h.b16 %v294
        %v410 = vunpack.c.l.b16 %v295
        %v411 = vunpack.c.h.b16 %v295
        %v412 = vunpack.c.l.b16 %v296
        %v413 = vunpack.c.h.b16 %v296
        %v414 = vunpack.c.l.b16 %v297
        %v415 = vunpack.c.h.b16 %v297
        %v416 = vunpack.c.l.b16 %v298
        %v417 = vunpack.c.h.b16 %v298
        %v418 = vunpack.c.l.b16 %v299
        %v419 = vunpack.c.h.b16 %v299
        %v420 = vunpack.c.l.b16 %v300
        %v421 = vunpack.c.h.b16 %v300
        %v422 = vunpack.c.l.b16 %v301
        %v423 = vunpack.c.h.b16 %v301
        %v424 = vunpack.c.l.b16 %v302
        %v425 = vunpack.c.h.b16 %v302
        %v426 = vunpack.c.l.b16 %v303
        %v427 = vunpack.c.h.b16 %v303
        %v428 = vunpack.c.l.b16 %v304
        %v429 = vunpack.c.h.b16 %v304
        %v430 = vunpack.c.l.b16 %v305
        %v431 = vunpack.c.h.b16 %v305
        %v432 = vunpack.c.l.b16 %v306
        %v433 = vunpack.c.h.b16 %v306
        %v434 = vunpack.c.l.b16 %v307
        %v435 = vunpack.c.h.b16 %v307
        %v436 = vunpack.c.l.b16 %v308
        %v437 = vunpack.c.h.b16 %v308
        %v438 = vunpack.c.l.b16 %v309
        %v439 = vunpack.c.h.b16 %v309
        %v440 = vpack.c.b16 %v368, %v360
        %v441 = vpack.c.b16 %v369, %v361
        %v442 = vpack.c.b16 %v370, %v362
        %v443 = vpack.c.b16 %v371, %v363
        %v444 = vpack.c.b16 %v372, %v364
        %v445 = vpack.c.b16 %v373, %v365
        %v446 = vpack.c.b16 %v374, %v366
        %v447 = vpack.c.b16 %v375, %v367
        %v448 = vpack.c.b16 %v384, %v376
        %v449 = vpack.c.b16 %v385, %v377
        %v450 = vpack.c.b16 %v386, %v378
        %v451 = vpack.c.b16 %v387, %v379
        %v452 = vpack.c.b16 %v388, %v380
        %v453 = vpack.c.b16 %v389, %v381
        %v454 = vpack.c.b16 %v390, %v382
        %v455 = vpack.c.b16 %v391, %v383
        %v456 = vpack.c.b16 %v400, %v392
        %v457 = vpack.c.b16 %v401, %v393
        %v458 = vpack.c.b16 %v402, %v394
        %v459 = vpack.c.b16 %v403, %v395
        %v460 = vpack.c.b16 %v404, %v396
        %v461 = vpack.c.b16 %v405, %v397
        %v462 = vpack.c.b16 %v406, %v398
        %v463 = vpack.c.b16 %v407, %v399
        %v464 = vpack.c.b16 %v416, %v408
        %v465 = vpack.c.b16 %v417, %v409
        %v466 = vpack.c.b16 %v418, %v410
        %v467 = vpack.c.b16 %v419, %v411
        %v468 = vpack.c.b16 %v420, %v412
        %v469 = vpack.c.b16 %v421, %v413
        %v470 = vpack.c.b16 %v422, %v414
        %v471 = vpack.c.b16 %v423, %v415
        %v472 = vpack.c.b16 %v432, %v424
        %v473 = vpack.c.b16 %v433, %v425
        %v474 = vpack.c.b16 %v434, %v426
        %v475 = vpack.c.b16 %v435, %v427
        %v476 = vpack.c.b16 %v436, %v428
        %v477 = vpack.c.b16 %v437, %v429
        %v478 = vpack.c.b16 %v438, %v430
        %v479 = vpack.c.b16 %v439, %v431
        %vm520 = vcmask 654336
        %v522 = vsel %vm520, %v318, 0
        %v525 = vsel %vm520, %v319, 0
        %527 = vmatpush.bf16.msra.mxu0 0
        %528 = vmatpush.bf16.msra.mxu0 0
        %529 = vmatpush.bf16.msra.mxu0 0
        %530 = vmatpush.bf16.msra.mxu0 %v472
        %531 = vmatpush.bf16.msra.mxu0 %v464
        %532 = vmatpush.bf16.msra.mxu0 %v456
        %533 = vmatpush.bf16.msra.mxu0 %v448
        %534 = vmatpush.bf16.msra.mxu0 %v440
        %535 = vmatmul.bf16.gmra.mxu0 %v522
        %v536 = vpop.f32.mrf.mxu0
        %v537 = vadd.f32 0.0, %v536
        %v538 = vpop.f32.mrf.mxu0
        %v539 = vadd.f32 0.0, %v538
        %540 = vmatmul.bf16.gmra.mxu0 %v525
        %v541 = vpop.f32.mrf.mxu0
        %v542 = vadd.f32 0.0, %v541
        %v543 = vpop.f32.mrf.mxu0
        %v544 = vadd.f32 0.0, %v543
        %545 = vdwg.mxu0
        %546 = vmatpush.bf16.msra.mxu0 0
        %547 = vmatpush.bf16.msra.mxu0 0
        %548 = vmatpush.bf16.msra.mxu0 0
        %549 = vmatpush.bf16.msra.mxu0 %v473
        %550 = vmatpush.bf16.msra.mxu0 %v465
        %551 = vmatpush.bf16.msra.mxu0 %v457
        %552 = vmatpush.bf16.msra.mxu0 %v449
        %553 = vmatpush.bf16.msra.mxu0 %v441
        %554 = vmatmul.bf16.gmra.mxu0 %v522
        %v555 = vpop.f32.mrf.mxu0
        %v556 = vadd.f32 0.0, %v555
        %v557 = vpop.f32.mrf.mxu0
        %v558 = vadd.f32 0.0, %v557
        %559 = vmatmul.bf16.gmra.mxu0 %v525
        %v560 = vpop.f32.mrf.mxu0
        %v561 = vadd.f32 0.0, %v560
        %v562 = vpop.f32.mrf.mxu0
        %v563 = vadd.f32 0.0, %v562
        %564 = vdwg.mxu0
        %565 = vmatpush.bf16.msra.mxu0 0
        %566 = vmatpush.bf16.msra.mxu0 0
        %567 = vmatpush.bf16.msra.mxu0 0
        %568 = vmatpush.bf16.msra.mxu0 %v474
        %569 = vmatpush.bf16.msra.mxu0 %v466
        %570 = vmatpush.bf16.msra.mxu0 %v458
        %571 = vmatpush.bf16.msra.mxu0 %v450
        %572 = vmatpush.bf16.msra.mxu0 %v442
        %573 = vmatmul.bf16.gmra.mxu0 %v522
        %v574 = vpop.f32.mrf.mxu0
        %v575 = vadd.f32 0.0, %v574
        %v576 = vpop.f32.mrf.mxu0
        %v577 = vadd.f32 0.0, %v576
        %578 = vmatmul.bf16.gmra.mxu0 %v525
        %v579 = vpop.f32.mrf.mxu0
        %v580 = vadd.f32 0.0, %v579
        %v581 = vpop.f32.mrf.mxu0
        %v582 = vadd.f32 0.0, %v581
        %583 = vdwg.mxu0
        %584 = vmatpush.bf16.msra.mxu0 0
        %585 = vmatpush.bf16.msra.mxu0 0
        %586 = vmatpush.bf16.msra.mxu0 0
        %587 = vmatpush.bf16.msra.mxu0 %v475
        %588 = vmatpush.bf16.msra.mxu0 %v467
        %589 = vmatpush.bf16.msra.mxu0 %v459
        %590 = vmatpush.bf16.msra.mxu0 %v451
        %591 = vmatpush.bf16.msra.mxu0 %v443
        %592 = vmatmul.bf16.gmra.mxu0 %v522
        %v593 = vpop.f32.mrf.mxu0
        %v594 = vadd.f32 0.0, %v593
        %v595 = vpop.f32.mrf.mxu0
        %v596 = vadd.f32 0.0, %v595
        %597 = vmatmul.bf16.gmra.mxu0 %v525
        %v598 = vpop.f32.mrf.mxu0
        %v599 = vadd.f32 0.0, %v598
        %v600 = vpop.f32.mrf.mxu0
        %v601 = vadd.f32 0.0, %v600
        %602 = vdwg.mxu0
        %603 = vmatpush.bf16.msra.mxu0 0
        %604 = vmatpush.bf16.msra.mxu0 0
        %605 = vmatpush.bf16.msra.mxu0 0
        %606 = vmatpush.bf16.msra.mxu0 %v476
        %607 = vmatpush.bf16.msra.mxu0 %v468
        %608 = vmatpush.bf16.msra.mxu0 %v460
        %609 = vmatpush.bf16.msra.mxu0 %v452
        %610 = vmatpush.bf16.msra.mxu0 %v444
        %611 = vmatmul.bf16.gmra.mxu0 %v522
        %v612 = vpop.f32.mrf.mxu0
        %v613 = vadd.f32 0.0, %v612
        %v614 = vpop.f32.mrf.mxu0
        %v615 = vadd.f32 0.0, %v614
        %616 = vmatmul.bf16.gmra.mxu0 %v525
        %v617 = vpop.f32.mrf.mxu0
        %v618 = vadd.f32 0.0, %v617
        %v619 = vpop.f32.mrf.mxu0
        %v620 = vadd.f32 0.0, %v619
        %621 = vdwg.mxu0
        %622 = vmatpush.bf16.msra.mxu0 0
        %623 = vmatpush.bf16.msra.mxu0 0
        %624 = vmatpush.bf16.msra.mxu0 0
        %625 = vmatpush.bf16.msra.mxu0 %v477
        %626 = vmatpush.bf16.msra.mxu0 %v469
        %627 = vmatpush.bf16.msra.mxu0 %v461
        %628 = vmatpush.bf16.msra.mxu0 %v453
        %629 = vmatpush.bf16.msra.mxu0 %v445
        %630 = vmatmul.bf16.gmra.mxu0 %v522
        %v631 = vpop.f32.mrf.mxu0
        %v632 = vadd.f32 0.0, %v631
        %v633 = vpop.f32.mrf.mxu0
        %v634 = vadd.f32 0.0, %v633
        %635 = vmatmul.bf16.gmra.mxu0 %v525
        %v636 = vpop.f32.mrf.mxu0
        %v637 = vadd.f32 0.0, %v636
        %v638 = vpop.f32.mrf.mxu0
        %v639 = vadd.f32 0.0, %v638
        %640 = vdwg.mxu0
        %641 = vmatpush.bf16.msra.mxu0 0
        %642 = vmatpush.bf16.msra.mxu0 0
        %643 = vmatpush.bf16.msra.mxu0 0
        %644 = vmatpush.bf16.msra.mxu0 %v478
        %645 = vmatpush.bf16.msra.mxu0 %v470
        %646 = vmatpush.bf16.msra.mxu0 %v462
        %647 = vmatpush.bf16.msra.mxu0 %v454
        %648 = vmatpush.bf16.msra.mxu0 %v446
        %649 = vmatmul.bf16.gmra.mxu0 %v522
        %v650 = vpop.f32.mrf.mxu0
        %v651 = vadd.f32 0.0, %v650
        %v652 = vpop.f32.mrf.mxu0
        %v653 = vadd.f32 0.0, %v652
        %654 = vmatmul.bf16.gmra.mxu0 %v525
        %v655 = vpop.f32.mrf.mxu0
        %v656 = vadd.f32 0.0, %v655
        %v657 = vpop.f32.mrf.mxu0
        %v658 = vadd.f32 0.0, %v657
        %659 = vdwg.mxu0
        %660 = vmatpush.bf16.msra.mxu0 0
        %661 = vmatpush.bf16.msra.mxu0 0
        %662 = vmatpush.bf16.msra.mxu0 0
        %663 = vmatpush.bf16.msra.mxu0 %v479
        %664 = vmatpush.bf16.msra.mxu0 %v471
        %665 = vmatpush.bf16.msra.mxu0 %v463
        %666 = vmatpush.bf16.msra.mxu0 %v455
        %667 = vmatpush.bf16.msra.mxu0 %v447
        %668 = vmatmul.bf16.gmra.mxu0 %v522
        %v669 = vpop.f32.mrf.mxu0
        %v670 = vadd.f32 0.0, %v669
        %v671 = vpop.f32.mrf.mxu0
        %v672 = vadd.f32 0.0, %v671
        %673 = vmatmul.bf16.gmra.mxu0 %v525
        %v674 = vpop.f32.mrf.mxu0
        %v675 = vadd.f32 0.0, %v674
        %v676 = vpop.f32.mrf.mxu0
        %v677 = vadd.f32 0.0, %v676
        %678 = vdwg.mxu0
        %v679 = vmax.f32 %v537, %v575
        %v680 = vmax.f32 %v556, %v594
        %v681 = vmax.f32 %v539, %v577
        %v682 = vmax.f32 %v558, %v596
        %v683 = vmax.f32 %v542, %v580
        %v684 = vmax.f32 %v561, %v599
        %v685 = vmax.f32 %v544, %v582
        %v686 = vmax.f32 %v563, %v601
        %v687 = vmax.f32 %v613, %v651
        %v688 = vmax.f32 %v632, %v670
        %v689 = vmax.f32 %v615, %v653
        %v690 = vmax.f32 %v634, %v672
        %v691 = vmax.f32 %v618, %v656
        %v692 = vmax.f32 %v637, %v675
        %v693 = vmax.f32 %v620, %v658
        %v694 = vmax.f32 %v639, %v677
        %v695 = vmax.f32 %v679, %v687
        %v696 = vmax.f32 %v680, %v688
        %v697 = vmax.f32 %v681, %v689
        %v698 = vmax.f32 %v682, %v690
        %v699 = vmax.f32 %v683, %v691
        %v700 = vmax.f32 %v684, %v692
        %v701 = vmax.f32 %v685, %v693
        %v702 = vmax.f32 %v686, %v694
        %v703 = vld [vmem:[%s1] sm:$0xff]
        %v704 = vld [vmem:[%s1 + $0x8] sm:$0xff]
        %v705 = vld [vmem:[%s1 + $0x10] sm:$0xff]
        %v706 = vld [vmem:[%s1 + $0x18] sm:$0xff]
        %708 = vset.pattern.permute.xlu0 0
        %709 = vperm.xlu0 %708, %v703
        %v710 = vpop.permute.xlu0 %709
        %713 = vset.pattern.permute.xlu0 0
        %714 = vperm.xlu0 %713, %v704
        %v715 = vpop.permute.xlu0 %714
        %718 = vset.pattern.permute.xlu0 0
        %719 = vperm.xlu0 %718, %v705
        %v720 = vpop.permute.xlu0 %719
        %723 = vset.pattern.permute.xlu0 0
        %724 = vperm.xlu0 %723, %v706
        %v725 = vpop.permute.xlu0 %724
        %v727 = vadd.f32 %v695, %v710
        %v728 = vadd.f32 %v696, %v710
        %v729 = vadd.f32 %v697, %v715
        %v730 = vadd.f32 %v698, %v715
        %v731 = vadd.f32 %v699, %v720
        %v732 = vadd.f32 %v700, %v720
        %v733 = vadd.f32 %v701, %v725
        %v734 = vadd.f32 %v702, %v725
        %v735 = vmax.f32 %v727, 0.0
        %v736 = vmax.f32 %v728, 0.0
        %v737 = vmax.f32 %v729, 0.0
        %v738 = vmax.f32 %v730, 0.0
        %v739 = vmax.f32 %v731, 0.0
        %v740 = vmax.f32 %v732, 0.0
        %v741 = vmax.f32 %v733, 0.0
        %v742 = vmax.f32 %v734, 0.0
        %v743 = vpack.c.bf16 %v736, %v735
        %v744 = vpack.c.bf16 %v738, %v737
        %v745 = vpack.c.bf16 %v740, %v739
        %v746 = vpack.c.bf16 %v742, %v741
        %747 = vst [vmem:[%s262] sm:$0xff] %v743
        %748 = vst [vmem:[%s262 + $0x8] sm:$0xff] %v744
        %749 = vst [vmem:[%s262 + $0x10] sm:$0xff] %v745
        %750 = vst [vmem:[%s262 + $0x18] sm:$0xff] %v746
        %s751 = sand.u32 %s90, 1
        %s752 = sand.u32 %s90, 1
        %s753 = smul.addr %s752, 32
        %s754 = scalar_lea.vmem [#allocation3], %s753
        // Predicated region
        $region56: #{model_pa3_forward.3} parent=50 // pred_check
          %p755 = pneg %p100
        $region57: #{model_pa3_forward.3} parent=50 // pred_check_branch
          %757 = sbr.rel (%p755) target = $region59
        $region58: #{model_pa3_forward.3} parent=50 // pred_region
          %s758 = smul.u32 2, %s14
          %s759 = smul.addr %s758, 4
          %s760 = scalar_lea.vmem %s3, %s759
          // Predicated region
          $region60: #{model_pa3_forward.3} parent=58 // pred_check
            _
          $region61: #{model_pa3_forward.3} parent=58 // pred_check_branch
            %762 = sbr.rel (0) target = $region63
          $region62: #{model_pa3_forward.3} parent=58 // pred_region
            // Predicated region
            $region64: #{model_pa3_forward.3} parent=62 // pred_check
              _
            $region65: #{model_pa3_forward.3} parent=62 // pred_check_branch
              %764 = sbr.rel (0) target = $region67
            $region66: #{model_pa3_forward.3} parent=62 // pred_region
              // Predicated region
              $region79: #{model_pa3_forward.3} parent=66 // pred_check
                _
              $region80: #{model_pa3_forward.3} parent=66 // pred_check_branch
                %786 = sbr.rel (0) target = $region82
              $region81: #{model_pa3_forward.3} parent=66 // pred_region
                loop: start=0, step=1, limit=1
                $region83: #{model_pa3_forward.3} parent=81 // loop_pre_header
                  _
                $region84: #{model_pa3_forward.3} parent=81 // loop_header
                  %s788 = sphi 0, %s792
                  %p789 = scmp.ge.s32.totalorder %s788, 1
                  %s793 = sphi %s754, %s754
                  %s794 = sphi %s760, %s760
                $region85: #{model_pa3_forward.3} parent=81 // loop_header_branch
                  %791 = sbr.rel (%p789) target = $region89
                $region86: #{model_pa3_forward.3} parent=81 // loop_body
                  %v795 = vld [vmem:[%s793] sm:$0xff]
                  %796 = vst [vmem:[%s794] sm:$0xff] %v795
                  %v797 = vld [vmem:[%s793 + $0x8] sm:$0xff]
                  %798 = vst [vmem:[%s794 + $0x10] sm:$0xff] %v797
                  %v799 = vld [vmem:[%s793 + $0x10] sm:$0xff]
                  %800 = vst [vmem:[%s794 + $0x20] sm:$0xff] %v799
                  %v801 = vld [vmem:[%s793 + $0x18] sm:$0xff]
                  %802 = vst [vmem:[%s794 + $0x30] sm:$0xff] %v801
                $region87: #{model_pa3_forward.3} parent=81 // loop_footer
                  %s792 = sadd.s32 1, %s788
                $region88: #{model_pa3_forward.3} parent=81 // loop_footer_branch
                  %787 = sbr.rel target = $region84
                $region89: #{model_pa3_forward.3} parent=81 // loop_exit
                  _
              $region82: #{model_pa3_forward.3} parent=66 // pred_fallthru
                _
              // Predicated region
              $region90: #{model_pa3_forward.3} parent=66 // pred_check
                _
              $region91: #{model_pa3_forward.3} parent=66 // pred_check_branch
                %804 = sbr.rel target = $region93
              $region92: #{model_pa3_forward.3} parent=66 // pred_region
                _
              $region93: #{model_pa3_forward.3} parent=66 // pred_fallthru
                _
            $region67: #{model_pa3_forward.3} parent=62 // pred_fallthru
              _
            // Predicated region
            $region68: #{model_pa3_forward.3} parent=62 // pred_check
              _
            $region69: #{model_pa3_forward.3} parent=62 // pred_check_branch
              %766 = sbr.rel target = $region71
            $region70: #{model_pa3_forward.3} parent=62 // pred_region
              %s768 = ssub.s32 256, 1
              loop: start=0, step=1, limit=1
              $region72: #{model_pa3_forward.3} parent=70 // loop_pre_header
                _
              $region73: #{model_pa3_forward.3} parent=70 // loop_header
                %s770 = sphi 0, %s774
                %p771 = scmp.ge.s32.totalorder %s770, 1
                %s775 = sphi %s754, %s754
                %s776 = sphi %s760, %s760
              $region74: #{model_pa3_forward.3} parent=70 // loop_header_branch
                %773 = sbr.rel (%p771) target = $region78
              $region75: #{model_pa3_forward.3} parent=70 // loop_body
                %v777 = vld [vmem:[%s775] sm:%s768]
                %778 = vst [vmem:[%s776] sm:%s768] %v777
                %v779 = vld [vmem:[%s775 + $0x8] sm:%s768]
                %780 = vst [vmem:[%s776 + $0x10] sm:%s768] %v779
                %v781 = vld [vmem:[%s775 + $0x10] sm:%s768]
                %782 = vst [vmem:[%s776 + $0x20] sm:%s768] %v781
                %v783 = vld [vmem:[%s775 + $0x18] sm:%s768]
                %784 = vst [vmem:[%s776 + $0x30] sm:%s768] %v783
              $region76: #{model_pa3_forward.3} parent=70 // loop_footer
                %s774 = sadd.s32 1, %s770
              $region77: #{model_pa3_forward.3} parent=70 // loop_footer_branch
                %769 = sbr.rel target = $region73
              $region78: #{model_pa3_forward.3} parent=70 // loop_exit
                _
            $region71: #{model_pa3_forward.3} parent=62 // pred_fallthru
              _
          $region63: #{model_pa3_forward.3} parent=58 // pred_fallthru
            _
          %805 = vnop
        $region59: #{model_pa3_forward.3} parent=50 // pred_fallthru
          _
      $region51: #{model_pa3_forward.3} parent=5 // pred_fallthru
        _
      %p806 = scmp.le.s32.totalorder 2, %s9
      // Predicated region
      $region94: #{model_pa3_forward.3} parent=5 // pred_check
        %p807 = pneg %p806
      $region95: #{model_pa3_forward.3} parent=5 // pred_check_branch
        %809 = sbr.rel (%p807) target = $region97
      $region96: #{model_pa3_forward.3} parent=5 // pred_region
        %s810 = ssub.s32 %s9, 2
        // Predicated region
        $region98: #{model_pa3_forward.3} parent=96 // pred_check
          %p811 = pneg %p106
        $region99: #{model_pa3_forward.3} parent=96 // pred_check_branch
          %813 = sbr.rel (%p811) target = $region101
        $region100: #{model_pa3_forward.3} parent=96 // pred_region
          %s814 = sand.u32 %s91, 1
          %s815 = sand.u32 %s91, 1
          %s816 = smul.addr %s815, 32
          %s817 = scalar_lea.vmem [#allocation3], %s816
        $region101: #{model_pa3_forward.3} parent=96 // pred_fallthru
          _
      $region97: #{model_pa3_forward.3} parent=5 // pred_fallthru
        _
    $region6: #{model_pa3_forward.3} parent=1 // loop_footer
      %s13 = sadd.s32 1, %s9
    $region7: #{model_pa3_forward.3} parent=1 // loop_footer_branch
      %8 = sbr.rel target = $region3
    $region8: #{model_pa3_forward.3} parent=1 // loop_exit
      _

// kernel: model_pa3_forward.4
$region0: #{model_pa3_forward.4}
  #allocation0 [shape = 'u32[]', space=smem, size = 0x4, offset = 0x4, fixed_abs, tag = 'smem constant byte address 0x4 - core index']
  #allocation1 [shape = 'u32[72,128]{1,0:T(1,128)}', space=vmem, size = 0x9000, scoped, tag = 'internal scratch']
  %s0 = inlined_call_operand.vmem [shape: bf16[48,512], index: 0, kind: input, shape index: {}]
  %s1 = inlined_call_operand.vmem [shape: f32[48,1], index: 1, kind: input, shape index: {}]
  %s2 = inlined_call_operand.vmem [shape: bf16[512,512], index: 2, kind: input, shape index: {}]
  %s3 = inlined_call_operand.vmem [shape: bf16[48,128], index: 3, kind: output, shape index: {}]
  %s4 = sld [smem:[#allocation0]]
  $region22: #{model_pa3_forward.4} parent=0
    _
  %s6 = ssub.s32 1, %s4
  %s7 = scalar_select 0, %s6, %s4
  // Predicated region
  $region2: #{model_pa3_forward.4} parent=0 // pred_check
    _
  $region3: #{model_pa3_forward.4} parent=0 // pred_check_branch
    %9 = sbr.rel (0) target = $region5
  $region4: #{model_pa3_forward.4} parent=0 // pred_region
    _
  $region5: #{model_pa3_forward.4} parent=0 // pred_fallthru
    _
  // Predicated region
  $region6: #{model_pa3_forward.4} parent=0 // pred_check
    _
  $region7: #{model_pa3_forward.4} parent=0 // pred_check_branch
    %11 = sbr.rel (0) target = $region9
  $region8: #{model_pa3_forward.4} parent=0 // pred_region
    _
  $region9: #{model_pa3_forward.4} parent=0 // pred_fallthru
    _
  // Predicated region
  $region10: #{model_pa3_forward.4} parent=0 // pred_check
    _
  $region11: #{model_pa3_forward.4} parent=0 // pred_check_branch
    %13 = sbr.rel (0) target = $region13
  $region12: #{model_pa3_forward.4} parent=0 // pred_region
    _
  $region13: #{model_pa3_forward.4} parent=0 // pred_fallthru
    _
  %v14 = vld [vmem:[%s0] sm:$0xff]
  %v15 = vld [vmem:[%s0 + $0x8] sm:$0xff]
  %v16 = vld [vmem:[%s0 + $0x10] sm:$0xff]
  %v17 = vld [vmem:[%s0 + $0x18] sm:$0xff]
  %v18 = vld [vmem:[%s0 + $0x20] sm:$0xff]
  %v19 = vld [vmem:[%s0 + $0x28] sm:$0xff]
  %v20 = vld [vmem:[%s0 + $0x30] sm:$0xff]
  %v21 = vld [vmem:[%s0 + $0x38] sm:$0xff]
  %v22 = vld [vmem:[%s0 + $0x40] sm:$0xff]
  %v23 = vld [vmem:[%s0 + $0x48] sm:$0xff]
  %v24 = vld [vmem:[%s0 + $0x50] sm:$0xff]
  %v25 = vld [vmem:[%s0 + $0x58] sm:$0xff]
  %v26 = vld [vmem:[%s2] sm:$0xff]
  %v27 = vld [vmem:[%s2 + $0x8] sm:$0xff]
  %v28 = vld [vmem:[%s2 + $0x10] sm:$0xff]
  %v29 = vld [vmem:[%s2 + $0x18] sm:$0xff]
  %v30 = vld [vmem:[%s2 + $0x20] sm:$0xff]
  %v31 = vld [vmem:[%s2 + $0x28] sm:$0xff]
  %v32 = vld [vmem:[%s2 + $0x30] sm:$0xff]
  %v33 = vld [vmem:[%s2 + $0x38] sm:$0xff]
  %v34 = vld [vmem:[%s2 + $0x40] sm:$0xff]
  %v35 = vld [vmem:[%s2 + $0x48] sm:$0xff]
  %v36 = vld [vmem:[%s2 + $0x50] sm:$0xff]
  %v37 = vld [vmem:[%s2 + $0x58] sm:$0xff]
  %v38 = vld [vmem:[%s2 + $0x60] sm:$0xff]
  %v39 = vld [vmem:[%s2 + $0x68] sm:$0xff]
  %v40 = vld [vmem:[%s2 + $0x70] sm:$0xff]
  %v41 = vld [vmem:[%s2 + $0x78] sm:$0xff]
  %v42 = vld [vmem:[%s2 + $0x80] sm:$0xff]
  %v43 = vld [vmem:[%s2 + $0x88] sm:$0xff]
  %v44 = vld [vmem:[%s2 + $0x90] sm:$0xff]
  %v45 = vld [vmem:[%s2 + $0x98] sm:$0xff]
  %v46 = vld [vmem:[%s2 + $0xa0] sm:$0xff]
  %v47 = vld [vmem:[%s2 + $0xa8] sm:$0xff]
  %v48 = vld [vmem:[%s2 + $0xb0] sm:$0xff]
  %v49 = vld [vmem:[%s2 + $0xb8] sm:$0xff]
  %v50 = vld [vmem:[%s2 + $0xc0] sm:$0xff]
  %v51 = vld [vmem:[%s2 + $0xc8] sm:$0xff]
  %v52 = vld [vmem:[%s2 + $0xd0] sm:$0xff]
  %v53 = vld [vmem:[%s2 + $0xd8] sm:$0xff]
  %v54 = vld [vmem:[%s2 + $0xe0] sm:$0xff]
  %v55 = vld [vmem:[%s2 + $0xe8] sm:$0xff]
  %v56 = vld [vmem:[%s2 + $0xf0] sm:$0xff]
  %v57 = vld [vmem:[%s2 + $0xf8] sm:$0xff]
  %v58 = vld [vmem:[%s2 + $0x100] sm:$0xff]
  %v59 = vld [vmem:[%s2 + $0x108] sm:$0xff]
  %v60 = vld [vmem:[%s2 + $0x110] sm:$0xff]
  %v61 = vld [vmem:[%s2 + $0x118] sm:$0xff]
  %v62 = vld [vmem:[%s2 + $0x120] sm:$0xff]
  %v63 = vld [vmem:[%s2 + $0x128] sm:$0xff]
  %v64 = vld [vmem:[%s2 + $0x130] sm:$0xff]
  %v65 = vld [vmem:[%s2 + $0x138] sm:$0xff]
  %v66 = vld [vmem:[%s2 + $0x140] sm:$0xff]
  %v67 = vld [vmem:[%s2 + $0x148] sm:$0xff]
  %v68 = vld [vmem:[%s2 + $0x150] sm:$0xff]
  %v69 = vld [vmem:[%s2 + $0x158] sm:$0xff]
  %v70 = vld [vmem:[%s2 + $0x160] sm:$0xff]
  %v71 = vld [vmem:[%s2 + $0x168] sm:$0xff]
  %v72 = vld [vmem:[%s2 + $0x170] sm:$0xff]
  %v73 = vld [vmem:[%s2 + $0x178] sm:$0xff]
  %v74 = vld [vmem:[%s2 + $0x180] sm:$0xff]
  %v75 = vld [vmem:[%s2 + $0x188] sm:$0xff]
  %v76 = vld [vmem:[%s2 + $0x190] sm:$0xff]
  %v77 = vld [vmem:[%s2 + $0x198] sm:$0xff]
  %v78 = vld [vmem:[%s2 + $0x1a0] sm:$0xff]
  %v79 = vld [vmem:[%s2 + $0x1a8] sm:$0xff]
  %v80 = vld [vmem:[%s2 + $0x1b0] sm:$0xff]
  %v81 = vld [vmem:[%s2 + $0x1b8] sm:$0xff]
  %v82 = vld [vmem:[%s2 + $0x1c0] sm:$0xff]
  %v83 = vld [vmem:[%s2 + $0x1c8] sm:$0xff]
  %v84 = vld [vmem:[%s2 + $0x1d0] sm:$0xff]
  %v85 = vld [vmem:[%s2 + $0x1d8] sm:$0xff]
  %v86 = vld [vmem:[%s2 + $0x1e0] sm:$0xff]
  %v87 = vld [vmem:[%s2 + $0x1e8] sm:$0xff]
  %v88 = vld [vmem:[%s2 + $0x1f0] sm:$0xff]
  %v89 = vld [vmem:[%s2 + $0x1f8] sm:$0xff]
  %v90 = vld [vmem:[%s2 + $0x200] sm:$0xff]
  %v91 = vld [vmem:[%s2 + $0x208] sm:$0xff]
  %v92 = vld [vmem:[%s2 + $0x210] sm:$0xff]
  %v93 = vld [vmem:[%s2 + $0x218] sm:$0xff]
  %v94 = vld [vmem:[%s2 + $0x220] sm:$0xff]
  %v95 = vld [vmem:[%s2 + $0x228] sm:$0xff]
  %v96 = vld [vmem:[%s2 + $0x230] sm:$0xff]
  %v97 = vld [vmem:[%s2 + $0x238] sm:$0xff]
  %v98 = vld [vmem:[%s2 + $0x240] sm:$0xff]
  %v99 = vld [vmem:[%s2 + $0x248] sm:$0xff]
  %v100 = vld [vmem:[%s2 + $0x250] sm:$0xff]
  %v101 = vld [vmem:[%s2 + $0x258] sm:$0xff]
  %v102 = vld [vmem:[%s2 + $0x260] sm:$0xff]
  %v103 = vld [vmem:[%s2 + $0x268] sm:$0xff]
  %v104 = vld [vmem:[%s2 + $0x270] sm:$0xff]
  %v105 = vld [vmem:[%s2 + $0x278] sm:$0xff]
  %v106 = vld [vmem:[%s2 + $0x280] sm:$0xff]
  %v107 = vld [vmem:[%s2 + $0x288] sm:$0xff]
  %v108 = vld [vmem:[%s2 + $0x290] sm:$0xff]
  %v109 = vld [vmem:[%s2 + $0x298] sm:$0xff]
  %v110 = vld [vmem:[%s2 + $0x2a0] sm:$0xff]
  %v111 = vld [vmem:[%s2 + $0x2a8] sm:$0xff]
  %v112 = vld [vmem:[%s2 + $0x2b0] sm:$0xff]
  %v113 = vld [vmem:[%s2 + $0x2b8] sm:$0xff]
  %v114 = vld [vmem:[%s2 + $0x2c0] sm:$0xff]
  %v115 = vld [vmem:[%s2 + $0x2c8] sm:$0xff]
  %v116 = vld [vmem:[%s2 + $0x2d0] sm:$0xff]
  %v117 = vld [vmem:[%s2 + $0x2d8] sm:$0xff]
  %v118 = vld [vmem:[%s2 + $0x2e0] sm:$0xff]
  %v119 = vld [vmem:[%s2 + $0x2e8] sm:$0xff]
  %v120 = vld [vmem:[%s2 + $0x2f0] sm:$0xff]
  %v121 = vld [vmem:[%s2 + $0x2f8] sm:$0xff]
  %v122 = vld [vmem:[%s2 + $0x300] sm:$0xff]
  %v123 = vld [vmem:[%s2 + $0x308] sm:$0xff]
  %v124 = vld [vmem:[%s2 + $0x310] sm:$0xff]
  %v125 = vld [vmem:[%s2 + $0x318] sm:$0xff]
  %v126 = vld [vmem:[%s2 + $0x320] sm:$0xff]
  %v127 = vld [vmem:[%s2 + $0x328] sm:$0xff]
  %v128 = vld [vmem:[%s2 + $0x330] sm:$0xff]
  %v129 = vld [vmem:[%s2 + $0x338] sm:$0xff]
  %v130 = vld [vmem:[%s2 + $0x340] sm:$0xff]
  %v131 = vld [vmem:[%s2 + $0x348] sm:$0xff]
  %v132 = vld [vmem:[%s2 + $0x350] sm:$0xff]
  %v133 = vld [vmem:[%s2 + $0x358] sm:$0xff]
  %v134 = vld [vmem:[%s2 + $0x360] sm:$0xff]
  %v135 = vld [vmem:[%s2 + $0x368] sm:$0xff]
  %v136 = vld [vmem:[%s2 + $0x370] sm:$0xff]
  %v137 = vld [vmem:[%s2 + $0x378] sm:$0xff]
  %v138 = vld [vmem:[%s2 + $0x380] sm:$0xff]
  %v139 = vld [vmem:[%s2 + $0x388] sm:$0xff]
  %v140 = vld [vmem:[%s2 + $0x390] sm:$0xff]
  %v141 = vld [vmem:[%s2 + $0x398] sm:$0xff]
  %v142 = vld [vmem:[%s2 + $0x3a0] sm:$0xff]
  %v143 = vld [vmem:[%s2 + $0x3a8] sm:$0xff]
  %v144 = vld [vmem:[%s2 + $0x3b0] sm:$0xff]
  %v145 = vld [vmem:[%s2 + $0x3b8] sm:$0xff]
  %v146 = vld [vmem:[%s2 + $0x3c0] sm:$0xff]
  %v147 = vld [vmem:[%s2 + $0x3c8] sm:$0xff]
  %v148 = vld [vmem:[%s2 + $0x3d0] sm:$0xff]
  %v149 = vld [vmem:[%s2 + $0x3d8] sm:$0xff]
  %v150 = vld [vmem:[%s2 + $0x3e0] sm:$0xff]
  %v151 = vld [vmem:[%s2 + $0x3e8] sm:$0xff]
  %v152 = vld [vmem:[%s2 + $0x3f0] sm:$0xff]
  %v153 = vld [vmem:[%s2 + $0x3f8] sm:$0xff]
  %v166 = vunpack.c.l.b16 %v14
  %v167 = vunpack.c.h.b16 %v14
  %v168 = vunpack.c.l.b16 %v15
  %v169 = vunpack.c.h.b16 %v15
  %v170 = vunpack.c.l.b16 %v16
  %v171 = vunpack.c.h.b16 %v16
  %v172 = vunpack.c.l.b16 %v17
  %v173 = vunpack.c.h.b16 %v17
  %v174 = vunpack.c.l.b16 %v18
  %v175 = vunpack.c.h.b16 %v18
  %v176 = vunpack.c.l.b16 %v19
  %v177 = vunpack.c.h.b16 %v19
  %v178 = vunpack.c.l.b16 %v20
  %v179 = vunpack.c.h.b16 %v20
  %v180 = vunpack.c.l.b16 %v21
  %v181 = vunpack.c.h.b16 %v21
  %v182 = vunpack.c.l.b16 %v22
  %v183 = vunpack.c.h.b16 %v22
  %v184 = vunpack.c.l.b16 %v23
  %v185 = vunpack.c.h.b16 %v23
  %v186 = vunpack.c.l.b16 %v24
  %v187 = vunpack.c.h.b16 %v24
  %v188 = vunpack.c.l.b16 %v25
  %v189 = vunpack.c.h.b16 %v25
  %v190 = vpack.c.b16 %v170, %v166
  %v191 = vpack.c.b16 %v171, %v167
  %v192 = vpack.c.b16 %v172, %v168
  %v193 = vpack.c.b16 %v173, %v169
  %v194 = vpack.c.b16 %v178, %v174
  %v195 = vpack.c.b16 %v179, %v175
  %v196 = vpack.c.b16 %v180, %v176
  %v197 = vpack.c.b16 %v181, %v177
  %v198 = vpack.c.b16 %v186, %v182
  %v199 = vpack.c.b16 %v187, %v183
  %v200 = vpack.c.b16 %v188, %v184
  %v201 = vpack.c.b16 %v189, %v185
  %v342 = vunpack.c.l.b16 %v26
  %v343 = vunpack.c.h.b16 %v26
  %v344 = vunpack.c.l.b16 %v27
  %v345 = vunpack.c.h.b16 %v27
  %v346 = vunpack.c.l.b16 %v28
  %v347 = vunpack.c.h.b16 %v28
  %v348 = vunpack.c.l.b16 %v29
  %v349 = vunpack.c.h.b16 %v29
  %v350 = vunpack.c.l.b16 %v30
  %v351 = vunpack.c.h.b16 %v30
  %v352 = vunpack.c.l.b16 %v31
  %v353 = vunpack.c.h.b16 %v31
  %v354 = vunpack.c.l.b16 %v32
  %v355 = vunpack.c.h.b16 %v32
  %v356 = vunpack.c.l.b16 %v33
  %v357 = vunpack.c.h.b16 %v33
  %v358 = vunpack.c.l.b16 %v34
  %v359 = vunpack.c.h.b16 %v34
  %v360 = vunpack.c.l.b16 %v35
  %v361 = vunpack.c.h.b16 %v35
  %v362 = vunpack.c.l.b16 %v36
  %v363 = vunpack.c.h.b16 %v36
  %v364 = vunpack.c.l.b16 %v37
  %v365 = vunpack.c.h.b16 %v37
  %v366 = vunpack.c.l.b16 %v38
  %v367 = vunpack.c.h.b16 %v38
  %v368 = vunpack.c.l.b16 %v39
  %v369 = vunpack.c.h.b16 %v39
  %v370 = vunpack.c.l.b16 %v40
  %v371 = vunpack.c.h.b16 %v40
  %v372 = vunpack.c.l.b16 %v41
  %v373 = vunpack.c.h.b16 %v41
  %v374 = vunpack.c.l.b16 %v42
  %v375 = vunpack.c.h.b16 %v42
  %v376 = vunpack.c.l.b16 %v43
  %v377 = vunpack.c.h.b16 %v43
  %v378 = vunpack.c.l.b16 %v44
  %v379 = vunpack.c.h.b16 %v44
  %v380 = vunpack.c.l.b16 %v45
  %v381 = vunpack.c.h.b16 %v45
  %v382 = vunpack.c.l.b16 %v46
  %v383 = vunpack.c.h.b16 %v46
  %v384 = vunpack.c.l.b16 %v47
  %v385 = vunpack.c.h.b16 %v47
  %v386 = vunpack.c.l.b16 %v48
  %v387 = vunpack.c.h.b16 %v48
  %v388 = vunpack.c.l.b16 %v49
  %v389 = vunpack.c.h.b16 %v49
  %v390 = vunpack.c.l.b16 %v50
  %v391 = vunpack.c.h.b16 %v50
  %v392 = vunpack.c.l.b16 %v51
  %v393 = vunpack.c.h.b16 %v51
  %v394 = vunpack.c.l.b16 %v52
  %v395 = vunpack.c.h.b16 %v52
  %v396 = vunpack.c.l.b16 %v53
  %v397 = vunpack.c.h.b16 %v53
  %v398 = vunpack.c.l.b16 %v54
  %v399 = vunpack.c.h.b16 %v54
  %v400 = vunpack.c.l.b16 %v55
  %v401 = vunpack.c.h.b16 %v55
  %v402 = vunpack.c.l.b16 %v56
  %v403 = vunpack.c.h.b16 %v56
  %v404 = vunpack.c.l.b16 %v57
  %v405 = vunpack.c.h.b16 %v57
  %v406 = vunpack.c.l.b16 %v58
  %v407 = vunpack.c.h.b16 %v58
  %v408 = vunpack.c.l.b16 %v59
  %v409 = vunpack.c.h.b16 %v59
  %v410 = vunpack.c.l.b16 %v60
  %v411 = vunpack.c.h.b16 %v60
  %v412 = vunpack.c.l.b16 %v61
  %v413 = vunpack.c.h.b16 %v61
  %v414 = vunpack.c.l.b16 %v62
  %v415 = vunpack.c.h.b16 %v62
  %v416 = vunpack.c.l.b16 %v63
  %v417 = vunpack.c.h.b16 %v63
  %v418 = vunpack.c.l.b16 %v64
  %v419 = vunpack.c.h.b16 %v64
  %v420 = vunpack.c.l.b16 %v65
  %v421 = vunpack.c.h.b16 %v65
  %v422 = vunpack.c.l.b16 %v66
  %v423 = vunpack.c.h.b16 %v66
  %v424 = vunpack.c.l.b16 %v67
  %v425 = vunpack.c.h.b16 %v67
  %v426 = vunpack.c.l.b16 %v68
  %v427 = vunpack.c.h.b16 %v68
  %v428 = vunpack.c.l.b16 %v69
  %v429 = vunpack.c.h.b16 %v69
  %v430 = vunpack.c.l.b16 %v70
  %v431 = vunpack.c.h.b16 %v70
  %v432 = vunpack.c.l.b16 %v71
  %v433 = vunpack.c.h.b16 %v71
  %v434 = vunpack.c.l.b16 %v72
  %v435 = vunpack.c.h.b16 %v72
  %v436 = vunpack.c.l.b16 %v73
  %v437 = vunpack.c.h.b16 %v73
  %v438 = vunpack.c.l.b16 %v74
  %v439 = vunpack.c.h.b16 %v74
  %v440 = vunpack.c.l.b16 %v75
  %v441 = vunpack.c.h.b16 %v75
  %v442 = vunpack.c.l.b16 %v76
  %v443 = vunpack.c.h.b16 %v76
  %v444 = vunpack.c.l.b16 %v77
  %v445 = vunpack.c.h.b16 %v77
  %v446 = vunpack.c.l.b16 %v78
  %v447 = vunpack.c.h.b16 %v78
  %v448 = vunpack.c.l.b16 %v79
  %v449 = vunpack.c.h.b16 %v79
  %v450 = vunpack.c.l.b16 %v80
  %v451 = vunpack.c.h.b16 %v80
  %v452 = vunpack.c.l.b16 %v81
  %v453 = vunpack.c.h.b16 %v81
  %v454 = vunpack.c.l.b16 %v82
  %v455 = vunpack.c.h.b16 %v82
  %v456 = vunpack.c.l.b16 %v83
  %v457 = vunpack.c.h.b16 %v83
  %v458 = vunpack.c.l.b16 %v84
  %v459 = vunpack.c.h.b16 %v84
  %v460 = vunpack.c.l.b16 %v85
  %v461 = vunpack.c.h.b16 %v85
  %v462 = vunpack.c.l.b16 %v86
  %v463 = vunpack.c.h.b16 %v86
  %v464 = vunpack.c.l.b16 %v87
  %v465 = vunpack.c.h.b16 %v87
  %v466 = vunpack.c.l.b16 %v88
  %v467 = vunpack.c.h.b16 %v88
  %v468 = vunpack.c.l.b16 %v89
  %v469 = vunpack.c.h.b16 %v89
  %v470 = vunpack.c.l.b16 %v90
  %v471 = vunpack.c.h.b16 %v90
  %v472 = vunpack.c.l.b16 %v91
  %v473 = vunpack.c.h.b16 %v91
  %v474 = vunpack.c.l.b16 %v92
  %v475 = vunpack.c.h.b16 %v92
  %v476 = vunpack.c.l.b16 %v93
  %v477 = vunpack.c.h.b16 %v93
  %v478 = vunpack.c.l.b16 %v94
  %v479 = vunpack.c.h.b16 %v94
  %v480 = vunpack.c.l.b16 %v95
  %v481 = vunpack.c.h.b16 %v95
  %v482 = vunpack.c.l.b16 %v96
  %v483 = vunpack.c.h.b16 %v96
  %v484 = vunpack.c.l.b16 %v97
  %v485 = vunpack.c.h.b16 %v97
  %v486 = vunpack.c.l.b16 %v98
  %v487 = vunpack.c.h.b16 %v98
  %v488 = vunpack.c.l.b16 %v99
  %v489 = vunpack.c.h.b16 %v99
  %v490 = vunpack.c.l.b16 %v100
  %v491 = vunpack.c.h.b16 %v100
  %v492 = vunpack.c.l.b16 %v101
  %v493 = vunpack.c.h.b16 %v101
  %v494 = vunpack.c.l.b16 %v102
  %v495 = vunpack.c.h.b16 %v102
  %v496 = vunpack.c.l.b16 %v103
  %v497 = vunpack.c.h.b16 %v103
  %v498 = vunpack.c.l.b16 %v104
  %v499 = vunpack.c.h.b16 %v104
  %v500 = vunpack.c.l.b16 %v105
  %v501 = vunpack.c.h.b16 %v105
  %v502 = vunpack.c.l.b16 %v106
  %v503 = vunpack.c.h.b16 %v106
  %v504 = vunpack.c.l.b16 %v107
  %v505 = vunpack.c.h.b16 %v107
  %v506 = vunpack.c.l.b16 %v108
  %v507 = vunpack.c.h.b16 %v108
  %v508 = vunpack.c.l.b16 %v109
  %v509 = vunpack.c.h.b16 %v109
  %v510 = vunpack.c.l.b16 %v110
  %v511 = vunpack.c.h.b16 %v110
  %v512 = vunpack.c.l.b16 %v111
  %v513 = vunpack.c.h.b16 %v111
  %v514 = vunpack.c.l.b16 %v112
  %v515 = vunpack.c.h.b16 %v112
  %v516 = vunpack.c.l.b16 %v113
  %v517 = vunpack.c.h.b16 %v113
  %v518 = vunpack.c.l.b16 %v114
  %v519 = vunpack.c.h.b16 %v114
  %v520 = vunpack.c.l.b16 %v115
  %v521 = vunpack.c.h.b16 %v115
  %v522 = vunpack.c.l.b16 %v116
  %v523 = vunpack.c.h.b16 %v116
  %v524 = vunpack.c.l.b16 %v117
  %v525 = vunpack.c.h.b16 %v117
  %v526 = vunpack.c.l.b16 %v118
  %v527 = vunpack.c.h.b16 %v118
  %v528 = vunpack.c.l.b16 %v119
  %v529 = vunpack.c.h.b16 %v119
  %v530 = vunpack.c.l.b16 %v120
  %v531 = vunpack.c.h.b16 %v120
  %v532 = vunpack.c.l.b16 %v121
  %v533 = vunpack.c.h.b16 %v121
  %v534 = vunpack.c.l.b16 %v122
  %v535 = vunpack.c.h.b16 %v122
  %v536 = vunpack.c.l.b16 %v123
  %v537 = vunpack.c.h.b16 %v123
  %v538 = vunpack.c.l.b16 %v124
  %v539 = vunpack.c.h.b16 %v124
  %v540 = vunpack.c.l.b16 %v125
  %v541 = vunpack.c.h.b16 %v125
  %v542 = vunpack.c.l.b16 %v126
  %v543 = vunpack.c.h.b16 %v126
  %v544 = vunpack.c.l.b16 %v127
  %v545 = vunpack.c.h.b16 %v127
  %v546 = vunpack.c.l.b16 %v128
  %v547 = vunpack.c.h.b16 %v128
  %v548 = vunpack.c.l.b16 %v129
  %v549 = vunpack.c.h.b16 %v129
  %v550 = vunpack.c.l.b16 %v130
  %v551 = vunpack.c.h.b16 %v130
  %v552 = vunpack.c.l.b16 %v131
  %v553 = vunpack.c.h.b16 %v131
  %v554 = vunpack.c.l.b16 %v132
  %v555 = vunpack.c.h.b16 %v132
  %v556 = vunpack.c.l.b16 %v133
  %v557 = vunpack.c.h.b16 %v133
  %v558 = vunpack.c.l.b16 %v134
  %v559 = vunpack.c.h.b16 %v134
  %v560 = vunpack.c.l.b16 %v135
  %v561 = vunpack.c.h.b16 %v135
  %v562 = vunpack.c.l.b16 %v136
  %v563 = vunpack.c.h.b16 %v136
  %v564 = vunpack.c.l.b16 %v137
  %v565 = vunpack.c.h.b16 %v137
  %v566 = vunpack.c.l.b16 %v138
  %v567 = vunpack.c.h.b16 %v138
  %v568 = vunpack.c.l.b16 %v139
  %v569 = vunpack.c.h.b16 %v139
  %v570 = vunpack.c.l.b16 %v140
  %v571 = vunpack.c.h.b16 %v140
  %v572 = vunpack.c.l.b16 %v141
  %v573 = vunpack.c.h.b16 %v141
  %v574 = vunpack.c.l.b16 %v142
  %v575 = vunpack.c.h.b16 %v142
  %v576 = vunpack.c.l.b16 %v143
  %v577 = vunpack.c.h.b16 %v143
  %v578 = vunpack.c.l.b16 %v144
  %v579 = vunpack.c.h.b16 %v144
  %v580 = vunpack.c.l.b16 %v145
  %v581 = vunpack.c.h.b16 %v145
  %v582 = vunpack.c.l.b16 %v146
  %v583 = vunpack.c.h.b16 %v146
  %v584 = vunpack.c.l.b16 %v147
  %v585 = vunpack.c.h.b16 %v147
  %v586 = vunpack.c.l.b16 %v148
  %v587 = vunpack.c.h.b16 %v148
  %v588 = vunpack.c.l.b16 %v149
  %v589 = vunpack.c.h.b16 %v149
  %v590 = vunpack.c.l.b16 %v150
  %v591 = vunpack.c.h.b16 %v150
  %v592 = vunpack.c.l.b16 %v151
  %v593 = vunpack.c.h.b16 %v151
  %v594 = vunpack.c.l.b16 %v152
  %v595 = vunpack.c.h.b16 %v152
  %v596 = vunpack.c.l.b16 %v153
  %v597 = vunpack.c.h.b16 %v153
  %v598 = vpack.c.b16 %v346, %v342
  %v599 = vpack.c.b16 %v347, %v343
  %v600 = vpack.c.b16 %v348, %v344
  %v601 = vpack.c.b16 %v349, %v345
  %v602 = vpack.c.b16 %v354, %v350
  %v603 = vpack.c.b16 %v355, %v351
  %v604 = vpack.c.b16 %v356, %v352
  %v605 = vpack.c.b16 %v357, %v353
  %v606 = vpack.c.b16 %v362, %v358
  %v607 = vpack.c.b16 %v363, %v359
  %v608 = vpack.c.b16 %v364, %v360
  %v609 = vpack.c.b16 %v365, %v361
  %v610 = vpack.c.b16 %v370, %v366
  %v611 = vpack.c.b16 %v371, %v367
  %v612 = vpack.c.b16 %v372, %v368
  %v613 = vpack.c.b16 %v373, %v369
  %v614 = vpack.c.b16 %v378, %v374
  %v615 = vpack.c.b16 %v379, %v375
  %v616 = vpack.c.b16 %v380, %v376
  %v617 = vpack.c.b16 %v381, %v377
  %v618 = vpack.c.b16 %v386, %v382
  %v619 = vpack.c.b16 %v387, %v383
  %v620 = vpack.c.b16 %v388, %v384
  %v621 = vpack.c.b16 %v389, %v385
  %v622 = vpack.c.b16 %v394, %v390
  %v623 = vpack.c.b16 %v395, %v391
  %v624 = vpack.c.b16 %v396, %v392
  %v625 = vpack.c.b16 %v397, %v393
  %v626 = vpack.c.b16 %v402, %v398
  %v627 = vpack.c.b16 %v403, %v399
  %v628 = vpack.c.b16 %v404, %v400
  %v629 = vpack.c.b16 %v405, %v401
  %v630 = vpack.c.b16 %v410, %v406
  %v631 = vpack.c.b16 %v411, %v407
  %v632 = vpack.c.b16 %v412, %v408
  %v633 = vpack.c.b16 %v413, %v409
  %v634 = vpack.c.b16 %v418, %v414
  %v635 = vpack.c.b16 %v419, %v415
  %v636 = vpack.c.b16 %v420, %v416
  %v637 = vpack.c.b16 %v421, %v417
  %v638 = vpack.c.b16 %v426, %v422
  %v639 = vpack.c.b16 %v427, %v423
  %v640 = vpack.c.b16 %v428, %v424
  %v641 = vpack.c.b16 %v429, %v425
  %v642 = vpack.c.b16 %v434, %v430
  %v643 = vpack.c.b16 %v435, %v431
  %v644 = vpack.c.b16 %v436, %v432
  %v645 = vpack.c.b16 %v437, %v433
  %v646 = vpack.c.b16 %v442, %v438
  %v647 = vpack.c.b16 %v443, %v439
  %v648 = vpack.c.b16 %v444, %v440
  %v649 = vpack.c.b16 %v445, %v441
  %v650 = vpack.c.b16 %v450, %v446
  %v651 = vpack.c.b16 %v451, %v447
  %v652 = vpack.c.b16 %v452, %v448
  %v653 = vpack.c.b16 %v453, %v449
  %v654 = vpack.c.b16 %v458, %v454
  %v655 = vpack.c.b16 %v459, %v455
  %v656 = vpack.c.b16 %v460, %v456
  %v657 = vpack.c.b16 %v461, %v457
  %v658 = vpack.c.b16 %v466, %v462
  %v659 = vpack.c.b16 %v467, %v463
  %v660 = vpack.c.b16 %v468, %v464
  %v661 = vpack.c.b16 %v469, %v465
  %v662 = vpack.c.b16 %v474, %v470
  %v663 = vpack.c.b16 %v475, %v471
  %v664 = vpack.c.b16 %v476, %v472
  %v665 = vpack.c.b16 %v477, %v473
  %v666 = vpack.c.b16 %v482, %v478
  %v667 = vpack.c.b16 %v483, %v479
  %v668 = vpack.c.b16 %v484, %v480
  %v669 = vpack.c.b16 %v485, %v481
  %v670 = vpack.c.b16 %v490, %v486
  %v671 = vpack.c.b16 %v491, %v487
  %v672 = vpack.c.b16 %v492, %v488
  %v673 = vpack.c.b16 %v493, %v489
  %v674 = vpack.c.b16 %v498, %v494
  %v675 = vpack.c.b16 %v499, %v495
  %v676 = vpack.c.b16 %v500, %v496
  %v677 = vpack.c.b16 %v501, %v497
  %v678 = vpack.c.b16 %v506, %v502
  %v679 = vpack.c.b16 %v507, %v503
  %v680 = vpack.c.b16 %v508, %v504
  %v681 = vpack.c.b16 %v509, %v505
  %v682 = vpack.c.b16 %v514, %v510
  %v683 = vpack.c.b16 %v515, %v511
  %v684 = vpack.c.b16 %v516, %v512
  %v685 = vpack.c.b16 %v517, %v513
  %v686 = vpack.c.b16 %v522, %v518
  %v687 = vpack.c.b16 %v523, %v519
  %v688 = vpack.c.b16 %v524, %v520
  %v689 = vpack.c.b16 %v525, %v521
  %v690 = vpack.c.b16 %v530, %v526
  %v691 = vpack.c.b16 %v531, %v527
  %v692 = vpack.c.b16 %v532, %v528
  %v693 = vpack.c.b16 %v533, %v529
  %v694 = vpack.c.b16 %v538, %v534
  %v695 = vpack.c.b16 %v539, %v535
  %v696 = vpack.c.b16 %v540, %v536
  %v697 = vpack.c.b16 %v541, %v537
  %v698 = vpack.c.b16 %v546, %v542
  %v699 = vpack.c.b16 %v547, %v543
  %v700 = vpack.c.b16 %v548, %v544
  %v701 = vpack.c.b16 %v549, %v545
  %v702 = vpack.c.b16 %v554, %v550
  %v703 = vpack.c.b16 %v555, %v551
  %v704 = vpack.c.b16 %v556, %v552
  %v705 = vpack.c.b16 %v557, %v553
  %v706 = vpack.c.b16 %v562, %v558
  %v707 = vpack.c.b16 %v563, %v559
  %v708 = vpack.c.b16 %v564, %v560
  %v709 = vpack.c.b16 %v565, %v561
  %v710 = vpack.c.b16 %v570, %v566
  %v711 = vpack.c.b16 %v571, %v567
  %v712 = vpack.c.b16 %v572, %v568
  %v713 = vpack.c.b16 %v573, %v569
  %v714 = vpack.c.b16 %v578, %v574
  %v715 = vpack.c.b16 %v579, %v575
  %v716 = vpack.c.b16 %v580, %v576
  %v717 = vpack.c.b16 %v581, %v577
  %v718 = vpack.c.b16 %v586, %v582
  %v719 = vpack.c.b16 %v587, %v583
  %v720 = vpack.c.b16 %v588, %v584
  %v721 = vpack.c.b16 %v589, %v585
  %v722 = vpack.c.b16 %v594, %v590
  %v723 = vpack.c.b16 %v595, %v591
  %v724 = vpack.c.b16 %v596, %v592
  %v725 = vpack.c.b16 %v597, %v593
  %854 = vmatpush.bf16.msra.mxu0 %v626
  %855 = vmatpush.bf16.msra.mxu0 %v622
  %856 = vmatpush.bf16.msra.mxu0 %v618
  %857 = vmatpush.bf16.msra.mxu0 %v614
  %858 = vmatpush.bf16.msra.mxu0 %v610
  %859 = vmatpush.bf16.msra.mxu0 %v606
  %860 = vmatpush.bf16.msra.mxu0 %v602
  %861 = vmatpush.bf16.msra.mxu0 %v598
  %862 = vmatmul.bf16.gmra.mxu0 %v190
  %v863 = vpop.f32.mrf.mxu0
  %v864 = vadd.f32 0.0, %v863
  %v865 = vpop.f32.mrf.mxu0
  %v866 = vadd.f32 0.0, %v865
  %867 = vmatmul.bf16.gmra.mxu0 %v194
  %v868 = vpop.f32.mrf.mxu0
  %v869 = vadd.f32 0.0, %v868
  %v870 = vpop.f32.mrf.mxu0
  %v871 = vadd.f32 0.0, %v870
  %872 = vmatmul.bf16.gmra.mxu0 %v198
  %v873 = vpop.f32.mrf.mxu0
  %v874 = vadd.f32 0.0, %v873
  %v875 = vpop.f32.mrf.mxu0
  %v876 = vadd.f32 0.0, %v875
  %877 = vdwg.mxu0
  %878 = vmatpush.bf16.msra.mxu0 %v658
  %879 = vmatpush.bf16.msra.mxu0 %v654
  %880 = vmatpush.bf16.msra.mxu0 %v650
  %881 = vmatpush.bf16.msra.mxu0 %v646
  %882 = vmatpush.bf16.msra.mxu0 %v642
  %883 = vmatpush.bf16.msra.mxu0 %v638
  %884 = vmatpush.bf16.msra.mxu0 %v634
  %885 = vmatpush.bf16.msra.mxu0 %v630
  %886 = vmatmul.bf16.gmra.mxu0 %v191
  %v887 = vpop.f32.mrf.mxu0
  %v888 = vadd.f32 %v864, %v887
  %v889 = vpop.f32.mrf.mxu0
  %v890 = vadd.f32 %v866, %v889
  %891 = vmatmul.bf16.gmra.mxu0 %v195
  %v892 = vpop.f32.mrf.mxu0
  %v893 = vadd.f32 %v869, %v892
  %v894 = vpop.f32.mrf.mxu0
  %v895 = vadd.f32 %v871, %v894
  %896 = vmatmul.bf16.gmra.mxu0 %v199
  %v897 = vpop.f32.mrf.mxu0
  %v898 = vadd.f32 %v874, %v897
  %v899 = vpop.f32.mrf.mxu0
  %v900 = vadd.f32 %v876, %v899
  %901 = vdwg.mxu0
  %902 = vmatpush.bf16.msra.mxu0 %v690
  %903 = vmatpush.bf16.msra.mxu0 %v686
  %904 = vmatpush.bf16.msra.mxu0 %v682
  %905 = vmatpush.bf16.msra.mxu0 %v678
  %906 = vmatpush.bf16.msra.mxu0 %v674
  %907 = vmatpush.bf16.msra.mxu0 %v670
  %908 = vmatpush.bf16.msra.mxu0 %v666
  %909 = vmatpush.bf16.msra.mxu0 %v662
  %910 = vmatmul.bf16.gmra.mxu0 %v192
  %v911 = vpop.f32.mrf.mxu0
  %v912 = vadd.f32 %v888, %v911
  %v913 = vpop.f32.mrf.mxu0
  %v914 = vadd.f32 %v890, %v913
  %915 = vmatmul.bf16.gmra.mxu0 %v196
  %v916 = vpop.f32.mrf.mxu0
  %v917 = vadd.f32 %v893, %v916
  %v918 = vpop.f32.mrf.mxu0
  %v919 = vadd.f32 %v895, %v918
  %920 = vmatmul.bf16.gmra.mxu0 %v200
  %v921 = vpop.f32.mrf.mxu0
  %v922 = vadd.f32 %v898, %v921
  %v923 = vpop.f32.mrf.mxu0
  %v924 = vadd.f32 %v900, %v923
  %925 = vdwg.mxu0
  %926 = vmatpush.bf16.msra.mxu0 %v722
  %927 = vmatpush.bf16.msra.mxu0 %v718
  %928 = vmatpush.bf16.msra.mxu0 %v714
  %929 = vmatpush.bf16.msra.mxu0 %v710
  %930 = vmatpush.bf16.msra.mxu0 %v706
  %931 = vmatpush.bf16.msra.mxu0 %v702
  %932 = vmatpush.bf16.msra.mxu0 %v698
  %933 = vmatpush.bf16.msra.mxu0 %v694
  %934 = vmatmul.bf16.gmra.mxu0 %v193
  %v935 = vpop.f32.mrf.mxu0
  %v936 = vadd.f32 %v912, %v935
  %v937 = vpop.f32.mrf.mxu0
  %v938 = vadd.f32 %v914, %v937
  %939 = vmatmul.bf16.gmra.mxu0 %v197
  %v940 = vpop.f32.mrf.mxu0
  %v941 = vadd.f32 %v917, %v940
  %v942 = vpop.f32.mrf.mxu0
  %v943 = vadd.f32 %v919, %v942
  %944 = vmatmul.bf16.gmra.mxu0 %v201
  %v945 = vpop.f32.mrf.mxu0
  %v946 = vadd.f32 %v922, %v945
  %v947 = vpop.f32.mrf.mxu0
  %v948 = vadd.f32 %v924, %v947
  %949 = vdwg.mxu0
  %950 = vmatpush.bf16.msra.mxu0 %v627
  %951 = vmatpush.bf16.msra.mxu0 %v623
  %952 = vmatpush.bf16.msra.mxu0 %v619
  %953 = vmatpush.bf16.msra.mxu0 %v615
  %954 = vmatpush.bf16.msra.mxu0 %v611
  %955 = vmatpush.bf16.msra.mxu0 %v607
  %956 = vmatpush.bf16.msra.mxu0 %v603
  %957 = vmatpush.bf16.msra.mxu0 %v599
  %958 = vmatmul.bf16.gmra.mxu0 %v190
  %v959 = vpop.f32.mrf.mxu0
  %v960 = vadd.f32 0.0, %v959
  %v961 = vpop.f32.mrf.mxu0
  %v962 = vadd.f32 0.0, %v961
  %963 = vmatmul.bf16.gmra.mxu0 %v194
  %v964 = vpop.f32.mrf.mxu0
  %v965 = vadd.f32 0.0, %v964
  %v966 = vpop.f32.mrf.mxu0
  %v967 = vadd.f32 0.0, %v966
  %968 = vmatmul.bf16.gmra.mxu0 %v198
  %v969 = vpop.f32.mrf.mxu0
  %v970 = vadd.f32 0.0, %v969
  %v971 = vpop.f32.mrf.mxu0
  %v972 = vadd.f32 0.0, %v971
  %973 = vdwg.mxu0
  %974 = vmatpush.bf16.msra.mxu0 %v659
  %975 = vmatpush.bf16.msra.mxu0 %v655
  %976 = vmatpush.bf16.msra.mxu0 %v651
  %977 = vmatpush.bf16.msra.mxu0 %v647
  %978 = vmatpush.bf16.msra.mxu0 %v643
  %979 = vmatpush.bf16.msra.mxu0 %v639
  %980 = vmatpush.bf16.msra.mxu0 %v635
  %981 = vmatpush.bf16.msra.mxu0 %v631
  %982 = vmatmul.bf16.gmra.mxu0 %v191
  %v983 = vpop.f32.mrf.mxu0
  %v984 = vadd.f32 %v960, %v983
  %v985 = vpop.f32.mrf.mxu0
  %v986 = vadd.f32 %v962, %v985
  %987 = vmatmul.bf16.gmra.mxu0 %v195
  %v988 = vpop.f32.mrf.mxu0
  %v989 = vadd.f32 %v965, %v988
  %v990 = vpop.f32.mrf.mxu0
  %v991 = vadd.f32 %v967, %v990
  %992 = vmatmul.bf16.gmra.mxu0 %v199
  %v993 = vpop.f32.mrf.mxu0
  %v994 = vadd.f32 %v970, %v993
  %v995 = vpop.f32.mrf.mxu0
  %v996 = vadd.f32 %v972, %v995
  %997 = vdwg.mxu0
  %998 = vmatpush.bf16.msra.mxu0 %v691
  %999 = vmatpush.bf16.msra.mxu0 %v687
  %1000 = vmatpush.bf16.msra.mxu0 %v683
  %1001 = vmatpush.bf16.msra.mxu0 %v679
  %1002 = vmatpush.bf16.msra.mxu0 %v675
  %1003 = vmatpush.bf16.msra.mxu0 %v671
  %1004 = vmatpush.bf16.msra.mxu0 %v667
  %1005 = vmatpush.bf16.msra.mxu0 %v663
  %1006 = vmatmul.bf16.gmra.mxu0 %v192
  %v1007 = vpop.f32.mrf.mxu0
  %v1008 = vadd.f32 %v984, %v1007
  %v1009 = vpop.f32.mrf.mxu0
  %v1010 = vadd.f32 %v986, %v1009
  %1011 = vmatmul.bf16.gmra.mxu0 %v196
  %v1012 = vpop.f32.mrf.mxu0
  %v1013 = vadd.f32 %v989, %v1012
  %v1014 = vpop.f32.mrf.mxu0
  %v1015 = vadd.f32 %v991, %v1014
  %1016 = vmatmul.bf16.gmra.mxu0 %v200
  %v1017 = vpop.f32.mrf.mxu0
  %v1018 = vadd.f32 %v994, %v1017
  %v1019 = vpop.f32.mrf.mxu0
  %v1020 = vadd.f32 %v996, %v1019
  %1021 = vdwg.mxu0
  %1022 = vmatpush.bf16.msra.mxu0 %v723
  %1023 = vmatpush.bf16.msra.mxu0 %v719
  %1024 = vmatpush.bf16.msra.mxu0 %v715
  %1025 = vmatpush.bf16.msra.mxu0 %v711
  %1026 = vmatpush.bf16.msra.mxu0 %v707
  %1027 = vmatpush.bf16.msra.mxu0 %v703
  %1028 = vmatpush.bf16.msra.mxu0 %v699
  %1029 = vmatpush.bf16.msra.mxu0 %v695
  %1030 = vmatmul.bf16.gmra.mxu0 %v193
  %v1031 = vpop.f32.mrf.mxu0
  %v1032 = vadd.f32 %v1008, %v1031
  %v1033 = vpop.f32.mrf.mxu0
  %v1034 = vadd.f32 %v1010, %v1033
  %1035 = vmatmul.bf16.gmra.mxu0 %v197
  %v1036 = vpop.f32.mrf.mxu0
  %v1037 = vadd.f32 %v1013, %v1036
  %v1038 = vpop.f32.mrf.mxu0
  %v1039 = vadd.f32 %v1015, %v1038
  %1040 = vmatmul.bf16.gmra.mxu0 %v201
  %v1041 = vpop.f32.mrf.mxu0
  %v1042 = vadd.f32 %v1018, %v1041
  %v1043 = vpop.f32.mrf.mxu0
  %v1044 = vadd.f32 %v1020, %v1043
  %1045 = vdwg.mxu0
  %1046 = vmatpush.bf16.msra.mxu0 %v628
  %1047 = vmatpush.bf16.msra.mxu0 %v624
  %1048 = vmatpush.bf16.msra.mxu0 %v620
  %1049 = vmatpush.bf16.msra.mxu0 %v616
  %1050 = vmatpush.bf16.msra.mxu0 %v612
  %1051 = vmatpush.bf16.msra.mxu0 %v608
  %1052 = vmatpush.bf16.msra.mxu0 %v604
  %1053 = vmatpush.bf16.msra.mxu0 %v600
  %1054 = vmatmul.bf16.gmra.mxu0 %v190
  %v1055 = vpop.f32.mrf.mxu0
  %v1056 = vadd.f32 0.0, %v1055
  %v1057 = vpop.f32.mrf.mxu0
  %v1058 = vadd.f32 0.0, %v1057
  %1059 = vmatmul.bf16.gmra.mxu0 %v194
  %v1060 = vpop.f32.mrf.mxu0
  %v1061 = vadd.f32 0.0, %v1060
  %v1062 = vpop.f32.mrf.mxu0
  %v1063 = vadd.f32 0.0, %v1062
  %1064 = vmatmul.bf16.gmra.mxu0 %v198
  %v1065 = vpop.f32.mrf.mxu0
  %v1066 = vadd.f32 0.0, %v1065
  %v1067 = vpop.f32.mrf.mxu0
  %v1068 = vadd.f32 0.0, %v1067
  %1069 = vdwg.mxu0
  %1070 = vmatpush.bf16.msra.mxu0 %v660
  %1071 = vmatpush.bf16.msra.mxu0 %v656
  %1072 = vmatpush.bf16.msra.mxu0 %v652
  %1073 = vmatpush.bf16.msra.mxu0 %v648
  %1074 = vmatpush.bf16.msra.mxu0 %v644
  %1075 = vmatpush.bf16.msra.mxu0 %v640
  %1076 = vmatpush.bf16.msra.mxu0 %v636
  %1077 = vmatpush.bf16.msra.mxu0 %v632
  %1078 = vmatmul.bf16.gmra.mxu0 %v191
  %v1079 = vpop.f32.mrf.mxu0
  %v1080 = vadd.f32 %v1056, %v1079
  %v1081 = vpop.f32.mrf.mxu0
  %v1082 = vadd.f32 %v1058, %v1081
  %1083 = vmatmul.bf16.gmra.mxu0 %v195
  %v1084 = vpop.f32.mrf.mxu0
  %v1085 = vadd.f32 %v1061, %v1084
  %v1086 = vpop.f32.mrf.mxu0
  %v1087 = vadd.f32 %v1063, %v1086
  %1088 = vmatmul.bf16.gmra.mxu0 %v199
  %v1089 = vpop.f32.mrf.mxu0
  %v1090 = vadd.f32 %v1066, %v1089
  %v1091 = vpop.f32.mrf.mxu0
  %v1092 = vadd.f32 %v1068, %v1091
  %1093 = vdwg.mxu0
  %1094 = vmatpush.bf16.msra.mxu0 %v692
  %1095 = vmatpush.bf16.msra.mxu0 %v688
  %1096 = vmatpush.bf16.msra.mxu0 %v684
  %1097 = vmatpush.bf16.msra.mxu0 %v680
  %1098 = vmatpush.bf16.msra.mxu0 %v676
  %1099 = vmatpush.bf16.msra.mxu0 %v672
  %1100 = vmatpush.bf16.msra.mxu0 %v668
  %1101 = vmatpush.bf16.msra.mxu0 %v664
  %1102 = vmatmul.bf16.gmra.mxu0 %v192
  %v1103 = vpop.f32.mrf.mxu0
  %v1104 = vadd.f32 %v1080, %v1103
  %v1105 = vpop.f32.mrf.mxu0
  %v1106 = vadd.f32 %v1082, %v1105
  %1107 = vmatmul.bf16.gmra.mxu0 %v196
  %v1108 = vpop.f32.mrf.mxu0
  %v1109 = vadd.f32 %v1085, %v1108
  %v1110 = vpop.f32.mrf.mxu0
  %v1111 = vadd.f32 %v1087, %v1110
  %1112 = vmatmul.bf16.gmra.mxu0 %v200
  %v1113 = vpop.f32.mrf.mxu0
  %v1114 = vadd.f32 %v1090, %v1113
  %v1115 = vpop.f32.mrf.mxu0
  %v1116 = vadd.f32 %v1092, %v1115
  %1117 = vdwg.mxu0
  %1118 = vmatpush.bf16.msra.mxu0 %v724
  %1119 = vmatpush.bf16.msra.mxu0 %v720
  %1120 = vmatpush.bf16.msra.mxu0 %v716
  %1121 = vmatpush.bf16.msra.mxu0 %v712
  %1122 = vmatpush.bf16.msra.mxu0 %v708
  %1123 = vmatpush.bf16.msra.mxu0 %v704
  %1124 = vmatpush.bf16.msra.mxu0 %v700
  %1125 = vmatpush.bf16.msra.mxu0 %v696
  %1126 = vmatmul.bf16.gmra.mxu0 %v193
  %v1127 = vpop.f32.mrf.mxu0
  %v1128 = vadd.f32 %v1104, %v1127
  %v1129 = vpop.f32.mrf.mxu0
  %v1130 = vadd.f32 %v1106, %v1129
  %1131 = vmatmul.bf16.gmra.mxu0 %v197
  %v1132 = vpop.f32.mrf.mxu0
  %v1133 = vadd.f32 %v1109, %v1132
  %v1134 = vpop.f32.mrf.mxu0
  %v1135 = vadd.f32 %v1111, %v1134
  %1136 = vmatmul.bf16.gmra.mxu0 %v201
  %v1137 = vpop.f32.mrf.mxu0
  %v1138 = vadd.f32 %v1114, %v1137
  %v1139 = vpop.f32.mrf.mxu0
  %v1140 = vadd.f32 %v1116, %v1139
  %1141 = vdwg.mxu0
  %1142 = vmatpush.bf16.msra.mxu0 %v629
  %1143 = vmatpush.bf16.msra.mxu0 %v625
  %1144 = vmatpush.bf16.msra.mxu0 %v621
  %1145 = vmatpush.bf16.msra.mxu0 %v617
  %1146 = vmatpush.bf16.msra.mxu0 %v613
  %1147 = vmatpush.bf16.msra.mxu0 %v609
  %1148 = vmatpush.bf16.msra.mxu0 %v605
  %1149 = vmatpush.bf16.msra.mxu0 %v601
  %1150 = vmatmul.bf16.gmra.mxu0 %v190
  %v1151 = vpop.f32.mrf.mxu0
  %v1152 = vadd.f32 0.0, %v1151
  %v1153 = vpop.f32.mrf.mxu0
  %v1154 = vadd.f32 0.0, %v1153
  %1155 = vmatmul.bf16.gmra.mxu0 %v194
  %v1156 = vpop.f32.mrf.mxu0
  %v1157 = vadd.f32 0.0, %v1156
  %v1158 = vpop.f32.mrf.mxu0
  %v1159 = vadd.f32 0.0, %v1158
  %1160 = vmatmul.bf16.gmra.mxu0 %v198
  %v1161 = vpop.f32.mrf.mxu0
  %v1162 = vadd.f32 0.0, %v1161
  %v1163 = vpop.f32.mrf.mxu0
  %v1164 = vadd.f32 0.0, %v1163
  %1165 = vdwg.mxu0
  %1166 = vmatpush.bf16.msra.mxu0 %v661
  %1167 = vmatpush.bf16.msra.mxu0 %v657
  %1168 = vmatpush.bf16.msra.mxu0 %v653
  %1169 = vmatpush.bf16.msra.mxu0 %v649
  %1170 = vmatpush.bf16.msra.mxu0 %v645
  %1171 = vmatpush.bf16.msra.mxu0 %v641
  %1172 = vmatpush.bf16.msra.mxu0 %v637
  %1173 = vmatpush.bf16.msra.mxu0 %v633
  %1174 = vmatmul.bf16.gmra.mxu0 %v191
  %v1175 = vpop.f32.mrf.mxu0
  %v1176 = vadd.f32 %v1152, %v1175
  %v1177 = vpop.f32.mrf.mxu0
  %v1178 = vadd.f32 %v1154, %v1177
  %1179 = vmatmul.bf16.gmra.mxu0 %v195
  %v1180 = vpop.f32.mrf.mxu0
  %v1181 = vadd.f32 %v1157, %v1180
  %v1182 = vpop.f32.mrf.mxu0
  %v1183 = vadd.f32 %v1159, %v1182
  %1184 = vmatmul.bf16.gmra.mxu0 %v199
  %v1185 = vpop.f32.mrf.mxu0
  %v1186 = vadd.f32 %v1162, %v1185
  %v1187 = vpop.f32.mrf.mxu0
  %v1188 = vadd.f32 %v1164, %v1187
  %1189 = vdwg.mxu0
  %1190 = vmatpush.bf16.msra.mxu0 %v693
  %1191 = vmatpush.bf16.msra.mxu0 %v689
  %1192 = vmatpush.bf16.msra.mxu0 %v685
  %1193 = vmatpush.bf16.msra.mxu0 %v681
  %1194 = vmatpush.bf16.msra.mxu0 %v677
  %1195 = vmatpush.bf16.msra.mxu0 %v673
  %1196 = vmatpush.bf16.msra.mxu0 %v669
  %1197 = vmatpush.bf16.msra.mxu0 %v665
  %1198 = vmatmul.bf16.gmra.mxu0 %v192
  %v1199 = vpop.f32.mrf.mxu0
  %v1200 = vadd.f32 %v1176, %v1199
  %v1201 = vpop.f32.mrf.mxu0
  %v1202 = vadd.f32 %v1178, %v1201
  %1203 = vmatmul.bf16.gmra.mxu0 %v196
  %v1204 = vpop.f32.mrf.mxu0
  %v1205 = vadd.f32 %v1181, %v1204
  %v1206 = vpop.f32.mrf.mxu0
  %v1207 = vadd.f32 %v1183, %v1206
  %1208 = vmatmul.bf16.gmra.mxu0 %v200
  %v1209 = vpop.f32.mrf.mxu0
  %v1210 = vadd.f32 %v1186, %v1209
  %v1211 = vpop.f32.mrf.mxu0
  %v1212 = vadd.f32 %v1188, %v1211
  %1213 = vdwg.mxu0
  %1214 = vmatpush.bf16.msra.mxu0 %v725
  %1215 = vmatpush.bf16.msra.mxu0 %v721
  %1216 = vmatpush.bf16.msra.mxu0 %v717
  %1217 = vmatpush.bf16.msra.mxu0 %v713
  %1218 = vmatpush.bf16.msra.mxu0 %v709
  %1219 = vmatpush.bf16.msra.mxu0 %v705
  %1220 = vmatpush.bf16.msra.mxu0 %v701
  %1221 = vmatpush.bf16.msra.mxu0 %v697
  %1222 = vmatmul.bf16.gmra.mxu0 %v193
  %v1223 = vpop.f32.mrf.mxu0
  %v1224 = vadd.f32 %v1200, %v1223
  %v1225 = vpop.f32.mrf.mxu0
  %v1226 = vadd.f32 %v1202, %v1225
  %1227 = vmatmul.bf16.gmra.mxu0 %v197
  %v1228 = vpop.f32.mrf.mxu0
  %v1229 = vadd.f32 %v1205, %v1228
  %v1230 = vpop.f32.mrf.mxu0
  %v1231 = vadd.f32 %v1207, %v1230
  %1232 = vmatmul.bf16.gmra.mxu0 %v201
  %v1233 = vpop.f32.mrf.mxu0
  %v1234 = vadd.f32 %v1210, %v1233
  %v1235 = vpop.f32.mrf.mxu0
  %v1236 = vadd.f32 %v1212, %v1235
  %1237 = vdwg.mxu0
  %v1238 = vmax.f32 %v936, %v1032
  %v1239 = vmax.f32 %v938, %v1034
  %v1240 = vmax.f32 %v941, %v1037
  %v1241 = vmax.f32 %v943, %v1039
  %v1242 = vmax.f32 %v946, %v1042
  %v1243 = vmax.f32 %v948, %v1044
  %v1244 = vmax.f32 %v1128, %v1224
  %v1245 = vmax.f32 %v1130, %v1226
  %v1246 = vmax.f32 %v1133, %v1229
  %v1247 = vmax.f32 %v1135, %v1231
  %v1248 = vmax.f32 %v1138, %v1234
  %v1249 = vmax.f32 %v1140, %v1236
  %v1250 = vmax.f32 %v1238, %v1244
  %v1251 = vmax.f32 %v1239, %v1245
  %v1252 = vmax.f32 %v1240, %v1246
  %v1253 = vmax.f32 %v1241, %v1247
  %v1254 = vmax.f32 %v1242, %v1248
  %v1255 = vmax.f32 %v1243, %v1249
  %v1256 = vld [vmem:[%s1] sm:$0xff]
  %v1257 = vld [vmem:[%s1 + $0x8] sm:$0xff]
  %v1258 = vld [vmem:[%s1 + $0x10] sm:$0xff]
  %v1259 = vld [vmem:[%s1 + $0x18] sm:$0xff]
  %v1260 = vld [vmem:[%s1 + $0x20] sm:$0xff]
  %v1261 = vld [vmem:[%s1 + $0x28] sm:$0xff]
  %1263 = vset.pattern.permute.xlu0 0
  %1264 = vperm.xlu0 %1263, %v1256
  %v1265 = vpop.permute.xlu0 %1264
  %1268 = vset.pattern.permute.xlu0 0
  %1269 = vperm.xlu0 %1268, %v1257
  %v1270 = vpop.permute.xlu0 %1269
  %1273 = vset.pattern.permute.xlu0 0
  %1274 = vperm.xlu0 %1273, %v1258
  %v1275 = vpop.permute.xlu0 %1274
  %1278 = vset.pattern.permute.xlu0 0
  %1279 = vperm.xlu0 %1278, %v1259
  %v1280 = vpop.permute.xlu0 %1279
  %1283 = vset.pattern.permute.xlu0 0
  %1284 = vperm.xlu0 %1283, %v1260
  %v1285 = vpop.permute.xlu0 %1284
  %1288 = vset.pattern.permute.xlu0 0
  %1289 = vperm.xlu0 %1288, %v1261
  %v1290 = vpop.permute.xlu0 %1289
  %v1292 = vadd.f32 %v1250, %v1265
  %v1293 = vadd.f32 %v1251, %v1270
  %v1294 = vadd.f32 %v1252, %v1275
  %v1295 = vadd.f32 %v1253, %v1280
  %v1296 = vadd.f32 %v1254, %v1285
  %v1297 = vadd.f32 %v1255, %v1290
  %v1298 = vmax.f32 %v1292, 0.0
  %v1299 = vmax.f32 %v1293, 0.0
  %v1300 = vmax.f32 %v1294, 0.0
  %v1301 = vmax.f32 %v1295, 0.0
  %v1302 = vmax.f32 %v1296, 0.0
  %v1303 = vmax.f32 %v1297, 0.0
  %v1304 = vpack.c.bf16 %v1298, %v1298
  %v1305 = vpack.c.bf16 %v1299, %v1299
  %v1306 = vpack.c.bf16 %v1300, %v1300
  %v1307 = vpack.c.bf16 %v1301, %v1301
  %v1308 = vpack.c.bf16 %v1302, %v1302
  %v1309 = vpack.c.bf16 %v1303, %v1303
  %1310 = vst [vmem:[%s3] sm:$0xf] %v1304
  %1311 = vst [vmem:[%s3 + $0x4] sm:$0xf] %v1305
  %1312 = vst [vmem:[%s3 + $0x8] sm:$0xf] %v1306
  %1313 = vst [vmem:[%s3 + $0xc] sm:$0xf] %v1307
  %1314 = vst [vmem:[%s3 + $0x10] sm:$0xf] %v1308
  %1315 = vst [vmem:[%s3 + $0x14] sm:$0xf] %v1309
  // Predicated region
  $region14: #{model_pa3_forward.4} parent=0 // pred_check
    _
  $region15: #{model_pa3_forward.4} parent=0 // pred_check_branch
    %1317 = sbr.rel (0) target = $region17
  $region16: #{model_pa3_forward.4} parent=0 // pred_region
    _
  $region17: #{model_pa3_forward.4} parent=0 // pred_fallthru
    _
  // Predicated region
  $region18: #{model_pa3_forward.4} parent=0 // pred_check
    _
  $region19: #{model_pa3_forward.4} parent=0 // pred_check_branch
    %1319 = sbr.rel (0) target = $region21
  $region20: #{model_pa3_forward.4} parent=0 // pred_region
    _
  $region21: #{model_pa3_forward.4} parent=0 // pred_fallthru
    _

// kernel: model_pa3_forward.5
$region0: #{model_pa3_forward.5}
  #allocation0 [shape = 'u32[]', space=smem, size = 0x4, offset = 0x4, fixed_abs, tag = 'smem constant byte address 0x4 - core index']
  #allocation1 [shape = 'u32[72,128]{1,0:T(1,128)}', space=vmem, size = 0x9000, scoped, tag = 'internal scratch']
  %s0 = inlined_call_operand.vmem [shape: bf16[1440,128], index: 0, kind: input, shape index: {}]
  %s1 = inlined_call_operand.vmem [shape: bf16[100,1440], index: 1, kind: input, shape index: {}]
  %s2 = inlined_call_operand.vmem [shape: f32[100,1], index: 2, kind: input, shape index: {}]
  %s3 = inlined_call_operand.vmem [shape: bf16[100,100], index: 3, kind: input, shape index: {}]
  %s4 = inlined_call_operand.vmem [shape: f32[100,1], index: 4, kind: input, shape index: {}]
  %s5 = inlined_call_operand.vmem [shape: bf16[10,100], index: 5, kind: input, shape index: {}]
  %s6 = inlined_call_operand.vmem [shape: f32[10,1], index: 6, kind: input, shape index: {}]
  %s7 = inlined_call_operand.vmem [shape: f32[10,128], index: 7, kind: output, shape index: {}]
  %s8 = sld [smem:[#allocation0]]
  $region38: #{model_pa3_forward.5} parent=0
    _
  %s10 = ssub.s32 1, %s8
  %s11 = scalar_select 0, %s10, %s8
  // Predicated region
  $region2: #{model_pa3_forward.5} parent=0 // pred_check
    _
  $region3: #{model_pa3_forward.5} parent=0 // pred_check_branch
    %13 = sbr.rel (0) target = $region5
  $region4: #{model_pa3_forward.5} parent=0 // pred_region
    _
  $region5: #{model_pa3_forward.5} parent=0 // pred_fallthru
    _
  // Predicated region
  $region6: #{model_pa3_forward.5} parent=0 // pred_check
    _
  $region7: #{model_pa3_forward.5} parent=0 // pred_check_branch
    %15 = sbr.rel (0) target = $region9
  $region8: #{model_pa3_forward.5} parent=0 // pred_region
    _
  $region9: #{model_pa3_forward.5} parent=0 // pred_fallthru
    _
  // Predicated region
  $region10: #{model_pa3_forward.5} parent=0 // pred_check
    _
  $region11: #{model_pa3_forward.5} parent=0 // pred_check_branch
    %17 = sbr.rel (0) target = $region13
  $region12: #{model_pa3_forward.5} parent=0 // pred_region
    _
  $region13: #{model_pa3_forward.5} parent=0 // pred_fallthru
    _
  // Predicated region
  $region14: #{model_pa3_forward.5} parent=0 // pred_check
    _
  $region15: #{model_pa3_forward.5} parent=0 // pred_check_branch
    %19 = sbr.rel (0) target = $region17
  $region16: #{model_pa3_forward.5} parent=0 // pred_region
    _
  $region17: #{model_pa3_forward.5} parent=0 // pred_fallthru
    _
  // Predicated region
  $region18: #{model_pa3_forward.5} parent=0 // pred_check
    _
  $region19: #{model_pa3_forward.5} parent=0 // pred_check_branch
    %21 = sbr.rel (0) target = $region21
  $region20: #{model_pa3_forward.5} parent=0 // pred_region
    _
  $region21: #{model_pa3_forward.5} parent=0 // pred_fallthru
    _
  // Predicated region
  $region22: #{model_pa3_forward.5} parent=0 // pred_check
    _
  $region23: #{model_pa3_forward.5} parent=0 // pred_check_branch
    %23 = sbr.rel (0) target = $region25
  $region24: #{model_pa3_forward.5} parent=0 // pred_region
    _
  $region25: #{model_pa3_forward.5} parent=0 // pred_fallthru
    _
  // Predicated region
  $region26: #{model_pa3_forward.5} parent=0 // pred_check
    _
  $region27: #{model_pa3_forward.5} parent=0 // pred_check_branch
    %25 = sbr.rel (0) target = $region29
  $region28: #{model_pa3_forward.5} parent=0 // pred_region
    _
  $region29: #{model_pa3_forward.5} parent=0 // pred_fallthru
    _
  %v27 = vld [vmem:[%s1] sm:$0xff]
  %v28 = vld [vmem:[%s1 + $0x8] sm:$0xff]
  %v29 = vld [vmem:[%s1 + $0x10] sm:$0xff]
  %v30 = vld [vmem:[%s1 + $0x18] sm:$0xff]
  %v31 = vld [vmem:[%s1 + $0x20] sm:$0xff]
  %v32 = vld [vmem:[%s1 + $0x28] sm:$0xff]
  %v33 = vld [vmem:[%s1 + $0x30] sm:$0xff]
  %v34 = vld [vmem:[%s1 + $0x38] sm:$0xff]
  %v35 = vld [vmem:[%s1 + $0x40] sm:$0xff]
  %v36 = vld [vmem:[%s1 + $0x48] sm:$0xff]
  %v37 = vld [vmem:[%s1 + $0x50] sm:$0xff]
  %v38 = vld [vmem:[%s1 + $0x58] sm:$0xff]
  %v39 = vld [vmem:[%s1 + $0x60] sm:$0xff]
  %v40 = vld [vmem:[%s1 + $0x68] sm:$0xff]
  %v41 = vld [vmem:[%s1 + $0x70] sm:$0xff]
  %v42 = vld [vmem:[%s1 + $0x78] sm:$0xff]
  %v43 = vld [vmem:[%s1 + $0x80] sm:$0xff]
  %v44 = vld [vmem:[%s1 + $0x88] sm:$0xff]
  %v45 = vld [vmem:[%s1 + $0x90] sm:$0xff]
  %v46 = vld [vmem:[%s1 + $0x98] sm:$0xff]
  %v47 = vld [vmem:[%s1 + $0xa0] sm:$0xff]
  %v48 = vld [vmem:[%s1 + $0xa8] sm:$0xff]
  %v49 = vld [vmem:[%s1 + $0xb0] sm:$0xff]
  %v50 = vld [vmem:[%s1 + $0xb8] sm:$0xff]
  %v51 = vld [vmem:[%s1 + $0xc0] sm:$0xff]
  %v52 = vld [vmem:[%s1 + $0xc8] sm:$0xff]
  %v53 = vld [vmem:[%s1 + $0xd0] sm:$0xff]
  %v54 = vld [vmem:[%s1 + $0xd8] sm:$0xff]
  %v55 = vld [vmem:[%s1 + $0xe0] sm:$0xff]
  %v56 = vld [vmem:[%s1 + $0xe8] sm:$0xff]
  %v57 = vld [vmem:[%s1 + $0xf0] sm:$0xff]
  %v58 = vld [vmem:[%s1 + $0xf8] sm:$0xff]
  %v59 = vld [vmem:[%s1 + $0x100] sm:$0xff]
  %v60 = vld [vmem:[%s1 + $0x108] sm:$0xff]
  %v61 = vld [vmem:[%s1 + $0x110] sm:$0xff]
  %v62 = vld [vmem:[%s1 + $0x118] sm:$0xff]
  %v63 = vld [vmem:[%s1 + $0x120] sm:$0xff]
  %v64 = vld [vmem:[%s1 + $0x128] sm:$0xff]
  %v65 = vld [vmem:[%s1 + $0x130] sm:$0xff]
  %v66 = vld [vmem:[%s1 + $0x138] sm:$0xff]
  %v67 = vld [vmem:[%s1 + $0x140] sm:$0xff]
  %v68 = vld [vmem:[%s1 + $0x148] sm:$0xff]
  %v69 = vld [vmem:[%s1 + $0x150] sm:$0xff]
  %v70 = vld [vmem:[%s1 + $0x158] sm:$0xff]
  %v71 = vld [vmem:[%s1 + $0x160] sm:$0xff]
  %v72 = vld [vmem:[%s1 + $0x168] sm:$0xff]
  %v73 = vld [vmem:[%s1 + $0x170] sm:$0xff]
  %v74 = vld [vmem:[%s1 + $0x178] sm:$0xff]
  %v75 = vld [vmem:[%s1 + $0x180] sm:$0xff]
  %v76 = vld [vmem:[%s1 + $0x188] sm:$0xff]
  %v77 = vld [vmem:[%s1 + $0x190] sm:$0xff]
  %v78 = vld [vmem:[%s1 + $0x198] sm:$0xff]
  %v79 = vld [vmem:[%s1 + $0x1a0] sm:$0xff]
  %v80 = vld [vmem:[%s1 + $0x1a8] sm:$0xff]
  %v81 = vld [vmem:[%s1 + $0x1b0] sm:$0xff]
  %v82 = vld [vmem:[%s1 + $0x1b8] sm:$0xff]
  %v83 = vld [vmem:[%s1 + $0x1c0] sm:$0xff]
  %v84 = vld [vmem:[%s1 + $0x1c8] sm:$0xff]
  %v85 = vld [vmem:[%s1 + $0x1d0] sm:$0xff]
  %v86 = vld [vmem:[%s1 + $0x1d8] sm:$0xff]
  %v87 = vld [vmem:[%s1 + $0x1e0] sm:$0xff]
  %v88 = vld [vmem:[%s1 + $0x1e8] sm:$0xff]
  %v89 = vld [vmem:[%s1 + $0x1f0] sm:$0xff]
  %v90 = vld [vmem:[%s1 + $0x1f8] sm:$0xff]
  %v91 = vld [vmem:[%s1 + $0x200] sm:$0xff]
  %v92 = vld [vmem:[%s1 + $0x208] sm:$0xff]
  %v93 = vld [vmem:[%s1 + $0x210] sm:$0xff]
  %v94 = vld [vmem:[%s1 + $0x218] sm:$0xff]
  %v95 = vld [vmem:[%s1 + $0x220] sm:$0xff]
  %v96 = vld [vmem:[%s1 + $0x228] sm:$0xff]
  %v97 = vld [vmem:[%s1 + $0x230] sm:$0xff]
  %v98 = vld [vmem:[%s1 + $0x238] sm:$0xff]
  %v99 = vld [vmem:[%s1 + $0x240] sm:$0x33]
  %v100 = vld [vmem:[%s1 + $0x248] sm:$0x33]
  %v101 = vld [vmem:[%s1 + $0x250] sm:$0x33]
  %v102 = vld [vmem:[%s1 + $0x258] sm:$0x33]
  %v103 = vld [vmem:[%s1 + $0x260] sm:$0x33]
  %v104 = vld [vmem:[%s1 + $0x268] sm:$0x33]
  %v105 = vld [vmem:[%s0] sm:$0xf]
  %v106 = vld [vmem:[%s0 + $0x4] sm:$0xf]
  %v107 = vld [vmem:[%s0 + $0x8] sm:$0xf]
  %v108 = vld [vmem:[%s0 + $0xc] sm:$0xf]
  %v109 = vld [vmem:[%s0 + $0x10] sm:$0xf]
  %v110 = vld [vmem:[%s0 + $0x14] sm:$0xf]
  %v111 = vld [vmem:[%s0 + $0x18] sm:$0xf]
  %v112 = vld [vmem:[%s0 + $0x1c] sm:$0xf]
  %v113 = vld [vmem:[%s0 + $0x20] sm:$0xf]
  %v114 = vld [vmem:[%s0 + $0x24] sm:$0xf]
  %v115 = vld [vmem:[%s0 + $0x28] sm:$0xf]
  %v116 = vld [vmem:[%s0 + $0x2c] sm:$0xf]
  %v117 = vld [vmem:[%s0 + $0x30] sm:$0xf]
  %v118 = vld [vmem:[%s0 + $0x34] sm:$0xf]
  %v119 = vld [vmem:[%s0 + $0x38] sm:$0xf]
  %v120 = vld [vmem:[%s0 + $0x3c] sm:$0xf]
  %v121 = vld [vmem:[%s0 + $0x40] sm:$0xf]
  %v122 = vld [vmem:[%s0 + $0x44] sm:$0xf]
  %v123 = vld [vmem:[%s0 + $0x48] sm:$0xf]
  %v124 = vld [vmem:[%s0 + $0x4c] sm:$0xf]
  %v125 = vld [vmem:[%s0 + $0x50] sm:$0xf]
  %v126 = vld [vmem:[%s0 + $0x54] sm:$0xf]
  %v127 = vld [vmem:[%s0 + $0x58] sm:$0xf]
  %v128 = vld [vmem:[%s0 + $0x5c] sm:$0xf]
  %v129 = vld [vmem:[%s0 + $0x60] sm:$0xf]
  %v130 = vld [vmem:[%s0 + $0x64] sm:$0xf]
  %v131 = vld [vmem:[%s0 + $0x68] sm:$0xf]
  %v132 = vld [vmem:[%s0 + $0x6c] sm:$0xf]
  %v133 = vld [vmem:[%s0 + $0x70] sm:$0xf]
  %v134 = vld [vmem:[%s0 + $0x74] sm:$0xf]
  %v135 = vld [vmem:[%s0 + $0x78] sm:$0xf]
  %v136 = vld [vmem:[%s0 + $0x7c] sm:$0xf]
  %v137 = vld [vmem:[%s0 + $0x80] sm:$0xf]
  %v138 = vld [vmem:[%s0 + $0x84] sm:$0xf]
  %v139 = vld [vmem:[%s0 + $0x88] sm:$0xf]
  %v140 = vld [vmem:[%s0 + $0x8c] sm:$0xf]
  %v141 = vld [vmem:[%s0 + $0x90] sm:$0xf]
  %v142 = vld [vmem:[%s0 + $0x94] sm:$0xf]
  %v143 = vld [vmem:[%s0 + $0x98] sm:$0xf]
  %v144 = vld [vmem:[%s0 + $0x9c] sm:$0xf]
  %v145 = vld [vmem:[%s0 + $0xa0] sm:$0xf]
  %v146 = vld [vmem:[%s0 + $0xa4] sm:$0xf]
  %v147 = vld [vmem:[%s0 + $0xa8] sm:$0xf]
  %v148 = vld [vmem:[%s0 + $0xac] sm:$0xf]
  %v149 = vld [vmem:[%s0 + $0xb0] sm:$0xf]
  %v150 = vld [vmem:[%s0 + $0xb4] sm:$0xf]
  %v151 = vld [vmem:[%s0 + $0xb8] sm:$0xf]
  %v152 = vld [vmem:[%s0 + $0xbc] sm:$0xf]
  %v153 = vld [vmem:[%s0 + $0xc0] sm:$0xf]
  %v154 = vld [vmem:[%s0 + $0xc4] sm:$0xf]
  %v155 = vld [vmem:[%s0 + $0xc8] sm:$0xf]
  %v156 = vld [vmem:[%s0 + $0xcc] sm:$0xf]
  %v157 = vld [vmem:[%s0 + $0xd0] sm:$0xf]
  %v158 = vld [vmem:[%s0 + $0xd4] sm:$0xf]
  %v159 = vld [vmem:[%s0 + $0xd8] sm:$0xf]
  %v160 = vld [vmem:[%s0 + $0xdc] sm:$0xf]
  %v161 = vld [vmem:[%s0 + $0xe0] sm:$0xf]
  %v162 = vld [vmem:[%s0 + $0xe4] sm:$0xf]
  %v163 = vld [vmem:[%s0 + $0xe8] sm:$0xf]
  %v164 = vld [vmem:[%s0 + $0xec] sm:$0xf]
  %v165 = vld [vmem:[%s0 + $0xf0] sm:$0xf]
  %v166 = vld [vmem:[%s0 + $0xf4] sm:$0xf]
  %v167 = vld [vmem:[%s0 + $0xf8] sm:$0xf]
  %v168 = vld [vmem:[%s0 + $0xfc] sm:$0xf]
  %v169 = vld [vmem:[%s0 + $0x100] sm:$0xf]
  %v170 = vld [vmem:[%s0 + $0x104] sm:$0xf]
  %v171 = vld [vmem:[%s0 + $0x108] sm:$0xf]
  %v172 = vld [vmem:[%s0 + $0x10c] sm:$0xf]
  %v173 = vld [vmem:[%s0 + $0x110] sm:$0xf]
  %v174 = vld [vmem:[%s0 + $0x114] sm:$0xf]
  %v175 = vld [vmem:[%s0 + $0x118] sm:$0xf]
  %v176 = vld [vmem:[%s0 + $0x11c] sm:$0xf]
  %v177 = vld [vmem:[%s0 + $0x120] sm:$0xf]
  %v178 = vld [vmem:[%s0 + $0x124] sm:$0xf]
  %v179 = vld [vmem:[%s0 + $0x128] sm:$0xf]
  %v180 = vld [vmem:[%s0 + $0x12c] sm:$0xf]
  %v181 = vld [vmem:[%s0 + $0x130] sm:$0xf]
  %v182 = vld [vmem:[%s0 + $0x134] sm:$0xf]
  %v183 = vld [vmem:[%s0 + $0x138] sm:$0xf]
  %v184 = vld [vmem:[%s0 + $0x13c] sm:$0xf]
  %v185 = vld [vmem:[%s0 + $0x140] sm:$0xf]
  %v186 = vld [vmem:[%s0 + $0x144] sm:$0xf]
  %v187 = vld [vmem:[%s0 + $0x148] sm:$0xf]
  %v188 = vld [vmem:[%s0 + $0x14c] sm:$0xf]
  %v189 = vld [vmem:[%s0 + $0x150] sm:$0xf]
  %v190 = vld [vmem:[%s0 + $0x154] sm:$0xf]
  %v191 = vld [vmem:[%s0 + $0x158] sm:$0xf]
  %v192 = vld [vmem:[%s0 + $0x15c] sm:$0xf]
  %v193 = vld [vmem:[%s0 + $0x160] sm:$0xf]
  %v194 = vld [vmem:[%s0 + $0x164] sm:$0xf]
  %v195 = vld [vmem:[%s0 + $0x168] sm:$0xf]
  %v196 = vld [vmem:[%s0 + $0x16c] sm:$0xf]
  %v197 = vld [vmem:[%s0 + $0x170] sm:$0xf]
  %v198 = vld [vmem:[%s0 + $0x174] sm:$0xf]
  %v199 = vld [vmem:[%s0 + $0x178] sm:$0xf]
  %v200 = vld [vmem:[%s0 + $0x17c] sm:$0xf]
  %v201 = vld [vmem:[%s0 + $0x180] sm:$0xf]
  %v202 = vld [vmem:[%s0 + $0x184] sm:$0xf]
  %v203 = vld [vmem:[%s0 + $0x188] sm:$0xf]
  %v204 = vld [vmem:[%s0 + $0x18c] sm:$0xf]
  %v205 = vld [vmem:[%s0 + $0x190] sm:$0xf]
  %v206 = vld [vmem:[%s0 + $0x194] sm:$0xf]
  %v207 = vld [vmem:[%s0 + $0x198] sm:$0xf]
  %v208 = vld [vmem:[%s0 + $0x19c] sm:$0xf]
  %v209 = vld [vmem:[%s0 + $0x1a0] sm:$0xf]
  %v210 = vld [vmem:[%s0 + $0x1a4] sm:$0xf]
  %v211 = vld [vmem:[%s0 + $0x1a8] sm:$0xf]
  %v212 = vld [vmem:[%s0 + $0x1ac] sm:$0xf]
  %v213 = vld [vmem:[%s0 + $0x1b0] sm:$0xf]
  %v214 = vld [vmem:[%s0 + $0x1b4] sm:$0xf]
  %v215 = vld [vmem:[%s0 + $0x1b8] sm:$0xf]
  %v216 = vld [vmem:[%s0 + $0x1bc] sm:$0xf]
  %v217 = vld [vmem:[%s0 + $0x1c0] sm:$0xf]
  %v218 = vld [vmem:[%s0 + $0x1c4] sm:$0xf]
  %v219 = vld [vmem:[%s0 + $0x1c8] sm:$0xf]
  %v220 = vld [vmem:[%s0 + $0x1cc] sm:$0xf]
  %v221 = vld [vmem:[%s0 + $0x1d0] sm:$0xf]
  %v222 = vld [vmem:[%s0 + $0x1d4] sm:$0xf]
  %v223 = vld [vmem:[%s0 + $0x1d8] sm:$0xf]
  %v224 = vld [vmem:[%s0 + $0x1dc] sm:$0xf]
  %v225 = vld [vmem:[%s0 + $0x1e0] sm:$0xf]
  %v226 = vld [vmem:[%s0 + $0x1e4] sm:$0xf]
  %v227 = vld [vmem:[%s0 + $0x1e8] sm:$0xf]
  %v228 = vld [vmem:[%s0 + $0x1ec] sm:$0xf]
  %v229 = vld [vmem:[%s0 + $0x1f0] sm:$0xf]
  %v230 = vld [vmem:[%s0 + $0x1f4] sm:$0xf]
  %v231 = vld [vmem:[%s0 + $0x1f8] sm:$0xf]
  %v232 = vld [vmem:[%s0 + $0x1fc] sm:$0xf]
  %v233 = vld [vmem:[%s0 + $0x200] sm:$0xf]
  %v234 = vld [vmem:[%s0 + $0x204] sm:$0xf]
  %v235 = vld [vmem:[%s0 + $0x208] sm:$0xf]
  %v236 = vld [vmem:[%s0 + $0x20c] sm:$0xf]
  %v237 = vld [vmem:[%s0 + $0x210] sm:$0xf]
  %v238 = vld [vmem:[%s0 + $0x214] sm:$0xf]
  %v239 = vld [vmem:[%s0 + $0x218] sm:$0xf]
  %v240 = vld [vmem:[%s0 + $0x21c] sm:$0xf]
  %v241 = vld [vmem:[%s0 + $0x220] sm:$0xf]
  %v242 = vld [vmem:[%s0 + $0x224] sm:$0xf]
  %v243 = vld [vmem:[%s0 + $0x228] sm:$0xf]
  %v244 = vld [vmem:[%s0 + $0x22c] sm:$0xf]
  %v245 = vld [vmem:[%s0 + $0x230] sm:$0xf]
  %v246 = vld [vmem:[%s0 + $0x234] sm:$0xf]
  %v247 = vld [vmem:[%s0 + $0x238] sm:$0xf]
  %v248 = vld [vmem:[%s0 + $0x23c] sm:$0xf]
  %v249 = vld [vmem:[%s0 + $0x240] sm:$0xf]
  %v250 = vld [vmem:[%s0 + $0x244] sm:$0xf]
  %v251 = vld [vmem:[%s0 + $0x248] sm:$0xf]
  %v252 = vld [vmem:[%s0 + $0x24c] sm:$0xf]
  %v253 = vld [vmem:[%s0 + $0x250] sm:$0xf]
  %v254 = vld [vmem:[%s0 + $0x254] sm:$0xf]
  %v255 = vld [vmem:[%s0 + $0x258] sm:$0xf]
  %v256 = vld [vmem:[%s0 + $0x25c] sm:$0xf]
  %v257 = vld [vmem:[%s0 + $0x260] sm:$0xf]
  %v258 = vld [vmem:[%s0 + $0x264] sm:$0xf]
  %v259 = vld [vmem:[%s0 + $0x268] sm:$0xf]
  %v260 = vld [vmem:[%s0 + $0x26c] sm:$0xf]
  %v261 = vld [vmem:[%s0 + $0x270] sm:$0xf]
  %v262 = vld [vmem:[%s0 + $0x274] sm:$0xf]
  %v263 = vld [vmem:[%s0 + $0x278] sm:$0xf]
  %v264 = vld [vmem:[%s0 + $0x27c] sm:$0xf]
  %v265 = vld [vmem:[%s0 + $0x280] sm:$0xf]
  %v266 = vld [vmem:[%s0 + $0x284] sm:$0xf]
  %v267 = vld [vmem:[%s0 + $0x288] sm:$0xf]
  %v268 = vld [vmem:[%s0 + $0x28c] sm:$0xf]
  %v269 = vld [vmem:[%s0 + $0x290] sm:$0xf]
  %v270 = vld [vmem:[%s0 + $0x294] sm:$0xf]
  %v271 = vld [vmem:[%s0 + $0x298] sm:$0xf]
  %v272 = vld [vmem:[%s0 + $0x29c] sm:$0xf]
  %v273 = vld [vmem:[%s0 + $0x2a0] sm:$0xf]
  %v274 = vld [vmem:[%s0 + $0x2a4] sm:$0xf]
  %v275 = vld [vmem:[%s0 + $0x2a8] sm:$0xf]
  %v276 = vld [vmem:[%s0 + $0x2ac] sm:$0xf]
  %v277 = vld [vmem:[%s0 + $0x2b0] sm:$0xf]
  %v278 = vld [vmem:[%s0 + $0x2b4] sm:$0xf]
  %v279 = vld [vmem:[%s0 + $0x2b8] sm:$0xf]
  %v280 = vld [vmem:[%s0 + $0x2bc] sm:$0xf]
  %v281 = vld [vmem:[%s0 + $0x2c0] sm:$0xf]
  %v282 = vld [vmem:[%s0 + $0x2c4] sm:$0xf]
  %v283 = vld [vmem:[%s0 + $0x2c8] sm:$0xf]
  %v284 = vld [vmem:[%s0 + $0x2cc] sm:$0xf]
  %v285 = vld [vmem:[%s2] sm:$0xff]
  %v286 = vld [vmem:[%s2 + $0x8] sm:$0xff]
  %v287 = vld [vmem:[%s2 + $0x10] sm:$0xff]
  %v288 = vld [vmem:[%s2 + $0x18] sm:$0xff]
  %v289 = vld [vmem:[%s2 + $0x20] sm:$0xff]
  %v290 = vld [vmem:[%s2 + $0x28] sm:$0xff]
  %v291 = vld [vmem:[%s2 + $0x30] sm:$0xff]
  %v292 = vld [vmem:[%s2 + $0x38] sm:$0xff]
  %v293 = vld [vmem:[%s2 + $0x40] sm:$0xff]
  %v294 = vld [vmem:[%s2 + $0x48] sm:$0xff]
  %v295 = vld [vmem:[%s2 + $0x50] sm:$0xff]
  %v296 = vld [vmem:[%s2 + $0x58] sm:$0xff]
  %v297 = vld [vmem:[%s2 + $0x60] sm:$0xf]
  %299 = vset.pattern.permute.xlu0 0
  %300 = vperm.xlu0 %299, %v285
  %v301 = vpop.permute.xlu0 %300
  %304 = vset.pattern.permute.xlu0 0
  %305 = vperm.xlu0 %304, %v286
  %v306 = vpop.permute.xlu0 %305
  %309 = vset.pattern.permute.xlu0 0
  %310 = vperm.xlu0 %309, %v287
  %v311 = vpop.permute.xlu0 %310
  %314 = vset.pattern.permute.xlu0 0
  %315 = vperm.xlu0 %314, %v288
  %v316 = vpop.permute.xlu0 %315
  %319 = vset.pattern.permute.xlu0 0
  %320 = vperm.xlu0 %319, %v289
  %v321 = vpop.permute.xlu0 %320
  %324 = vset.pattern.permute.xlu0 0
  %325 = vperm.xlu0 %324, %v290
  %v326 = vpop.permute.xlu0 %325
  %329 = vset.pattern.permute.xlu0 0
  %330 = vperm.xlu0 %329, %v291
  %v331 = vpop.permute.xlu0 %330
  %334 = vset.pattern.permute.xlu0 0
  %335 = vperm.xlu0 %334, %v292
  %v336 = vpop.permute.xlu0 %335
  %339 = vset.pattern.permute.xlu0 0
  %340 = vperm.xlu0 %339, %v293
  %v341 = vpop.permute.xlu0 %340
  %344 = vset.pattern.permute.xlu0 0
  %345 = vperm.xlu0 %344, %v294
  %v346 = vpop.permute.xlu0 %345
  %349 = vset.pattern.permute.xlu0 0
  %350 = vperm.xlu0 %349, %v295
  %v351 = vpop.permute.xlu0 %350
  %354 = vset.pattern.permute.xlu0 0
  %355 = vperm.xlu0 %354, %v296
  %v356 = vpop.permute.xlu0 %355
  %359 = vset.pattern.permute.xlu0 0
  %360 = vperm.xlu0 %359, %v297
  %v361 = vpop.permute.xlu0 %360
  %v441 = vunpack.c.l.b16 %v27
  %v442 = vunpack.c.h.b16 %v27
  %v443 = vunpack.c.l.b16 %v28
  %v444 = vunpack.c.h.b16 %v28
  %v445 = vunpack.c.l.b16 %v29
  %v446 = vunpack.c.h.b16 %v29
  %v447 = vunpack.c.l.b16 %v30
  %v448 = vunpack.c.h.b16 %v30
  %v449 = vunpack.c.l.b16 %v31
  %v450 = vunpack.c.h.b16 %v31
  %v451 = vunpack.c.l.b16 %v32
  %v452 = vunpack.c.h.b16 %v32
  %v453 = vunpack.c.l.b16 %v33
  %v454 = vunpack.c.h.b16 %v33
  %v455 = vunpack.c.l.b16 %v34
  %v456 = vunpack.c.h.b16 %v34
  %v457 = vunpack.c.l.b16 %v35
  %v458 = vunpack.c.h.b16 %v35
  %v459 = vunpack.c.l.b16 %v36
  %v460 = vunpack.c.h.b16 %v36
  %v461 = vunpack.c.l.b16 %v37
  %v462 = vunpack.c.h.b16 %v37
  %v463 = vunpack.c.l.b16 %v38
  %v464 = vunpack.c.h.b16 %v38
  %v465 = vunpack.c.l.b16 %v39
  %v466 = vunpack.c.h.b16 %v39
  %v467 = vunpack.c.l.b16 %v40
  %v468 = vunpack.c.h.b16 %v40
  %v469 = vunpack.c.l.b16 %v41
  %v470 = vunpack.c.h.b16 %v41
  %v471 = vunpack.c.l.b16 %v42
  %v472 = vunpack.c.h.b16 %v42
  %v473 = vunpack.c.l.b16 %v43
  %v474 = vunpack.c.h.b16 %v43
  %v475 = vunpack.c.l.b16 %v44
  %v476 = vunpack.c.h.b16 %v44
  %v477 = vunpack.c.l.b16 %v45
  %v478 = vunpack.c.h.b16 %v45
  %v479 = vunpack.c.l.b16 %v46
  %v480 = vunpack.c.h.b16 %v46
  %v481 = vunpack.c.l.b16 %v47
  %v482 = vunpack.c.h.b16 %v47
  %v483 = vunpack.c.l.b16 %v48
  %v484 = vunpack.c.h.b16 %v48
  %v485 = vunpack.c.l.b16 %v49
  %v486 = vunpack.c.h.b16 %v49
  %v487 = vunpack.c.l.b16 %v50
  %v488 = vunpack.c.h.b16 %v50
  %v489 = vunpack.c.l.b16 %v51
  %v490 = vunpack.c.h.b16 %v51
  %v491 = vunpack.c.l.b16 %v52
  %v492 = vunpack.c.h.b16 %v52
  %v493 = vunpack.c.l.b16 %v53
  %v494 = vunpack.c.h.b16 %v53
  %v495 = vunpack.c.l.b16 %v54
  %v496 = vunpack.c.h.b16 %v54
  %v497 = vunpack.c.l.b16 %v55
  %v498 = vunpack.c.h.b16 %v55
  %v499 = vunpack.c.l.b16 %v56
  %v500 = vunpack.c.h.b16 %v56
  %v501 = vunpack.c.l.b16 %v57
  %v502 = vunpack.c.h.b16 %v57
  %v503 = vunpack.c.l.b16 %v58
  %v504 = vunpack.c.h.b16 %v58
  %v505 = vunpack.c.l.b16 %v59
  %v506 = vunpack.c.h.b16 %v59
  %v507 = vunpack.c.l.b16 %v60
  %v508 = vunpack.c.h.b16 %v60
  %v509 = vunpack.c.l.b16 %v61
  %v510 = vunpack.c.h.b16 %v61
  %v511 = vunpack.c.l.b16 %v62
  %v512 = vunpack.c.h.b16 %v62
  %v513 = vunpack.c.l.b16 %v63
  %v514 = vunpack.c.h.b16 %v63
  %v515 = vunpack.c.l.b16 %v64
  %v516 = vunpack.c.h.b16 %v64
  %v517 = vunpack.c.l.b16 %v65
  %v518 = vunpack.c.h.b16 %v65
  %v519 = vunpack.c.l.b16 %v66
  %v520 = vunpack.c.h.b16 %v66
  %v521 = vunpack.c.l.b16 %v67
  %v522 = vunpack.c.h.b16 %v67
  %v523 = vunpack.c.l.b16 %v68
  %v524 = vunpack.c.h.b16 %v68
  %v525 = vunpack.c.l.b16 %v69
  %v526 = vunpack.c.h.b16 %v69
  %v527 = vunpack.c.l.b16 %v70
  %v528 = vunpack.c.h.b16 %v70
  %v529 = vunpack.c.l.b16 %v71
  %v530 = vunpack.c.h.b16 %v71
  %v531 = vunpack.c.l.b16 %v72
  %v532 = vunpack.c.h.b16 %v72
  %v533 = vunpack.c.l.b16 %v73
  %v534 = vunpack.c.h.b16 %v73
  %v535 = vunpack.c.l.b16 %v74
  %v536 = vunpack.c.h.b16 %v74
  %v537 = vunpack.c.l.b16 %v75
  %v538 = vunpack.c.h.b16 %v75
  %v539 = vunpack.c.l.b16 %v76
  %v540 = vunpack.c.h.b16 %v76
  %v541 = vunpack.c.l.b16 %v77
  %v542 = vunpack.c.h.b16 %v77
  %v543 = vunpack.c.l.b16 %v78
  %v544 = vunpack.c.h.b16 %v78
  %v545 = vunpack.c.l.b16 %v79
  %v546 = vunpack.c.h.b16 %v79
  %v547 = vunpack.c.l.b16 %v80
  %v548 = vunpack.c.h.b16 %v80
  %v549 = vunpack.c.l.b16 %v81
  %v550 = vunpack.c.h.b16 %v81
  %v551 = vunpack.c.l.b16 %v82
  %v552 = vunpack.c.h.b16 %v82
  %v553 = vunpack.c.l.b16 %v83
  %v554 = vunpack.c.h.b16 %v83
  %v555 = vunpack.c.l.b16 %v84
  %v556 = vunpack.c.h.b16 %v84
  %v557 = vunpack.c.l.b16 %v85
  %v558 = vunpack.c.h.b16 %v85
  %v559 = vunpack.c.l.b16 %v86
  %v560 = vunpack.c.h.b16 %v86
  %v561 = vunpack.c.l.b16 %v87
  %v562 = vunpack.c.h.b16 %v87
  %v563 = vunpack.c.l.b16 %v88
  %v564 = vunpack.c.h.b16 %v88
  %v565 = vunpack.c.l.b16 %v89
  %v566 = vunpack.c.h.b16 %v89
  %v567 = vunpack.c.l.b16 %v90
  %v568 = vunpack.c.h.b16 %v90
  %v569 = vunpack.c.l.b16 %v91
  %v570 = vunpack.c.h.b16 %v91
  %v571 = vunpack.c.l.b16 %v92
  %v572 = vunpack.c.h.b16 %v92
  %v573 = vunpack.c.l.b16 %v93
  %v574 = vunpack.c.h.b16 %v93
  %v575 = vunpack.c.l.b16 %v94
  %v576 = vunpack.c.h.b16 %v94
  %v577 = vunpack.c.l.b16 %v95
  %v578 = vunpack.c.h.b16 %v95
  %v579 = vunpack.c.l.b16 %v96
  %v580 = vunpack.c.h.b16 %v96
  %v581 = vunpack.c.l.b16 %v97
  %v582 = vunpack.c.h.b16 %v97
  %v583 = vunpack.c.l.b16 %v98
  %v584 = vunpack.c.h.b16 %v98
  %v585 = vunpack.c.l.b16 %v99
  %v586 = vunpack.c.h.b16 %v99
  %v587 = vunpack.c.l.b16 %v100
  %v588 = vunpack.c.h.b16 %v100
  %v589 = vunpack.c.l.b16 %v101
  %v590 = vunpack.c.h.b16 %v101
  %v591 = vunpack.c.l.b16 %v102
  %v592 = vunpack.c.h.b16 %v102
  %v593 = vunpack.c.l.b16 %v103
  %v594 = vunpack.c.h.b16 %v103
  %v595 = vunpack.c.l.b16 %v104
  %v596 = vunpack.c.h.b16 %v104
  %v597 = vpack.c.b16 %v453, %v441
  %v598 = vpack.c.b16 %v454, %v442
  %v599 = vpack.c.b16 %v455, %v443
  %v600 = vpack.c.b16 %v456, %v444
  %v601 = vpack.c.b16 %v457, %v445
  %v602 = vpack.c.b16 %v458, %v446
  %v603 = vpack.c.b16 %v459, %v447
  %v604 = vpack.c.b16 %v460, %v448
  %v605 = vpack.c.b16 %v461, %v449
  %v606 = vpack.c.b16 %v462, %v450
  %v607 = vpack.c.b16 %v463, %v451
  %v608 = vpack.c.b16 %v464, %v452
  %v609 = vpack.c.b16 %v477, %v465
  %v610 = vpack.c.b16 %v478, %v466
  %v611 = vpack.c.b16 %v479, %v467
  %v612 = vpack.c.b16 %v480, %v468
  %v613 = vpack.c.b16 %v481, %v469
  %v614 = vpack.c.b16 %v482, %v470
  %v615 = vpack.c.b16 %v483, %v471
  %v616 = vpack.c.b16 %v484, %v472
  %v617 = vpack.c.b16 %v485, %v473
  %v618 = vpack.c.b16 %v486, %v474
  %v619 = vpack.c.b16 %v487, %v475
  %v620 = vpack.c.b16 %v488, %v476
  %v621 = vpack.c.b16 %v501, %v489
  %v622 = vpack.c.b16 %v502, %v490
  %v623 = vpack.c.b16 %v503, %v491
  %v624 = vpack.c.b16 %v504, %v492
  %v625 = vpack.c.b16 %v505, %v493
  %v626 = vpack.c.b16 %v506, %v494
  %v627 = vpack.c.b16 %v507, %v495
  %v628 = vpack.c.b16 %v508, %v496
  %v629 = vpack.c.b16 %v509, %v497
  %v630 = vpack.c.b16 %v510, %v498
  %v631 = vpack.c.b16 %v511, %v499
  %v632 = vpack.c.b16 %v512, %v500
  %v633 = vpack.c.b16 %v525, %v513
  %v634 = vpack.c.b16 %v526, %v514
  %v635 = vpack.c.b16 %v527, %v515
  %v636 = vpack.c.b16 %v528, %v516
  %v637 = vpack.c.b16 %v529, %v517
  %v638 = vpack.c.b16 %v530, %v518
  %v639 = vpack.c.b16 %v531, %v519
  %v640 = vpack.c.b16 %v532, %v520
  %v641 = vpack.c.b16 %v533, %v521
  %v642 = vpack.c.b16 %v534, %v522
  %v643 = vpack.c.b16 %v535, %v523
  %v644 = vpack.c.b16 %v536, %v524
  %v645 = vpack.c.b16 %v549, %v537
  %v646 = vpack.c.b16 %v550, %v538
  %v647 = vpack.c.b16 %v551, %v539
  %v648 = vpack.c.b16 %v552, %v540
  %v649 = vpack.c.b16 %v553, %v541
  %v650 = vpack.c.b16 %v554, %v542
  %v651 = vpack.c.b16 %v555, %v543
  %v652 = vpack.c.b16 %v556, %v544
  %v653 = vpack.c.b16 %v557, %v545
  %v654 = vpack.c.b16 %v558, %v546
  %v655 = vpack.c.b16 %v559, %v547
  %v656 = vpack.c.b16 %v560, %v548
  %v657 = vpack.c.b16 %v573, %v561
  %v658 = vpack.c.b16 %v574, %v562
  %v659 = vpack.c.b16 %v575, %v563
  %v660 = vpack.c.b16 %v576, %v564
  %v661 = vpack.c.b16 %v577, %v565
  %v662 = vpack.c.b16 %v578, %v566
  %v663 = vpack.c.b16 %v579, %v567
  %v664 = vpack.c.b16 %v580, %v568
  %v665 = vpack.c.b16 %v581, %v569
  %v666 = vpack.c.b16 %v582, %v570
  %v667 = vpack.c.b16 %v583, %v571
  %v668 = vpack.c.b16 %v584, %v572
  %v669 = vpack.c.b16 %v585, %v585
  %v670 = vpack.c.b16 %v586, %v586
  %v671 = vpack.c.b16 %v587, %v587
  %v672 = vpack.c.b16 %v588, %v588
  %v673 = vpack.c.b16 %v589, %v589
  %v674 = vpack.c.b16 %v590, %v590
  %v675 = vpack.c.b16 %v591, %v591
  %v676 = vpack.c.b16 %v592, %v592
  %v677 = vpack.c.b16 %v593, %v593
  %v678 = vpack.c.b16 %v594, %v594
  %v679 = vpack.c.b16 %v595, %v595
  %v680 = vpack.c.b16 %v596, %v596
  %v938 = vunpack.c.l.b16 %v105
  %v939 = vunpack.c.l.b16 %v106
  %v940 = vunpack.c.l.b16 %v107
  %v941 = vunpack.c.l.b16 %v108
  %v942 = vunpack.c.l.b16 %v109
  %v943 = vunpack.c.l.b16 %v110
  %v944 = vunpack.c.l.b16 %v111
  %v945 = vunpack.c.l.b16 %v112
  %v946 = vunpack.c.l.b16 %v113
  %v947 = vunpack.c.l.b16 %v114
  %v948 = vunpack.c.l.b16 %v115
  %v949 = vunpack.c.l.b16 %v116
  %v950 = vunpack.c.l.b16 %v117
  %v951 = vunpack.c.l.b16 %v118
  %v952 = vunpack.c.l.b16 %v119
  %v953 = vunpack.c.l.b16 %v120
  %v954 = vunpack.c.l.b16 %v121
  %v955 = vunpack.c.l.b16 %v122
  %v956 = vunpack.c.l.b16 %v123
  %v957 = vunpack.c.l.b16 %v124
  %v958 = vunpack.c.l.b16 %v125
  %v959 = vunpack.c.l.b16 %v126
  %v960 = vunpack.c.l.b16 %v127
  %v961 = vunpack.c.l.b16 %v128
  %v962 = vunpack.c.l.b16 %v129
  %v963 = vunpack.c.l.b16 %v130
  %v964 = vunpack.c.l.b16 %v131
  %v965 = vunpack.c.l.b16 %v132
  %v966 = vunpack.c.l.b16 %v133
  %v967 = vunpack.c.l.b16 %v134
  %v968 = vunpack.c.l.b16 %v135
  %v969 = vunpack.c.l.b16 %v136
  %v970 = vunpack.c.l.b16 %v137
  %v971 = vunpack.c.l.b16 %v138
  %v972 = vunpack.c.l.b16 %v139
  %v973 = vunpack.c.l.b16 %v140
  %v974 = vunpack.c.l.b16 %v141
  %v975 = vunpack.c.l.b16 %v142
  %v976 = vunpack.c.l.b16 %v143
  %v977 = vunpack.c.l.b16 %v144
  %v978 = vunpack.c.l.b16 %v145
  %v979 = vunpack.c.l.b16 %v146
  %v980 = vunpack.c.l.b16 %v147
  %v981 = vunpack.c.l.b16 %v148
  %v982 = vunpack.c.l.b16 %v149
  %v983 = vunpack.c.l.b16 %v150
  %v984 = vunpack.c.l.b16 %v151
  %v985 = vunpack.c.l.b16 %v152
  %v986 = vunpack.c.l.b16 %v153
  %v987 = vunpack.c.l.b16 %v154
  %v988 = vunpack.c.l.b16 %v155
  %v989 = vunpack.c.l.b16 %v156
  %v990 = vunpack.c.l.b16 %v157
  %v991 = vunpack.c.l.b16 %v158
  %v992 = vunpack.c.l.b16 %v159
  %v993 = vunpack.c.l.b16 %v160
  %v994 = vunpack.c.l.b16 %v161
  %v995 = vunpack.c.l.b16 %v162
  %v996 = vunpack.c.l.b16 %v163
  %v997 = vunpack.c.l.b16 %v164
  %v998 = vunpack.c.l.b16 %v165
  %v999 = vunpack.c.l.b16 %v166
  %v1000 = vunpack.c.l.b16 %v167
  %v1001 = vunpack.c.l.b16 %v168
  %v1002 = vunpack.c.l.b16 %v169
  %v1003 = vunpack.c.l.b16 %v170
  %v1004 = vunpack.c.l.b16 %v171
  %v1005 = vunpack.c.l.b16 %v172
  %v1006 = vunpack.c.l.b16 %v173
  %v1007 = vunpack.c.l.b16 %v174
  %v1008 = vunpack.c.l.b16 %v175
  %v1009 = vunpack.c.l.b16 %v176
  %v1010 = vunpack.c.l.b16 %v177
  %v1011 = vunpack.c.l.b16 %v178
  %v1012 = vunpack.c.l.b16 %v179
  %v1013 = vunpack.c.l.b16 %v180
  %v1014 = vunpack.c.l.b16 %v181
  %v1015 = vunpack.c.l.b16 %v182
  %v1016 = vunpack.c.l.b16 %v183
  %v1017 = vunpack.c.l.b16 %v184
  %v1018 = vunpack.c.l.b16 %v185
  %v1019 = vunpack.c.l.b16 %v186
  %v1020 = vunpack.c.l.b16 %v187
  %v1021 = vunpack.c.l.b16 %v188
  %v1022 = vunpack.c.l.b16 %v189
  %v1023 = vunpack.c.l.b16 %v190
  %v1024 = vunpack.c.l.b16 %v191
  %v1025 = vunpack.c.l.b16 %v192
  %v1026 = vunpack.c.l.b16 %v193
  %v1027 = vunpack.c.l.b16 %v194
  %v1028 = vunpack.c.l.b16 %v195
  %v1029 = vunpack.c.l.b16 %v196
  %v1030 = vunpack.c.l.b16 %v197
  %v1031 = vunpack.c.l.b16 %v198
  %v1032 = vunpack.c.l.b16 %v199
  %v1033 = vunpack.c.l.b16 %v200
  %v1034 = vunpack.c.l.b16 %v201
  %v1035 = vunpack.c.l.b16 %v202
  %v1036 = vunpack.c.l.b16 %v203
  %v1037 = vunpack.c.l.b16 %v204
  %v1038 = vunpack.c.l.b16 %v205
  %v1039 = vunpack.c.l.b16 %v206
  %v1040 = vunpack.c.l.b16 %v207
  %v1041 = vunpack.c.l.b16 %v208
  %v1042 = vunpack.c.l.b16 %v209
  %v1043 = vunpack.c.l.b16 %v210
  %v1044 = vunpack.c.l.b16 %v211
  %v1045 = vunpack.c.l.b16 %v212
  %v1046 = vunpack.c.l.b16 %v213
  %v1047 = vunpack.c.l.b16 %v214
  %v1048 = vunpack.c.l.b16 %v215
  %v1049 = vunpack.c.l.b16 %v216
  %v1050 = vunpack.c.l.b16 %v217
  %v1051 = vunpack.c.l.b16 %v218
  %v1052 = vunpack.c.l.b16 %v219
  %v1053 = vunpack.c.l.b16 %v220
  %v1054 = vunpack.c.l.b16 %v221
  %v1055 = vunpack.c.l.b16 %v222
  %v1056 = vunpack.c.l.b16 %v223
  %v1057 = vunpack.c.l.b16 %v224
  %v1058 = vunpack.c.l.b16 %v225
  %v1059 = vunpack.c.l.b16 %v226
  %v1060 = vunpack.c.l.b16 %v227
  %v1061 = vunpack.c.l.b16 %v228
  %v1062 = vunpack.c.l.b16 %v229
  %v1063 = vunpack.c.l.b16 %v230
  %v1064 = vunpack.c.l.b16 %v231
  %v1065 = vunpack.c.l.b16 %v232
  %v1066 = vunpack.c.l.b16 %v233
  %v1067 = vunpack.c.l.b16 %v234
  %v1068 = vunpack.c.l.b16 %v235
  %v1069 = vunpack.c.l.b16 %v236
  %v1070 = vunpack.c.l.b16 %v237
  %v1071 = vunpack.c.l.b16 %v238
  %v1072 = vunpack.c.l.b16 %v239
  %v1073 = vunpack.c.l.b16 %v240
  %v1074 = vunpack.c.l.b16 %v241
  %v1075 = vunpack.c.l.b16 %v242
  %v1076 = vunpack.c.l.b16 %v243
  %v1077 = vunpack.c.l.b16 %v244
  %v1078 = vunpack.c.l.b16 %v245
  %v1079 = vunpack.c.l.b16 %v246
  %v1080 = vunpack.c.l.b16 %v247
  %v1081 = vunpack.c.l.b16 %v248
  %v1082 = vunpack.c.l.b16 %v249
  %v1083 = vunpack.c.l.b16 %v250
  %v1084 = vunpack.c.l.b16 %v251
  %v1085 = vunpack.c.l.b16 %v252
  %v1086 = vunpack.c.l.b16 %v253
  %v1087 = vunpack.c.l.b16 %v254
  %v1088 = vunpack.c.l.b16 %v255
  %v1089 = vunpack.c.l.b16 %v256
  %v1090 = vunpack.c.l.b16 %v257
  %v1091 = vunpack.c.l.b16 %v258
  %v1092 = vunpack.c.l.b16 %v259
  %v1093 = vunpack.c.l.b16 %v260
  %v1094 = vunpack.c.l.b16 %v261
  %v1095 = vunpack.c.l.b16 %v262
  %v1096 = vunpack.c.l.b16 %v263
  %v1097 = vunpack.c.l.b16 %v264
  %v1098 = vunpack.c.l.b16 %v265
  %v1099 = vunpack.c.l.b16 %v266
  %v1100 = vunpack.c.l.b16 %v267
  %v1101 = vunpack.c.l.b16 %v268
  %v1102 = vunpack.c.l.b16 %v269
  %v1103 = vunpack.c.l.b16 %v270
  %v1104 = vunpack.c.l.b16 %v271
  %v1105 = vunpack.c.l.b16 %v272
  %v1106 = vunpack.c.l.b16 %v273
  %v1107 = vunpack.c.l.b16 %v274
  %v1108 = vunpack.c.l.b16 %v275
  %v1109 = vunpack.c.l.b16 %v276
  %v1110 = vunpack.c.l.b16 %v277
  %v1111 = vunpack.c.l.b16 %v278
  %v1112 = vunpack.c.l.b16 %v279
  %v1113 = vunpack.c.l.b16 %v280
  %v1114 = vunpack.c.l.b16 %v281
  %v1115 = vunpack.c.l.b16 %v282
  %v1116 = vunpack.c.l.b16 %v283
  %v1117 = vunpack.c.l.b16 %v284
  %v1118 = vpack.c.b16 %v939, %v938
  %v1119 = vpack.c.b16 %v941, %v940
  %v1120 = vpack.c.b16 %v943, %v942
  %v1121 = vpack.c.b16 %v945, %v944
  %v1122 = vpack.c.b16 %v947, %v946
  %v1123 = vpack.c.b16 %v949, %v948
  %v1124 = vpack.c.b16 %v951, %v950
  %v1125 = vpack.c.b16 %v953, %v952
  %v1126 = vpack.c.b16 %v955, %v954
  %v1127 = vpack.c.b16 %v957, %v956
  %v1128 = vpack.c.b16 %v959, %v958
  %v1129 = vpack.c.b16 %v961, %v960
  %v1130 = vpack.c.b16 %v963, %v962
  %v1131 = vpack.c.b16 %v965, %v964
  %v1132 = vpack.c.b16 %v967, %v966
  %v1133 = vpack.c.b16 %v969, %v968
  %v1134 = vpack.c.b16 %v971, %v970
  %v1135 = vpack.c.b16 %v973, %v972
  %v1136 = vpack.c.b16 %v975, %v974
  %v1137 = vpack.c.b16 %v977, %v976
  %v1138 = vpack.c.b16 %v979, %v978
  %v1139 = vpack.c.b16 %v981, %v980
  %v1140 = vpack.c.b16 %v983, %v982
  %v1141 = vpack.c.b16 %v985, %v984
  %v1142 = vpack.c.b16 %v987, %v986
  %v1143 = vpack.c.b16 %v989, %v988
  %v1144 = vpack.c.b16 %v991, %v990
  %v1145 = vpack.c.b16 %v993, %v992
  %v1146 = vpack.c.b16 %v995, %v994
  %v1147 = vpack.c.b16 %v997, %v996
  %v1148 = vpack.c.b16 %v999, %v998
  %v1149 = vpack.c.b16 %v1001, %v1000
  %v1150 = vpack.c.b16 %v1003, %v1002
  %v1151 = vpack.c.b16 %v1005, %v1004
  %v1152 = vpack.c.b16 %v1007, %v1006
  %v1153 = vpack.c.b16 %v1009, %v1008
  %v1154 = vpack.c.b16 %v1011, %v1010
  %v1155 = vpack.c.b16 %v1013, %v1012
  %v1156 = vpack.c.b16 %v1015, %v1014
  %v1157 = vpack.c.b16 %v1017, %v1016
  %v1158 = vpack.c.b16 %v1019, %v1018
  %v1159 = vpack.c.b16 %v1021, %v1020
  %v1160 = vpack.c.b16 %v1023, %v1022
  %v1161 = vpack.c.b16 %v1025, %v1024
  %v1162 = vpack.c.b16 %v1027, %v1026
  %v1163 = vpack.c.b16 %v1029, %v1028
  %v1164 = vpack.c.b16 %v1031, %v1030
  %v1165 = vpack.c.b16 %v1033, %v1032
  %v1166 = vpack.c.b16 %v1035, %v1034
  %v1167 = vpack.c.b16 %v1037, %v1036
  %v1168 = vpack.c.b16 %v1039, %v1038
  %v1169 = vpack.c.b16 %v1041, %v1040
  %v1170 = vpack.c.b16 %v1043, %v1042
  %v1171 = vpack.c.b16 %v1045, %v1044
  %v1172 = vpack.c.b16 %v1047, %v1046
  %v1173 = vpack.c.b16 %v1049, %v1048
  %v1174 = vpack.c.b16 %v1051, %v1050
  %v1175 = vpack.c.b16 %v1053, %v1052
  %v1176 = vpack.c.b16 %v1055, %v1054
  %v1177 = vpack.c.b16 %v1057, %v1056
  %v1178 = vpack.c.b16 %v1059, %v1058
  %v1179 = vpack.c.b16 %v1061, %v1060
  %v1180 = vpack.c.b16 %v1063, %v1062
  %v1181 = vpack.c.b16 %v1065, %v1064
  %v1182 = vpack.c.b16 %v1067, %v1066
  %v1183 = vpack.c.b16 %v1069, %v1068
  %v1184 = vpack.c.b16 %v1071, %v1070
  %v1185 = vpack.c.b16 %v1073, %v1072
  %v1186 = vpack.c.b16 %v1075, %v1074
  %v1187 = vpack.c.b16 %v1077, %v1076
  %v1188 = vpack.c.b16 %v1079, %v1078
  %v1189 = vpack.c.b16 %v1081, %v1080
  %v1190 = vpack.c.b16 %v1083, %v1082
  %v1191 = vpack.c.b16 %v1085, %v1084
  %v1192 = vpack.c.b16 %v1087, %v1086
  %v1193 = vpack.c.b16 %v1089, %v1088
  %v1194 = vpack.c.b16 %v1091, %v1090
  %v1195 = vpack.c.b16 %v1093, %v1092
  %v1196 = vpack.c.b16 %v1095, %v1094
  %v1197 = vpack.c.b16 %v1097, %v1096
  %v1198 = vpack.c.b16 %v1099, %v1098
  %v1199 = vpack.c.b16 %v1101, %v1100
  %v1200 = vpack.c.b16 %v1103, %v1102
  %v1201 = vpack.c.b16 %v1105, %v1104
  %v1202 = vpack.c.b16 %v1107, %v1106
  %v1203 = vpack.c.b16 %v1109, %v1108
  %v1204 = vpack.c.b16 %v1111, %v1110
  %v1205 = vpack.c.b16 %v1113, %v1112
  %v1206 = vpack.c.b16 %v1115, %v1114
  %v1207 = vpack.c.b16 %v1117, %v1116
  %vm1298 = vcmask 261120
  %v1300 = vsel %vm1298, %v608, 0
  %v1303 = vsel %vm1298, %v620, 0
  %v1306 = vsel %vm1298, %v632, 0
  %v1309 = vsel %vm1298, %v644, 0
  %v1312 = vsel %vm1298, %v656, 0
  %v1315 = vsel %vm1298, %v668, 0
  %v1318 = vsel %vm1298, %v680, 0
  %1320 = vmatpush.bf16.msra.mxu0 %v1125
  %1321 = vmatpush.bf16.msra.mxu0 %v1124
  %1322 = vmatpush.bf16.msra.mxu0 %v1123
  %1323 = vmatpush.bf16.msra.mxu0 %v1122
  %1324 = vmatpush.bf16.msra.mxu0 %v1121
  %1325 = vmatpush.bf16.msra.mxu0 %v1120
  %1326 = vmatpush.bf16.msra.mxu0 %v1119
  %1327 = vmatpush.bf16.msra.mxu0 %v1118
  %1328 = vmatmul.bf16.gmra.mxu0 %v597
  %v1329 = vpop.f32.mrf.mxu0
  %v1330 = vadd.f32 %v301, %v1329
  %v1331 = vpop.f32.mrf.mxu0
  %v1332 = vadd.f32 %v306, %v1331
  %1333 = vmatmul.bf16.gmra.mxu0 %v609
  %v1334 = vpop.f32.mrf.mxu0
  %v1335 = vadd.f32 %v311, %v1334
  %v1336 = vpop.f32.mrf.mxu0
  %v1337 = vadd.f32 %v316, %v1336
  %1338 = vmatmul.bf16.gmra.mxu0 %v621
  %v1339 = vpop.f32.mrf.mxu0
  %v1340 = vadd.f32 %v321, %v1339
  %v1341 = vpop.f32.mrf.mxu0
  %v1342 = vadd.f32 %v326, %v1341
  %1343 = vmatmul.bf16.gmra.mxu0 %v633
  %v1344 = vpop.f32.mrf.mxu0
  %v1345 = vadd.f32 %v331, %v1344
  %v1346 = vpop.f32.mrf.mxu0
  %v1347 = vadd.f32 %v336, %v1346
  %1348 = vmatmul.bf16.gmra.mxu0 %v645
  %v1349 = vpop.f32.mrf.mxu0
  %v1350 = vadd.f32 %v341, %v1349
  %v1351 = vpop.f32.mrf.mxu0
  %v1352 = vadd.f32 %v346, %v1351
  %1353 = vmatmul.bf16.gmra.mxu0 %v657
  %v1354 = vpop.f32.mrf.mxu0
  %v1355 = vadd.f32 %v351, %v1354
  %v1356 = vpop.f32.mrf.mxu0
  %v1357 = vadd.f32 %v356, %v1356
  %1358 = vmatmul.bf16.gmra.mxu0 %v669
  %v1359 = vpop.f32.mrf.mxu0
  %v1360 = vadd.f32 %v361, %v1359
  %v1361 = vpop.f32.mrf.mxu0
  %1362 = vdwg.mxu0
  %1363 = vmatpush.bf16.msra.mxu0 %v1133
  %1364 = vmatpush.bf16.msra.mxu0 %v1132
  %1365 = vmatpush.bf16.msra.mxu0 %v1131
  %1366 = vmatpush.bf16.msra.mxu0 %v1130
  %1367 = vmatpush.bf16.msra.mxu0 %v1129
  %1368 = vmatpush.bf16.msra.mxu0 %v1128
  %1369 = vmatpush.bf16.msra.mxu0 %v1127
  %1370 = vmatpush.bf16.msra.mxu0 %v1126
  %1371 = vmatmul.bf16.gmra.mxu0 %v598
  %v1372 = vpop.f32.mrf.mxu0
  %v1373 = vadd.f32 %v1330, %v1372
  %v1374 = vpop.f32.mrf.mxu0
  %v1375 = vadd.f32 %v1332, %v1374
  %1376 = vmatmul.bf16.gmra.mxu0 %v610
  %v1377 = vpop.f32.mrf.mxu0
  %v1378 = vadd.f32 %v1335, %v1377
  %v1379 = vpop.f32.mrf.mxu0
  %v1380 = vadd.f32 %v1337, %v1379
  %1381 = vmatmul.bf16.gmra.mxu0 %v622
  %v1382 = vpop.f32.mrf.mxu0
  %v1383 = vadd.f32 %v1340, %v1382
  %v1384 = vpop.f32.mrf.mxu0
  %v1385 = vadd.f32 %v1342, %v1384
  %1386 = vmatmul.bf16.gmra.mxu0 %v634
  %v1387 = vpop.f32.mrf.mxu0
  %v1388 = vadd.f32 %v1345, %v1387
  %v1389 = vpop.f32.mrf.mxu0
  %v1390 = vadd.f32 %v1347, %v1389
  %1391 = vmatmul.bf16.gmra.mxu0 %v646
  %v1392 = vpop.f32.mrf.mxu0
  %v1393 = vadd.f32 %v1350, %v1392
  %v1394 = vpop.f32.mrf.mxu0
  %v1395 = vadd.f32 %v1352, %v1394
  %1396 = vmatmul.bf16.gmra.mxu0 %v658
  %v1397 = vpop.f32.mrf.mxu0
  %v1398 = vadd.f32 %v1355, %v1397
  %v1399 = vpop.f32.mrf.mxu0
  %v1400 = vadd.f32 %v1357, %v1399
  %1401 = vmatmul.bf16.gmra.mxu0 %v670
  %v1402 = vpop.f32.mrf.mxu0
  %v1403 = vadd.f32 %v1360, %v1402
  %v1404 = vpop.f32.mrf.mxu0
  %1405 = vdwg.mxu0
  %1406 = vmatpush.bf16.msra.mxu0 %v1141
  %1407 = vmatpush.bf16.msra.mxu0 %v1140
  %1408 = vmatpush.bf16.msra.mxu0 %v1139
  %1409 = vmatpush.bf16.msra.mxu0 %v1138
  %1410 = vmatpush.bf16.msra.mxu0 %v1137
  %1411 = vmatpush.bf16.msra.mxu0 %v1136
  %1412 = vmatpush.bf16.msra.mxu0 %v1135
  %1413 = vmatpush.bf16.msra.mxu0 %v1134
  %1414 = vmatmul.bf16.gmra.mxu0 %v599
  %v1415 = vpop.f32.mrf.mxu0
  %v1416 = vadd.f32 %v1373, %v1415
  %v1417 = vpop.f32.mrf.mxu0
  %v1418 = vadd.f32 %v1375, %v1417
  %1419 = vmatmul.bf16.gmra.mxu0 %v611
  %v1420 = vpop.f32.mrf.mxu0
  %v1421 = vadd.f32 %v1378, %v1420
  %v1422 = vpop.f32.mrf.mxu0
  %v1423 = vadd.f32 %v1380, %v1422
  %1424 = vmatmul.bf16.gmra.mxu0 %v623
  %v1425 = vpop.f32.mrf.mxu0
  %v1426 = vadd.f32 %v1383, %v1425
  %v1427 = vpop.f32.mrf.mxu0
  %v1428 = vadd.f32 %v1385, %v1427
  %1429 = vmatmul.bf16.gmra.mxu0 %v635
  %v1430 = vpop.f32.mrf.mxu0
  %v1431 = vadd.f32 %v1388, %v1430
  %v1432 = vpop.f32.mrf.mxu0
  %v1433 = vadd.f32 %v1390, %v1432
  %1434 = vmatmul.bf16.gmra.mxu0 %v647
  %v1435 = vpop.f32.mrf.mxu0
  %v1436 = vadd.f32 %v1393, %v1435
  %v1437 = vpop.f32.mrf.mxu0
  %v1438 = vadd.f32 %v1395, %v1437
  %1439 = vmatmul.bf16.gmra.mxu0 %v659
  %v1440 = vpop.f32.mrf.mxu0
  %v1441 = vadd.f32 %v1398, %v1440
  %v1442 = vpop.f32.mrf.mxu0
  %v1443 = vadd.f32 %v1400, %v1442
  %1444 = vmatmul.bf16.gmra.mxu0 %v671
  %v1445 = vpop.f32.mrf.mxu0
  %v1446 = vadd.f32 %v1403, %v1445
  %v1447 = vpop.f32.mrf.mxu0
  %1448 = vdwg.mxu0
  %1449 = vmatpush.bf16.msra.mxu0 %v1149
  %1450 = vmatpush.bf16.msra.mxu0 %v1148
  %1451 = vmatpush.bf16.msra.mxu0 %v1147
  %1452 = vmatpush.bf16.msra.mxu0 %v1146
  %1453 = vmatpush.bf16.msra.mxu0 %v1145
  %1454 = vmatpush.bf16.msra.mxu0 %v1144
  %1455 = vmatpush.bf16.msra.mxu0 %v1143
  %1456 = vmatpush.bf16.msra.mxu0 %v1142
  %1457 = vmatmul.bf16.gmra.mxu0 %v600
  %v1458 = vpop.f32.mrf.mxu0
  %v1459 = vadd.f32 %v1416, %v1458
  %v1460 = vpop.f32.mrf.mxu0
  %v1461 = vadd.f32 %v1418, %v1460
  %1462 = vmatmul.bf16.gmra.mxu0 %v612
  %v1463 = vpop.f32.mrf.mxu0
  %v1464 = vadd.f32 %v1421, %v1463
  %v1465 = vpop.f32.mrf.mxu0
  %v1466 = vadd.f32 %v1423, %v1465
  %1467 = vmatmul.bf16.gmra.mxu0 %v624
  %v1468 = vpop.f32.mrf.mxu0
  %v1469 = vadd.f32 %v1426, %v1468
  %v1470 = vpop.f32.mrf.mxu0
  %v1471 = vadd.f32 %v1428, %v1470
  %1472 = vmatmul.bf16.gmra.mxu0 %v636
  %v1473 = vpop.f32.mrf.mxu0
  %v1474 = vadd.f32 %v1431, %v1473
  %v1475 = vpop.f32.mrf.mxu0
  %v1476 = vadd.f32 %v1433, %v1475
  %1477 = vmatmul.bf16.gmra.mxu0 %v648
  %v1478 = vpop.f32.mrf.mxu0
  %v1479 = vadd.f32 %v1436, %v1478
  %v1480 = vpop.f32.mrf.mxu0
  %v1481 = vadd.f32 %v1438, %v1480
  %1482 = vmatmul.bf16.gmra.mxu0 %v660
  %v1483 = vpop.f32.mrf.mxu0
  %v1484 = vadd.f32 %v1441, %v1483
  %v1485 = vpop.f32.mrf.mxu0
  %v1486 = vadd.f32 %v1443, %v1485
  %1487 = vmatmul.bf16.gmra.mxu0 %v672
  %v1488 = vpop.f32.mrf.mxu0
  %v1489 = vadd.f32 %v1446, %v1488
  %v1490 = vpop.f32.mrf.mxu0
  %1491 = vdwg.mxu0
  %1492 = vmatpush.bf16.msra.mxu0 %v1157
  %1493 = vmatpush.bf16.msra.mxu0 %v1156
  %1494 = vmatpush.bf16.msra.mxu0 %v1155
  %1495 = vmatpush.bf16.msra.mxu0 %v1154
  %1496 = vmatpush.bf16.msra.mxu0 %v1153
  %1497 = vmatpush.bf16.msra.mxu0 %v1152
  %1498 = vmatpush.bf16.msra.mxu0 %v1151
  %1499 = vmatpush.bf16.msra.mxu0 %v1150
  %1500 = vmatmul.bf16.gmra.mxu0 %v601
  %v1501 = vpop.f32.mrf.mxu0
  %v1502 = vadd.f32 %v1459, %v1501
  %v1503 = vpop.f32.mrf.mxu0
  %v1504 = vadd.f32 %v1461, %v1503
  %1505 = vmatmul.bf16.gmra.mxu0 %v613
  %v1506 = vpop.f32.mrf.mxu0
  %v1507 = vadd.f32 %v1464, %v1506
  %v1508 = vpop.f32.mrf.mxu0
  %v1509 = vadd.f32 %v1466, %v1508
  %1510 = vmatmul.bf16.gmra.mxu0 %v625
  %v1511 = vpop.f32.mrf.mxu0
  %v1512 = vadd.f32 %v1469, %v1511
  %v1513 = vpop.f32.mrf.mxu0
  %v1514 = vadd.f32 %v1471, %v1513
  %1515 = vmatmul.bf16.gmra.mxu0 %v637
  %v1516 = vpop.f32.mrf.mxu0
  %v1517 = vadd.f32 %v1474, %v1516
  %v1518 = vpop.f32.mrf.mxu0
  %v1519 = vadd.f32 %v1476, %v1518
  %1520 = vmatmul.bf16.gmra.mxu0 %v649
  %v1521 = vpop.f32.mrf.mxu0
  %v1522 = vadd.f32 %v1479, %v1521
  %v1523 = vpop.f32.mrf.mxu0
  %v1524 = vadd.f32 %v1481, %v1523
  %1525 = vmatmul.bf16.gmra.mxu0 %v661
  %v1526 = vpop.f32.mrf.mxu0
  %v1527 = vadd.f32 %v1484, %v1526
  %v1528 = vpop.f32.mrf.mxu0
  %v1529 = vadd.f32 %v1486, %v1528
  %1530 = vmatmul.bf16.gmra.mxu0 %v673
  %v1531 = vpop.f32.mrf.mxu0
  %v1532 = vadd.f32 %v1489, %v1531
  %v1533 = vpop.f32.mrf.mxu0
  %1534 = vdwg.mxu0
  %1535 = vmatpush.bf16.msra.mxu0 %v1165
  %1536 = vmatpush.bf16.msra.mxu0 %v1164
  %1537 = vmatpush.bf16.msra.mxu0 %v1163
  %1538 = vmatpush.bf16.msra.mxu0 %v1162
  %1539 = vmatpush.bf16.msra.mxu0 %v1161
  %1540 = vmatpush.bf16.msra.mxu0 %v1160
  %1541 = vmatpush.bf16.msra.mxu0 %v1159
  %1542 = vmatpush.bf16.msra.mxu0 %v1158
  %1543 = vmatmul.bf16.gmra.mxu0 %v602
  %v1544 = vpop.f32.mrf.mxu0
  %v1545 = vadd.f32 %v1502, %v1544
  %v1546 = vpop.f32.mrf.mxu0
  %v1547 = vadd.f32 %v1504, %v1546
  %1548 = vmatmul.bf16.gmra.mxu0 %v614
  %v1549 = vpop.f32.mrf.mxu0
  %v1550 = vadd.f32 %v1507, %v1549
  %v1551 = vpop.f32.mrf.mxu0
  %v1552 = vadd.f32 %v1509, %v1551
  %1553 = vmatmul.bf16.gmra.mxu0 %v626
  %v1554 = vpop.f32.mrf.mxu0
  %v1555 = vadd.f32 %v1512, %v1554
  %v1556 = vpop.f32.mrf.mxu0
  %v1557 = vadd.f32 %v1514, %v1556
  %1558 = vmatmul.bf16.gmra.mxu0 %v638
  %v1559 = vpop.f32.mrf.mxu0
  %v1560 = vadd.f32 %v1517, %v1559
  %v1561 = vpop.f32.mrf.mxu0
  %v1562 = vadd.f32 %v1519, %v1561
  %1563 = vmatmul.bf16.gmra.mxu0 %v650
  %v1564 = vpop.f32.mrf.mxu0
  %v1565 = vadd.f32 %v1522, %v1564
  %v1566 = vpop.f32.mrf.mxu0
  %v1567 = vadd.f32 %v1524, %v1566
  %1568 = vmatmul.bf16.gmra.mxu0 %v662
  %v1569 = vpop.f32.mrf.mxu0
  %v1570 = vadd.f32 %v1527, %v1569
  %v1571 = vpop.f32.mrf.mxu0
  %v1572 = vadd.f32 %v1529, %v1571
  %1573 = vmatmul.bf16.gmra.mxu0 %v674
  %v1574 = vpop.f32.mrf.mxu0
  %v1575 = vadd.f32 %v1532, %v1574
  %v1576 = vpop.f32.mrf.mxu0
  %1577 = vdwg.mxu0
  %1578 = vmatpush.bf16.msra.mxu0 %v1173
  %1579 = vmatpush.bf16.msra.mxu0 %v1172
  %1580 = vmatpush.bf16.msra.mxu0 %v1171
  %1581 = vmatpush.bf16.msra.mxu0 %v1170
  %1582 = vmatpush.bf16.msra.mxu0 %v1169
  %1583 = vmatpush.bf16.msra.mxu0 %v1168
  %1584 = vmatpush.bf16.msra.mxu0 %v1167
  %1585 = vmatpush.bf16.msra.mxu0 %v1166
  %1586 = vmatmul.bf16.gmra.mxu0 %v603
  %v1587 = vpop.f32.mrf.mxu0
  %v1588 = vadd.f32 %v1545, %v1587
  %v1589 = vpop.f32.mrf.mxu0
  %v1590 = vadd.f32 %v1547, %v1589
  %1591 = vmatmul.bf16.gmra.mxu0 %v615
  %v1592 = vpop.f32.mrf.mxu0
  %v1593 = vadd.f32 %v1550, %v1592
  %v1594 = vpop.f32.mrf.mxu0
  %v1595 = vadd.f32 %v1552, %v1594
  %1596 = vmatmul.bf16.gmra.mxu0 %v627
  %v1597 = vpop.f32.mrf.mxu0
  %v1598 = vadd.f32 %v1555, %v1597
  %v1599 = vpop.f32.mrf.mxu0
  %v1600 = vadd.f32 %v1557, %v1599
  %1601 = vmatmul.bf16.gmra.mxu0 %v639
  %v1602 = vpop.f32.mrf.mxu0
  %v1603 = vadd.f32 %v1560, %v1602
  %v1604 = vpop.f32.mrf.mxu0
  %v1605 = vadd.f32 %v1562, %v1604
  %1606 = vmatmul.bf16.gmra.mxu0 %v651
  %v1607 = vpop.f32.mrf.mxu0
  %v1608 = vadd.f32 %v1565, %v1607
  %v1609 = vpop.f32.mrf.mxu0
  %v1610 = vadd.f32 %v1567, %v1609
  %1611 = vmatmul.bf16.gmra.mxu0 %v663
  %v1612 = vpop.f32.mrf.mxu0
  %v1613 = vadd.f32 %v1570, %v1612
  %v1614 = vpop.f32.mrf.mxu0
  %v1615 = vadd.f32 %v1572, %v1614
  %1616 = vmatmul.bf16.gmra.mxu0 %v675
  %v1617 = vpop.f32.mrf.mxu0
  %v1618 = vadd.f32 %v1575, %v1617
  %v1619 = vpop.f32.mrf.mxu0
  %1620 = vdwg.mxu0
  %1621 = vmatpush.bf16.msra.mxu0 %v1181
  %1622 = vmatpush.bf16.msra.mxu0 %v1180
  %1623 = vmatpush.bf16.msra.mxu0 %v1179
  %1624 = vmatpush.bf16.msra.mxu0 %v1178
  %1625 = vmatpush.bf16.msra.mxu0 %v1177
  %1626 = vmatpush.bf16.msra.mxu0 %v1176
  %1627 = vmatpush.bf16.msra.mxu0 %v1175
  %1628 = vmatpush.bf16.msra.mxu0 %v1174
  %1629 = vmatmul.bf16.gmra.mxu0 %v604
  %v1630 = vpop.f32.mrf.mxu0
  %v1631 = vadd.f32 %v1588, %v1630
  %v1632 = vpop.f32.mrf.mxu0
  %v1633 = vadd.f32 %v1590, %v1632
  %1634 = vmatmul.bf16.gmra.mxu0 %v616
  %v1635 = vpop.f32.mrf.mxu0
  %v1636 = vadd.f32 %v1593, %v1635
  %v1637 = vpop.f32.mrf.mxu0
  %v1638 = vadd.f32 %v1595, %v1637
  %1639 = vmatmul.bf16.gmra.mxu0 %v628
  %v1640 = vpop.f32.mrf.mxu0
  %v1641 = vadd.f32 %v1598, %v1640
  %v1642 = vpop.f32.mrf.mxu0
  %v1643 = vadd.f32 %v1600, %v1642
  %1644 = vmatmul.bf16.gmra.mxu0 %v640
  %v1645 = vpop.f32.mrf.mxu0
  %v1646 = vadd.f32 %v1603, %v1645
  %v1647 = vpop.f32.mrf.mxu0
  %v1648 = vadd.f32 %v1605, %v1647
  %1649 = vmatmul.bf16.gmra.mxu0 %v652
  %v1650 = vpop.f32.mrf.mxu0
  %v1651 = vadd.f32 %v1608, %v1650
  %v1652 = vpop.f32.mrf.mxu0
  %v1653 = vadd.f32 %v1610, %v1652
  %1654 = vmatmul.bf16.gmra.mxu0 %v664
  %v1655 = vpop.f32.mrf.mxu0
  %v1656 = vadd.f32 %v1613, %v1655
  %v1657 = vpop.f32.mrf.mxu0
  %v1658 = vadd.f32 %v1615, %v1657
  %1659 = vmatmul.bf16.gmra.mxu0 %v676
  %v1660 = vpop.f32.mrf.mxu0
  %v1661 = vadd.f32 %v1618, %v1660
  %v1662 = vpop.f32.mrf.mxu0
  %1663 = vdwg.mxu0
  %1664 = vmatpush.bf16.msra.mxu0 %v1189
  %1665 = vmatpush.bf16.msra.mxu0 %v1188
  %1666 = vmatpush.bf16.msra.mxu0 %v1187
  %1667 = vmatpush.bf16.msra.mxu0 %v1186
  %1668 = vmatpush.bf16.msra.mxu0 %v1185
  %1669 = vmatpush.bf16.msra.mxu0 %v1184
  %1670 = vmatpush.bf16.msra.mxu0 %v1183
  %1671 = vmatpush.bf16.msra.mxu0 %v1182
  %1672 = vmatmul.bf16.gmra.mxu0 %v605
  %v1673 = vpop.f32.mrf.mxu0
  %v1674 = vadd.f32 %v1631, %v1673
  %v1675 = vpop.f32.mrf.mxu0
  %v1676 = vadd.f32 %v1633, %v1675
  %1677 = vmatmul.bf16.gmra.mxu0 %v617
  %v1678 = vpop.f32.mrf.mxu0
  %v1679 = vadd.f32 %v1636, %v1678
  %v1680 = vpop.f32.mrf.mxu0
  %v1681 = vadd.f32 %v1638, %v1680
  %1682 = vmatmul.bf16.gmra.mxu0 %v629
  %v1683 = vpop.f32.mrf.mxu0
  %v1684 = vadd.f32 %v1641, %v1683
  %v1685 = vpop.f32.mrf.mxu0
  %v1686 = vadd.f32 %v1643, %v1685
  %1687 = vmatmul.bf16.gmra.mxu0 %v641
  %v1688 = vpop.f32.mrf.mxu0
  %v1689 = vadd.f32 %v1646, %v1688
  %v1690 = vpop.f32.mrf.mxu0
  %v1691 = vadd.f32 %v1648, %v1690
  %1692 = vmatmul.bf16.gmra.mxu0 %v653
  %v1693 = vpop.f32.mrf.mxu0
  %v1694 = vadd.f32 %v1651, %v1693
  %v1695 = vpop.f32.mrf.mxu0
  %v1696 = vadd.f32 %v1653, %v1695
  %1697 = vmatmul.bf16.gmra.mxu0 %v665
  %v1698 = vpop.f32.mrf.mxu0
  %v1699 = vadd.f32 %v1656, %v1698
  %v1700 = vpop.f32.mrf.mxu0
  %v1701 = vadd.f32 %v1658, %v1700
  %1702 = vmatmul.bf16.gmra.mxu0 %v677
  %v1703 = vpop.f32.mrf.mxu0
  %v1704 = vadd.f32 %v1661, %v1703
  %v1705 = vpop.f32.mrf.mxu0
  %1706 = vdwg.mxu0
  %1707 = vmatpush.bf16.msra.mxu0 %v1197
  %1708 = vmatpush.bf16.msra.mxu0 %v1196
  %1709 = vmatpush.bf16.msra.mxu0 %v1195
  %1710 = vmatpush.bf16.msra.mxu0 %v1194
  %1711 = vmatpush.bf16.msra.mxu0 %v1193
  %1712 = vmatpush.bf16.msra.mxu0 %v1192
  %1713 = vmatpush.bf16.msra.mxu0 %v1191
  %1714 = vmatpush.bf16.msra.mxu0 %v1190
  %1715 = vmatmul.bf16.gmra.mxu0 %v606
  %v1716 = vpop.f32.mrf.mxu0
  %v1717 = vadd.f32 %v1674, %v1716
  %v1718 = vpop.f32.mrf.mxu0
  %v1719 = vadd.f32 %v1676, %v1718
  %1720 = vmatmul.bf16.gmra.mxu0 %v618
  %v1721 = vpop.f32.mrf.mxu0
  %v1722 = vadd.f32 %v1679, %v1721
  %v1723 = vpop.f32.mrf.mxu0
  %v1724 = vadd.f32 %v1681, %v1723
  %1725 = vmatmul.bf16.gmra.mxu0 %v630
  %v1726 = vpop.f32.mrf.mxu0
  %v1727 = vadd.f32 %v1684, %v1726
  %v1728 = vpop.f32.mrf.mxu0
  %v1729 = vadd.f32 %v1686, %v1728
  %1730 = vmatmul.bf16.gmra.mxu0 %v642
  %v1731 = vpop.f32.mrf.mxu0
  %v1732 = vadd.f32 %v1689, %v1731
  %v1733 = vpop.f32.mrf.mxu0
  %v1734 = vadd.f32 %v1691, %v1733
  %1735 = vmatmul.bf16.gmra.mxu0 %v654
  %v1736 = vpop.f32.mrf.mxu0
  %v1737 = vadd.f32 %v1694, %v1736
  %v1738 = vpop.f32.mrf.mxu0
  %v1739 = vadd.f32 %v1696, %v1738
  %1740 = vmatmul.bf16.gmra.mxu0 %v666
  %v1741 = vpop.f32.mrf.mxu0
  %v1742 = vadd.f32 %v1699, %v1741
  %v1743 = vpop.f32.mrf.mxu0
  %v1744 = vadd.f32 %v1701, %v1743
  %1745 = vmatmul.bf16.gmra.mxu0 %v678
  %v1746 = vpop.f32.mrf.mxu0
  %v1747 = vadd.f32 %v1704, %v1746
  %v1748 = vpop.f32.mrf.mxu0
  %1749 = vdwg.mxu0
  %1750 = vmatpush.bf16.msra.mxu0 %v1205
  %1751 = vmatpush.bf16.msra.mxu0 %v1204
  %1752 = vmatpush.bf16.msra.mxu0 %v1203
  %1753 = vmatpush.bf16.msra.mxu0 %v1202
  %1754 = vmatpush.bf16.msra.mxu0 %v1201
  %1755 = vmatpush.bf16.msra.mxu0 %v1200
  %1756 = vmatpush.bf16.msra.mxu0 %v1199
  %1757 = vmatpush.bf16.msra.mxu0 %v1198
  %1758 = vmatmul.bf16.gmra.mxu0 %v607
  %v1759 = vpop.f32.mrf.mxu0
  %v1760 = vadd.f32 %v1717, %v1759
  %v1761 = vpop.f32.mrf.mxu0
  %v1762 = vadd.f32 %v1719, %v1761
  %1763 = vmatmul.bf16.gmra.mxu0 %v619
  %v1764 = vpop.f32.mrf.mxu0
  %v1765 = vadd.f32 %v1722, %v1764
  %v1766 = vpop.f32.mrf.mxu0
  %v1767 = vadd.f32 %v1724, %v1766
  %1768 = vmatmul.bf16.gmra.mxu0 %v631
  %v1769 = vpop.f32.mrf.mxu0
  %v1770 = vadd.f32 %v1727, %v1769
  %v1771 = vpop.f32.mrf.mxu0
  %v1772 = vadd.f32 %v1729, %v1771
  %1773 = vmatmul.bf16.gmra.mxu0 %v643
  %v1774 = vpop.f32.mrf.mxu0
  %v1775 = vadd.f32 %v1732, %v1774
  %v1776 = vpop.f32.mrf.mxu0
  %v1777 = vadd.f32 %v1734, %v1776
  %1778 = vmatmul.bf16.gmra.mxu0 %v655
  %v1779 = vpop.f32.mrf.mxu0
  %v1780 = vadd.f32 %v1737, %v1779
  %v1781 = vpop.f32.mrf.mxu0
  %v1782 = vadd.f32 %v1739, %v1781
  %1783 = vmatmul.bf16.gmra.mxu0 %v667
  %v1784 = vpop.f32.mrf.mxu0
  %v1785 = vadd.f32 %v1742, %v1784
  %v1786 = vpop.f32.mrf.mxu0
  %v1787 = vadd.f32 %v1744, %v1786
  %1788 = vmatmul.bf16.gmra.mxu0 %v679
  %v1789 = vpop.f32.mrf.mxu0
  %v1790 = vadd.f32 %v1747, %v1789
  %v1791 = vpop.f32.mrf.mxu0
  %1792 = vdwg.mxu0
  %1793 = vmatpush.bf16.msra.mxu0 0
  %1794 = vmatpush.bf16.msra.mxu0 0
  %1795 = vmatpush.bf16.msra.mxu0 0
  %1796 = vmatpush.bf16.msra.mxu0 0
  %1797 = vmatpush.bf16.msra.mxu0 0
  %1798 = vmatpush.bf16.msra.mxu0 0
  %1799 = vmatpush.bf16.msra.mxu0 %v1207
  %1800 = vmatpush.bf16.msra.mxu0 %v1206
  %1801 = vmatmul.bf16.gmra.mxu0 %v1300
  %v1802 = vpop.f32.mrf.mxu0
  %v1803 = vadd.f32 %v1760, %v1802
  %v1804 = vpop.f32.mrf.mxu0
  %v1805 = vadd.f32 %v1762, %v1804
  %1806 = vmatmul.bf16.gmra.mxu0 %v1303
  %v1807 = vpop.f32.mrf.mxu0
  %v1808 = vadd.f32 %v1765, %v1807
  %v1809 = vpop.f32.mrf.mxu0
  %v1810 = vadd.f32 %v1767, %v1809
  %1811 = vmatmul.bf16.gmra.mxu0 %v1306
  %v1812 = vpop.f32.mrf.mxu0
  %v1813 = vadd.f32 %v1770, %v1812
  %v1814 = vpop.f32.mrf.mxu0
  %v1815 = vadd.f32 %v1772, %v1814
  %1816 = vmatmul.bf16.gmra.mxu0 %v1309
  %v1817 = vpop.f32.mrf.mxu0
  %v1818 = vadd.f32 %v1775, %v1817
  %v1819 = vpop.f32.mrf.mxu0
  %v1820 = vadd.f32 %v1777, %v1819
  %1821 = vmatmul.bf16.gmra.mxu0 %v1312
  %v1822 = vpop.f32.mrf.mxu0
  %v1823 = vadd.f32 %v1780, %v1822
  %v1824 = vpop.f32.mrf.mxu0
  %v1825 = vadd.f32 %v1782, %v1824
  %1826 = vmatmul.bf16.gmra.mxu0 %v1315
  %v1827 = vpop.f32.mrf.mxu0
  %v1828 = vadd.f32 %v1785, %v1827
  %v1829 = vpop.f32.mrf.mxu0
  %v1830 = vadd.f32 %v1787, %v1829
  %1831 = vmatmul.bf16.gmra.mxu0 %v1318
  %v1832 = vpop.f32.mrf.mxu0
  %v1833 = vadd.f32 %v1790, %v1832
  %v1834 = vpop.f32.mrf.mxu0
  %1835 = vdwg.mxu0
  %v1836 = vmax.f32 %v1803, 0.0
  %v1837 = vmax.f32 %v1805, 0.0
  %v1838 = vmax.f32 %v1808, 0.0
  %v1839 = vmax.f32 %v1810, 0.0
  %v1840 = vmax.f32 %v1813, 0.0
  %v1841 = vmax.f32 %v1815, 0.0
  %v1842 = vmax.f32 %v1818, 0.0
  %v1843 = vmax.f32 %v1820, 0.0
  %v1844 = vmax.f32 %v1823, 0.0
  %v1845 = vmax.f32 %v1825, 0.0
  %v1846 = vmax.f32 %v1828, 0.0
  %v1847 = vmax.f32 %v1830, 0.0
  %v1848 = vmax.f32 %v1833, 0.0
  %v1849 = vpack.c.bf16 %v1837, %v1836
  %v1850 = vpack.c.bf16 %v1839, %v1838
  %v1851 = vpack.c.bf16 %v1841, %v1840
  %v1852 = vpack.c.bf16 %v1843, %v1842
  %v1853 = vpack.c.bf16 %v1845, %v1844
  %v1854 = vpack.c.bf16 %v1847, %v1846
  %v1855 = vpack.c.bf16 %v1848, %v1848
  %v1856 = vld [vmem:[%s3] sm:$0xf]
  %v1857 = vld [vmem:[%s3 + $0x4] sm:$0xf]
  %v1858 = vld [vmem:[%s3 + $0x8] sm:$0xf]
  %v1859 = vld [vmem:[%s3 + $0xc] sm:$0xf]
  %v1860 = vld [vmem:[%s3 + $0x10] sm:$0xf]
  %v1861 = vld [vmem:[%s3 + $0x14] sm:$0xf]
  %v1862 = vld [vmem:[%s3 + $0x18] sm:$0xf]
  %v1863 = vld [vmem:[%s3 + $0x1c] sm:$0xf]
  %v1864 = vld [vmem:[%s3 + $0x20] sm:$0xf]
  %v1865 = vld [vmem:[%s3 + $0x24] sm:$0xf]
  %v1866 = vld [vmem:[%s3 + $0x28] sm:$0xf]
  %v1867 = vld [vmem:[%s3 + $0x2c] sm:$0xf]
  %v1868 = vld [vmem:[%s3 + $0x30] sm:$0x3]
  %v1869 = vld [vmem:[%s4] sm:$0xff]
  %v1870 = vld [vmem:[%s4 + $0x8] sm:$0xff]
  %v1871 = vld [vmem:[%s4 + $0x10] sm:$0xff]
  %v1872 = vld [vmem:[%s4 + $0x18] sm:$0xff]
  %v1873 = vld [vmem:[%s4 + $0x20] sm:$0xff]
  %v1874 = vld [vmem:[%s4 + $0x28] sm:$0xff]
  %v1875 = vld [vmem:[%s4 + $0x30] sm:$0xff]
  %v1876 = vld [vmem:[%s4 + $0x38] sm:$0xff]
  %v1877 = vld [vmem:[%s4 + $0x40] sm:$0xff]
  %v1878 = vld [vmem:[%s4 + $0x48] sm:$0xff]
  %v1879 = vld [vmem:[%s4 + $0x50] sm:$0xff]
  %v1880 = vld [vmem:[%s4 + $0x58] sm:$0xff]
  %v1881 = vld [vmem:[%s4 + $0x60] sm:$0xf]
  %1883 = vset.pattern.permute.xlu0 0
  %1884 = vperm.xlu0 %1883, %v1869
  %v1885 = vpop.permute.xlu0 %1884
  %1888 = vset.pattern.permute.xlu0 0
  %1889 = vperm.xlu0 %1888, %v1870
  %v1890 = vpop.permute.xlu0 %1889
  %1893 = vset.pattern.permute.xlu0 0
  %1894 = vperm.xlu0 %1893, %v1871
  %v1895 = vpop.permute.xlu0 %1894
  %1898 = vset.pattern.permute.xlu0 0
  %1899 = vperm.xlu0 %1898, %v1872
  %v1900 = vpop.permute.xlu0 %1899
  %1903 = vset.pattern.permute.xlu0 0
  %1904 = vperm.xlu0 %1903, %v1873
  %v1905 = vpop.permute.xlu0 %1904
  %1908 = vset.pattern.permute.xlu0 0
  %1909 = vperm.xlu0 %1908, %v1874
  %v1910 = vpop.permute.xlu0 %1909
  %1913 = vset.pattern.permute.xlu0 0
  %1914 = vperm.xlu0 %1913, %v1875
  %v1915 = vpop.permute.xlu0 %1914
  %1918 = vset.pattern.permute.xlu0 0
  %1919 = vperm.xlu0 %1918, %v1876
  %v1920 = vpop.permute.xlu0 %1919
  %1923 = vset.pattern.permute.xlu0 0
  %1924 = vperm.xlu0 %1923, %v1877
  %v1925 = vpop.permute.xlu0 %1924
  %1928 = vset.pattern.permute.xlu0 0
  %1929 = vperm.xlu0 %1928, %v1878
  %v1930 = vpop.permute.xlu0 %1929
  %1933 = vset.pattern.permute.xlu0 0
  %1934 = vperm.xlu0 %1933, %v1879
  %v1935 = vpop.permute.xlu0 %1934
  %1938 = vset.pattern.permute.xlu0 0
  %1939 = vperm.xlu0 %1938, %v1880
  %v1940 = vpop.permute.xlu0 %1939
  %1943 = vset.pattern.permute.xlu0 0
  %1944 = vperm.xlu0 %1943, %v1881
  %v1945 = vpop.permute.xlu0 %1944
  %v1960 = vunpack.c.l.b16 %v1856
  %v1961 = vunpack.c.l.b16 %v1857
  %v1962 = vunpack.c.l.b16 %v1858
  %v1963 = vunpack.c.l.b16 %v1859
  %v1964 = vunpack.c.l.b16 %v1860
  %v1965 = vunpack.c.l.b16 %v1861
  %v1966 = vunpack.c.l.b16 %v1862
  %v1967 = vunpack.c.l.b16 %v1863
  %v1968 = vunpack.c.l.b16 %v1864
  %v1969 = vunpack.c.l.b16 %v1865
  %v1970 = vunpack.c.l.b16 %v1866
  %v1971 = vunpack.c.l.b16 %v1867
  %v1972 = vunpack.c.l.b16 %v1868
  %v1973 = vpack.c.b16 %v1961, %v1960
  %v1974 = vpack.c.b16 %v1963, %v1962
  %v1975 = vpack.c.b16 %v1965, %v1964
  %v1976 = vpack.c.b16 %v1967, %v1966
  %v1977 = vpack.c.b16 %v1969, %v1968
  %v1978 = vpack.c.b16 %v1971, %v1970
  %v1979 = vpack.c.b16 %v1972, %v1972
  %vm1980 = vcmask 818176
  %v1982 = vsel %vm1980, %v1973, 0
  %v1985 = vsel %vm1980, %v1974, 0
  %v1988 = vsel %vm1980, %v1975, 0
  %v1991 = vsel %vm1980, %v1976, 0
  %v1994 = vsel %vm1980, %v1977, 0
  %v1997 = vsel %vm1980, %v1978, 0
  %v2000 = vsel %vm1980, %v1979, 0
  %vm2002 = vcmask 1041408
  %v2004 = vsel %vm2002, %v1855, 0
  %2006 = vmatpush.bf16.msra.mxu0 0
  %2007 = vmatpush.bf16.msra.mxu0 %v2004
  %2008 = vmatpush.bf16.msra.mxu0 %v1854
  %2009 = vmatpush.bf16.msra.mxu0 %v1853
  %2010 = vmatpush.bf16.msra.mxu0 %v1852
  %2011 = vmatpush.bf16.msra.mxu0 %v1851
  %2012 = vmatpush.bf16.msra.mxu0 %v1850
  %2013 = vmatpush.bf16.msra.mxu0 %v1849
  %2014 = vmatmul.bf16.gmra.mxu0 %v1982
  %v2015 = vpop.f32.mrf.mxu0
  %v2016 = vadd.f32 %v1885, %v2015
  %v2017 = vpop.f32.mrf.mxu0
  %v2018 = vadd.f32 %v1890, %v2017
  %2019 = vmatmul.bf16.gmra.mxu0 %v1985
  %v2020 = vpop.f32.mrf.mxu0
  %v2021 = vadd.f32 %v1895, %v2020
  %v2022 = vpop.f32.mrf.mxu0
  %v2023 = vadd.f32 %v1900, %v2022
  %2024 = vmatmul.bf16.gmra.mxu0 %v1988
  %v2025 = vpop.f32.mrf.mxu0
  %v2026 = vadd.f32 %v1905, %v2025
  %v2027 = vpop.f32.mrf.mxu0
  %v2028 = vadd.f32 %v1910, %v2027
  %2029 = vmatmul.bf16.gmra.mxu0 %v1991
  %v2030 = vpop.f32.mrf.mxu0
  %v2031 = vadd.f32 %v1915, %v2030
  %v2032 = vpop.f32.mrf.mxu0
  %v2033 = vadd.f32 %v1920, %v2032
  %2034 = vmatmul.bf16.gmra.mxu0 %v1994
  %v2035 = vpop.f32.mrf.mxu0
  %v2036 = vadd.f32 %v1925, %v2035
  %v2037 = vpop.f32.mrf.mxu0
  %v2038 = vadd.f32 %v1930, %v2037
  %2039 = vmatmul.bf16.gmra.mxu0 %v1997
  %v2040 = vpop.f32.mrf.mxu0
  %v2041 = vadd.f32 %v1935, %v2040
  %v2042 = vpop.f32.mrf.mxu0
  %v2043 = vadd.f32 %v1940, %v2042
  %2044 = vmatmul.bf16.gmra.mxu0 %v2000
  %v2045 = vpop.f32.mrf.mxu0
  %v2046 = vadd.f32 %v1945, %v2045
  %v2047 = vpop.f32.mrf.mxu0
  %2048 = vdwg.mxu0
  %v2049 = vmax.f32 %v2016, 0.0
  %v2050 = vmax.f32 %v2018, 0.0
  %v2051 = vmax.f32 %v2021, 0.0
  %v2052 = vmax.f32 %v2023, 0.0
  %v2053 = vmax.f32 %v2026, 0.0
  %v2054 = vmax.f32 %v2028, 0.0
  %v2055 = vmax.f32 %v2031, 0.0
  %v2056 = vmax.f32 %v2033, 0.0
  %v2057 = vmax.f32 %v2036, 0.0
  %v2058 = vmax.f32 %v2038, 0.0
  %v2059 = vmax.f32 %v2041, 0.0
  %v2060 = vmax.f32 %v2043, 0.0
  %v2061 = vmax.f32 %v2046, 0.0
  %v2062 = vpack.c.bf16 %v2050, %v2049
  %v2063 = vpack.c.bf16 %v2052, %v2051
  %v2064 = vpack.c.bf16 %v2054, %v2053
  %v2065 = vpack.c.bf16 %v2056, %v2055
  %v2066 = vpack.c.bf16 %v2058, %v2057
  %v2067 = vpack.c.bf16 %v2060, %v2059
  %v2068 = vpack.c.bf16 %v2061, %v2061
  %v2069 = vld [vmem:[%s5] sm:$0xf]
  %v2070 = vld [vmem:[%s5 + $0x4] sm:$0x1]
  %v2071 = vld [vmem:[%s6] sm:$0xff]
  %v2072 = vld [vmem:[%s6 + $0x8] sm:$0x3]
  %2074 = vset.pattern.permute.xlu0 0
  %2075 = vperm.xlu0 %2074, %v2071
  %v2076 = vpop.permute.xlu0 %2075
  %2079 = vset.pattern.permute.xlu0 0
  %2080 = vperm.xlu0 %2079, %v2072
  %v2081 = vpop.permute.xlu0 %2080
  %v2085 = vunpack.c.l.b16 %v2069
  %v2086 = vunpack.c.l.b16 %v2070
  %v2087 = vpack.c.b16 %v2086, %v2085
  %v2089 = vsel %vm1980, %v2087, 0
  %v2092 = vsel %vm2002, %v2068, 0
  %2094 = vmatpush.bf16.msra.mxu0 0
  %2095 = vmatpush.bf16.msra.mxu0 %v2092
  %2096 = vmatpush.bf16.msra.mxu0 %v2067
  %2097 = vmatpush.bf16.msra.mxu0 %v2066
  %2098 = vmatpush.bf16.msra.mxu0 %v2065
  %2099 = vmatpush.bf16.msra.mxu0 %v2064
  %2100 = vmatpush.bf16.msra.mxu0 %v2063
  %2101 = vmatpush.bf16.msra.mxu0 %v2062
  %2102 = vmatmul.bf16.gmra.mxu0 %v2089
  %v2103 = vpop.f32.mrf.mxu0
  %v2104 = vadd.f32 %v2076, %v2103
  %v2105 = vpop.f32.mrf.mxu0
  %v2106 = vadd.f32 %v2081, %v2105
  %2107 = vdwg.mxu0
  %2108 = vst [vmem:[%s7] sm:$0xff] %v2104
  %2109 = vst [vmem:[%s7 + $0x8] sm:$0x3] %v2106
  // Predicated region
  $region30: #{model_pa3_forward.5} parent=0 // pred_check
    _
  $region31: #{model_pa3_forward.5} parent=0 // pred_check_branch
    %2111 = sbr.rel (0) target = $region33
  $region32: #{model_pa3_forward.5} parent=0 // pred_region
    _
  $region33: #{model_pa3_forward.5} parent=0 // pred_fallthru
    _
  // Predicated region
  $region34: #{model_pa3_forward.5} parent=0 // pred_check
    _
  $region35: #{model_pa3_forward.5} parent=0 // pred_check_branch
    %2113 = sbr.rel (0) target = $region37
  $region36: #{model_pa3_forward.5} parent=0 // pred_region
    _
  $region37: #{model_pa3_forward.5} parent=0 // pred_fallthru
    _

</llo_original>
